<compile_context>
chip_gen: v7x
topology: tpu7x:2x2x1
jax: 0.10.0
libtpu: 0.0.40
codegen_flags: <defaults>
</compile_context>

<pallas_src>
import jax
import jax.numpy as jnp
from jax.experimental import pallas as pl
from jax.experimental.pallas import tpu as pltpu


# Layer sizes of the PyTorch AE module (encoder then decoder).
_LAYER_DIMS = [784, 1000, 500, 250, 30, 250, 500, 1000, 784]
_N_LAYERS = len(_LAYER_DIMS) - 1


def _round_up(n, m=128):
    return ((n + m - 1) // m) * m


# Padded weight shapes (in_p, out_p).  Layer 0 keeps its exact 784
# contraction dim (x stays unpadded); every output dim is padded to a
# 128-multiple so activations / stores are lane dense.  The final layer's
# 784->896 padding is sliced off inside the kernel.
_W_PAD_SHAPES = []
for _i in range(_N_LAYERS):
    _din_p = _LAYER_DIMS[_i] if _i == 0 else _round_up(_LAYER_DIMS[_i])
    _dout_p = _round_up(_LAYER_DIMS[_i + 1])
    _W_PAD_SHAPES.append((_din_p, _dout_p))


def _ae_fused_kernel(*refs):
    """refs = (x, w_hbm[8], b[8], out, w_vmem[8], dma_sem)."""
    x_ref = refs[0]
    w_hbm = refs[1:1 + _N_LAYERS]                      # raw HBM refs
    b_refs = refs[1 + _N_LAYERS:1 + 2 * _N_LAYERS]     # small f32 VMEM refs
    o_ref = refs[1 + 2 * _N_LAYERS]                    # (B, 784) f32 VMEM
    w_vmem = refs[2 + 2 * _N_LAYERS:2 + 3 * _N_LAYERS]  # per-layer bf16 scratch
    sem = refs[2 + 3 * _N_LAYERS]                      # DMA sems, shape (8,)

    # Queue all weight HBM->VMEM copies up front; the DMA engine streams them
    # in layer order while the MXU works on earlier layers.
    copies = [
        pltpu.make_async_copy(w_hbm[i], w_vmem[i], sem.at[i])
        for i in range(_N_LAYERS)
    ]
    for cp in copies:
        cp.start()

    h = x_ref[...].astype(jnp.bfloat16)                # (B, 784) bf16
    act = None
    for i in range(_N_LAYERS):                         # unrolled, static shapes
        copies[i].wait()                               # layer i weights ready
        y = jnp.dot(h, w_vmem[i][...],                 # MXU, f32 accumulation
                    preferred_element_type=jnp.float32)
        act = jnp.maximum(y + b_refs[i][...], 0.0)     # bias + ReLU (VPU, f32)
        if i + 1 < _N_LAYERS:
            h = act.astype(jnp.bfloat16)               # bf16 between layers

    # Final activation is (B, 896); drop the zero padding and store (B, 784).
    o_ref[...] = act[:, :_LAYER_DIMS[-1]]


def init_params(key):
    """nn.Linear-style init: uniform(-1/sqrt(fan_in), 1/sqrt(fan_in)).

    Returns f32 weights of shape [in, out] and biases [1, out] (unpadded).
    """
    params = []
    for i in range(_N_LAYERS):
        fan_in, fan_out = _LAYER_DIMS[i], _LAYER_DIMS[i + 1]
        key, kw, kb = jax.random.split(key, 3)
        bound = 1.0 / jnp.sqrt(jnp.float32(fan_in))
        w = jax.random.uniform(kw, (fan_in, fan_out), jnp.float32, -bound, bound)
        b = jax.random.uniform(kb, (1, fan_out), jnp.float32, -bound, bound)
        params.append((w, b))
    return params


def prepare_params(params):
    """Zero-pad each layer to its kernel shape and cast weights to bf16."""
    ws, bs = [], []
    for i, (w, b) in enumerate(params):
        din, dout = _LAYER_DIMS[i], _LAYER_DIMS[i + 1]
        din_p, dout_p = _W_PAD_SHAPES[i]
        w_p = jnp.pad(w, ((0, din_p - din), (0, dout_p - dout)))
        b_p = jnp.pad(b, ((0, 0), (0, dout_p - dout)))
        ws.append(w_p.astype(jnp.bfloat16))
        bs.append(b_p.astype(jnp.float32))
    return ws, bs


@jax.jit
def ae_forward(x, padded_params):
    ws, bs = padded_params
    B = x.shape[0]

    # Advisory cost hint for XLA's scheduler.
    flops = 2 * B * sum(_LAYER_DIMS[i] * _LAYER_DIMS[i + 1]
                        for i in range(_N_LAYERS))
    w_bytes = sum(din_p * dout_p * 2 for (din_p, dout_p) in _W_PAD_SHAPES)
    b_bytes = sum(dout_p * 4 for (_, dout_p) in _W_PAD_SHAPES)
    io_bytes = B * _LAYER_DIMS[0] * 4 + B * _LAYER_DIMS[-1] * 4
    cost = pl.CostEstimate(flops=flops, transcendentals=0,
                           bytes_accessed=w_bytes + b_bytes + io_bytes)

    vmem_spec = pl.BlockSpec(memory_space=pltpu.MemorySpace.VMEM)
    hbm_spec = pl.BlockSpec(memory_space=pl.ANY)

    out = pl.pallas_call(
        _ae_fused_kernel,
        out_shape=jax.ShapeDtypeStruct((B, _LAYER_DIMS[-1]), jnp.float32),
        in_specs=[vmem_spec] + [hbm_spec] * _N_LAYERS + [vmem_spec] * _N_LAYERS,
        out_specs=vmem_spec,
        scratch_shapes=(
            [pltpu.VMEM(s, jnp.bfloat16) for s in _W_PAD_SHAPES]
            + [pltpu.SemaphoreType.DMA((_N_LAYERS,))]),
        compiler_params=pltpu.CompilerParams(vmem_limit_bytes=32 << 20),
        cost_estimate=cost,
    )(x, *ws, *bs)
    return out


def ae_forward_ref(x, params):
    """Plain-JAX reference using the same bf16-weight / f32-accum math."""
    h = x
    for w, b in params:
        y = jnp.dot(h.astype(jnp.bfloat16), w.astype(jnp.bfloat16),
                    preferred_element_type=jnp.float32)
        h = jnp.maximum(y + b, 0.0)
    return h


if __name__ == "__main__":
    key = jax.random.PRNGKey(0)
    key, kx = jax.random.split(key)

    batch = 8
    x = jax.random.normal(kx, (batch, 784), jnp.float32)
    params = init_params(key)
    padded_params = prepare_params(params)

    out = ae_forward(x, padded_params)
    out = jax.block_until_ready(out)

    ref = ae_forward_ref(x, params)
    assert out.shape == (batch, 784), out.shape
    assert jnp.allclose(out, ref, atol=2e-2, rtol=2e-2), "mismatch vs reference"

    print("KERNEL_OK")
</pallas_src>

<mosaic_0001>
module attributes {stable_mosaic.version = 11 : i64} {
  func.func @_ae_fused_kernel(%arg0: memref<8x784xf32, #tpu.memory_space<vmem>>, %arg1: memref<784x1024xbf16, #tpu.memory_space<any>>, %arg2: memref<1024x512xbf16, #tpu.memory_space<any>>, %arg3: memref<512x256xbf16, #tpu.memory_space<any>>, %arg4: memref<256x128xbf16, #tpu.memory_space<any>>, %arg5: memref<128x256xbf16, #tpu.memory_space<any>>, %arg6: memref<256x512xbf16, #tpu.memory_space<any>>, %arg7: memref<512x1024xbf16, #tpu.memory_space<any>>, %arg8: memref<1024x896xbf16, #tpu.memory_space<any>>, %arg9: memref<1x1024xf32, #tpu.memory_space<vmem>>, %arg10: memref<1x512xf32, #tpu.memory_space<vmem>>, %arg11: memref<1x256xf32, #tpu.memory_space<vmem>>, %arg12: memref<1x128xf32, #tpu.memory_space<vmem>>, %arg13: memref<1x256xf32, #tpu.memory_space<vmem>>, %arg14: memref<1x512xf32, #tpu.memory_space<vmem>>, %arg15: memref<1x1024xf32, #tpu.memory_space<vmem>>, %arg16: memref<1x896xf32, #tpu.memory_space<vmem>>, %arg17: memref<8x784xf32, #tpu.memory_space<vmem>>, %arg18: memref<784x1024xbf16, #tpu.memory_space<vmem>>, %arg19: memref<1024x512xbf16, #tpu.memory_space<vmem>>, %arg20: memref<512x256xbf16, #tpu.memory_space<vmem>>, %arg21: memref<256x128xbf16, #tpu.memory_space<vmem>>, %arg22: memref<128x256xbf16, #tpu.memory_space<vmem>>, %arg23: memref<256x512xbf16, #tpu.memory_space<vmem>>, %arg24: memref<512x1024xbf16, #tpu.memory_space<vmem>>, %arg25: memref<1024x896xbf16, #tpu.memory_space<vmem>>, %arg26: memref<8x!tpu.dma_semaphore, #tpu.memory_space<semaphore_mem>>) attributes {dimension_semantics = [], scalar_prefetch = 0 : i64, scratch_operands = 9 : i64, tpu.core_type = #tpu.core_type<tc>} {
    %c0_i32 = arith.constant 0 : i32
    %0 = tpu.memref_slice %arg26[%c0_i32] : memref<8x!tpu.dma_semaphore, #tpu.memory_space<semaphore_mem>> -> memref<1x!tpu.dma_semaphore, #tpu.memory_space<semaphore_mem>>
    %1 = tpu.memref_squeeze %0 : memref<1x!tpu.dma_semaphore, #tpu.memory_space<semaphore_mem>> -> memref<!tpu.dma_semaphore, #tpu.memory_space<semaphore_mem>>
    tpu.enqueue_dma source(%arg1 : memref<784x1024xbf16, #tpu.memory_space<any>>) target(%arg18 : memref<784x1024xbf16, #tpu.memory_space<vmem>>) target_semaphore(%1 : memref<!tpu.dma_semaphore, #tpu.memory_space<semaphore_mem>>)
    %c1_i32 = arith.constant 1 : i32
    %2 = tpu.memref_slice %arg26[%c1_i32] : memref<8x!tpu.dma_semaphore, #tpu.memory_space<semaphore_mem>> -> memref<1x!tpu.dma_semaphore, #tpu.memory_space<semaphore_mem>>
    %3 = tpu.memref_squeeze %2 : memref<1x!tpu.dma_semaphore, #tpu.memory_space<semaphore_mem>> -> memref<!tpu.dma_semaphore, #tpu.memory_space<semaphore_mem>>
    tpu.enqueue_dma source(%arg2 : memref<1024x512xbf16, #tpu.memory_space<any>>) target(%arg19 : memref<1024x512xbf16, #tpu.memory_space<vmem>>) target_semaphore(%3 : memref<!tpu.dma_semaphore, #tpu.memory_space<semaphore_mem>>)
    %c2_i32 = arith.constant 2 : i32
    %4 = tpu.memref_slice %arg26[%c2_i32] : memref<8x!tpu.dma_semaphore, #tpu.memory_space<semaphore_mem>> -> memref<1x!tpu.dma_semaphore, #tpu.memory_space<semaphore_mem>>
    %5 = tpu.memref_squeeze %4 : memref<1x!tpu.dma_semaphore, #tpu.memory_space<semaphore_mem>> -> memref<!tpu.dma_semaphore, #tpu.memory_space<semaphore_mem>>
    tpu.enqueue_dma source(%arg3 : memref<512x256xbf16, #tpu.memory_space<any>>) target(%arg20 : memref<512x256xbf16, #tpu.memory_space<vmem>>) target_semaphore(%5 : memref<!tpu.dma_semaphore, #tpu.memory_space<semaphore_mem>>)
    %c3_i32 = arith.constant 3 : i32
    %6 = tpu.memref_slice %arg26[%c3_i32] : memref<8x!tpu.dma_semaphore, #tpu.memory_space<semaphore_mem>> -> memref<1x!tpu.dma_semaphore, #tpu.memory_space<semaphore_mem>>
    %7 = tpu.memref_squeeze %6 : memref<1x!tpu.dma_semaphore, #tpu.memory_space<semaphore_mem>> -> memref<!tpu.dma_semaphore, #tpu.memory_space<semaphore_mem>>
    tpu.enqueue_dma source(%arg4 : memref<256x128xbf16, #tpu.memory_space<any>>) target(%arg21 : memref<256x128xbf16, #tpu.memory_space<vmem>>) target_semaphore(%7 : memref<!tpu.dma_semaphore, #tpu.memory_space<semaphore_mem>>)
    %c4_i32 = arith.constant 4 : i32
    %8 = tpu.memref_slice %arg26[%c4_i32] : memref<8x!tpu.dma_semaphore, #tpu.memory_space<semaphore_mem>> -> memref<1x!tpu.dma_semaphore, #tpu.memory_space<semaphore_mem>>
    %9 = tpu.memref_squeeze %8 : memref<1x!tpu.dma_semaphore, #tpu.memory_space<semaphore_mem>> -> memref<!tpu.dma_semaphore, #tpu.memory_space<semaphore_mem>>
    tpu.enqueue_dma source(%arg5 : memref<128x256xbf16, #tpu.memory_space<any>>) target(%arg22 : memref<128x256xbf16, #tpu.memory_space<vmem>>) target_semaphore(%9 : memref<!tpu.dma_semaphore, #tpu.memory_space<semaphore_mem>>)
    %c5_i32 = arith.constant 5 : i32
    %10 = tpu.memref_slice %arg26[%c5_i32] : memref<8x!tpu.dma_semaphore, #tpu.memory_space<semaphore_mem>> -> memref<1x!tpu.dma_semaphore, #tpu.memory_space<semaphore_mem>>
    %11 = tpu.memref_squeeze %10 : memref<1x!tpu.dma_semaphore, #tpu.memory_space<semaphore_mem>> -> memref<!tpu.dma_semaphore, #tpu.memory_space<semaphore_mem>>
    tpu.enqueue_dma source(%arg6 : memref<256x512xbf16, #tpu.memory_space<any>>) target(%arg23 : memref<256x512xbf16, #tpu.memory_space<vmem>>) target_semaphore(%11 : memref<!tpu.dma_semaphore, #tpu.memory_space<semaphore_mem>>)
    %c6_i32 = arith.constant 6 : i32
    %12 = tpu.memref_slice %arg26[%c6_i32] : memref<8x!tpu.dma_semaphore, #tpu.memory_space<semaphore_mem>> -> memref<1x!tpu.dma_semaphore, #tpu.memory_space<semaphore_mem>>
    %13 = tpu.memref_squeeze %12 : memref<1x!tpu.dma_semaphore, #tpu.memory_space<semaphore_mem>> -> memref<!tpu.dma_semaphore, #tpu.memory_space<semaphore_mem>>
    tpu.enqueue_dma source(%arg7 : memref<512x1024xbf16, #tpu.memory_space<any>>) target(%arg24 : memref<512x1024xbf16, #tpu.memory_space<vmem>>) target_semaphore(%13 : memref<!tpu.dma_semaphore, #tpu.memory_space<semaphore_mem>>)
    %c7_i32 = arith.constant 7 : i32
    %14 = tpu.memref_slice %arg26[%c7_i32] : memref<8x!tpu.dma_semaphore, #tpu.memory_space<semaphore_mem>> -> memref<1x!tpu.dma_semaphore, #tpu.memory_space<semaphore_mem>>
    %15 = tpu.memref_squeeze %14 : memref<1x!tpu.dma_semaphore, #tpu.memory_space<semaphore_mem>> -> memref<!tpu.dma_semaphore, #tpu.memory_space<semaphore_mem>>
    tpu.enqueue_dma source(%arg8 : memref<1024x896xbf16, #tpu.memory_space<any>>) target(%arg25 : memref<1024x896xbf16, #tpu.memory_space<vmem>>) target_semaphore(%15 : memref<!tpu.dma_semaphore, #tpu.memory_space<semaphore_mem>>)
    %c0 = arith.constant 0 : index
    %c0_0 = arith.constant 0 : index
    %16 = vector.load %arg0[%c0, %c0_0] : memref<8x784xf32, #tpu.memory_space<vmem>>, vector<8x784xf32>
    %17 = arith.truncf %16 : vector<8x784xf32> to vector<8x784xbf16>
    %c0_i32_1 = arith.constant 0 : i32
    %18 = tpu.memref_slice %arg26[%c0_i32_1] : memref<8x!tpu.dma_semaphore, #tpu.memory_space<semaphore_mem>> -> memref<1x!tpu.dma_semaphore, #tpu.memory_space<semaphore_mem>>
    %19 = tpu.memref_squeeze %18 : memref<1x!tpu.dma_semaphore, #tpu.memory_space<semaphore_mem>> -> memref<!tpu.dma_semaphore, #tpu.memory_space<semaphore_mem>>
    tpu.wait_dma2 semaphore(%19 : memref<!tpu.dma_semaphore, #tpu.memory_space<semaphore_mem>>) src(%arg1 : memref<784x1024xbf16, #tpu.memory_space<any>>) dst(%arg18 : memref<784x1024xbf16, #tpu.memory_space<vmem>>)
    %c0_2 = arith.constant 0 : index
    %c0_3 = arith.constant 0 : index
    %20 = vector.load %arg18[%c0_2, %c0_3] : memref<784x1024xbf16, #tpu.memory_space<vmem>>, vector<784x1024xbf16>
    %cst = arith.constant dense<0.000000e+00> : vector<8x1024xf32>
    %21 = tpu.matmul %17, %20, %cst {dimension_numbers = #tpu.dot_dimension_numbers<[1], [0], [0], [1], [0, 0, 1, 1], [], []>} : vector<8x784xbf16>, vector<784x1024xbf16>, vector<8x1024xf32> -> vector<8x1024xf32>
    %c0_4 = arith.constant 0 : index
    %c0_5 = arith.constant 0 : index
    %22 = vector.load %arg9[%c0_4, %c0_5] : memref<1x1024xf32, #tpu.memory_space<vmem>>, vector<1x1024xf32>
    %23 = vector.broadcast %22 : vector<1x1024xf32> to vector<8x1024xf32>
    %24 = arith.addf %21, %23 : vector<8x1024xf32>
    %cst_6 = arith.constant 0.000000e+00 : f32
    %25 = vector.broadcast %cst_6 : f32 to vector<8x1024xf32>
    %26 = arith.maximumf %24, %25 : vector<8x1024xf32>
    %27 = arith.truncf %26 : vector<8x1024xf32> to vector<8x1024xbf16>
    %c1_i32_7 = arith.constant 1 : i32
    %28 = tpu.memref_slice %arg26[%c1_i32_7] : memref<8x!tpu.dma_semaphore, #tpu.memory_space<semaphore_mem>> -> memref<1x!tpu.dma_semaphore, #tpu.memory_space<semaphore_mem>>
    %29 = tpu.memref_squeeze %28 : memref<1x!tpu.dma_semaphore, #tpu.memory_space<semaphore_mem>> -> memref<!tpu.dma_semaphore, #tpu.memory_space<semaphore_mem>>
    tpu.wait_dma2 semaphore(%29 : memref<!tpu.dma_semaphore, #tpu.memory_space<semaphore_mem>>) src(%arg2 : memref<1024x512xbf16, #tpu.memory_space<any>>) dst(%arg19 : memref<1024x512xbf16, #tpu.memory_space<vmem>>)
    %c0_8 = arith.constant 0 : index
    %c0_9 = arith.constant 0 : index
    %30 = vector.load %arg19[%c0_8, %c0_9] : memref<1024x512xbf16, #tpu.memory_space<vmem>>, vector<1024x512xbf16>
    %cst_10 = arith.constant dense<0.000000e+00> : vector<8x512xf32>
    %31 = tpu.matmul %27, %30, %cst_10 {dimension_numbers = #tpu.dot_dimension_numbers<[1], [0], [0], [1], [0, 0, 1, 1], [], []>} : vector<8x1024xbf16>, vector<1024x512xbf16>, vector<8x512xf32> -> vector<8x512xf32>
    %c0_11 = arith.constant 0 : index
    %c0_12 = arith.constant 0 : index
    %32 = vector.load %arg10[%c0_11, %c0_12] : memref<1x512xf32, #tpu.memory_space<vmem>>, vector<1x512xf32>
    %33 = vector.broadcast %32 : vector<1x512xf32> to vector<8x512xf32>
    %34 = arith.addf %31, %33 : vector<8x512xf32>
    %cst_13 = arith.constant 0.000000e+00 : f32
    %35 = vector.broadcast %cst_13 : f32 to vector<8x512xf32>
    %36 = arith.maximumf %34, %35 : vector<8x512xf32>
    %37 = arith.truncf %36 : vector<8x512xf32> to vector<8x512xbf16>
    %c2_i32_14 = arith.constant 2 : i32
    %38 = tpu.memref_slice %arg26[%c2_i32_14] : memref<8x!tpu.dma_semaphore, #tpu.memory_space<semaphore_mem>> -> memref<1x!tpu.dma_semaphore, #tpu.memory_space<semaphore_mem>>
    %39 = tpu.memref_squeeze %38 : memref<1x!tpu.dma_semaphore, #tpu.memory_space<semaphore_mem>> -> memref<!tpu.dma_semaphore, #tpu.memory_space<semaphore_mem>>
    tpu.wait_dma2 semaphore(%39 : memref<!tpu.dma_semaphore, #tpu.memory_space<semaphore_mem>>) src(%arg3 : memref<512x256xbf16, #tpu.memory_space<any>>) dst(%arg20 : memref<512x256xbf16, #tpu.memory_space<vmem>>)
    %c0_15 = arith.constant 0 : index
    %c0_16 = arith.constant 0 : index
    %40 = vector.load %arg20[%c0_15, %c0_16] : memref<512x256xbf16, #tpu.memory_space<vmem>>, vector<512x256xbf16>
    %cst_17 = arith.constant dense<0.000000e+00> : vector<8x256xf32>
    %41 = tpu.matmul %37, %40, %cst_17 {dimension_numbers = #tpu.dot_dimension_numbers<[1], [0], [0], [1], [0, 0, 1, 1], [], []>} : vector<8x512xbf16>, vector<512x256xbf16>, vector<8x256xf32> -> vector<8x256xf32>
    %c0_18 = arith.constant 0 : index
    %c0_19 = arith.constant 0 : index
    %42 = vector.load %arg11[%c0_18, %c0_19] : memref<1x256xf32, #tpu.memory_space<vmem>>, vector<1x256xf32>
    %43 = vector.broadcast %42 : vector<1x256xf32> to vector<8x256xf32>
    %44 = arith.addf %41, %43 : vector<8x256xf32>
    %cst_20 = arith.constant 0.000000e+00 : f32
    %45 = vector.broadcast %cst_20 : f32 to vector<8x256xf32>
    %46 = arith.maximumf %44, %45 : vector<8x256xf32>
    %47 = arith.truncf %46 : vector<8x256xf32> to vector<8x256xbf16>
    %c3_i32_21 = arith.constant 3 : i32
    %48 = tpu.memref_slice %arg26[%c3_i32_21] : memref<8x!tpu.dma_semaphore, #tpu.memory_space<semaphore_mem>> -> memref<1x!tpu.dma_semaphore, #tpu.memory_space<semaphore_mem>>
    %49 = tpu.memref_squeeze %48 : memref<1x!tpu.dma_semaphore, #tpu.memory_space<semaphore_mem>> -> memref<!tpu.dma_semaphore, #tpu.memory_space<semaphore_mem>>
    tpu.wait_dma2 semaphore(%49 : memref<!tpu.dma_semaphore, #tpu.memory_space<semaphore_mem>>) src(%arg4 : memref<256x128xbf16, #tpu.memory_space<any>>) dst(%arg21 : memref<256x128xbf16, #tpu.memory_space<vmem>>)
    %c0_22 = arith.constant 0 : index
    %c0_23 = arith.constant 0 : index
    %50 = vector.load %arg21[%c0_22, %c0_23] : memref<256x128xbf16, #tpu.memory_space<vmem>>, vector<256x128xbf16>
    %cst_24 = arith.constant dense<0.000000e+00> : vector<8x128xf32>
    %51 = tpu.matmul %47, %50, %cst_24 {dimension_numbers = #tpu.dot_dimension_numbers<[1], [0], [0], [1], [0, 0, 1, 1], [], []>} : vector<8x256xbf16>, vector<256x128xbf16>, vector<8x128xf32> -> vector<8x128xf32>
    %c0_25 = arith.constant 0 : index
    %c0_26 = arith.constant 0 : index
    %52 = vector.load %arg12[%c0_25, %c0_26] : memref<1x128xf32, #tpu.memory_space<vmem>>, vector<1x128xf32>
    %53 = vector.broadcast %52 : vector<1x128xf32> to vector<8x128xf32>
    %54 = arith.addf %51, %53 : vector<8x128xf32>
    %cst_27 = arith.constant 0.000000e+00 : f32
    %55 = vector.broadcast %cst_27 : f32 to vector<8x128xf32>
    %56 = arith.maximumf %54, %55 : vector<8x128xf32>
    %57 = arith.truncf %56 : vector<8x128xf32> to vector<8x128xbf16>
    %c4_i32_28 = arith.constant 4 : i32
    %58 = tpu.memref_slice %arg26[%c4_i32_28] : memref<8x!tpu.dma_semaphore, #tpu.memory_space<semaphore_mem>> -> memref<1x!tpu.dma_semaphore, #tpu.memory_space<semaphore_mem>>
    %59 = tpu.memref_squeeze %58 : memref<1x!tpu.dma_semaphore, #tpu.memory_space<semaphore_mem>> -> memref<!tpu.dma_semaphore, #tpu.memory_space<semaphore_mem>>
    tpu.wait_dma2 semaphore(%59 : memref<!tpu.dma_semaphore, #tpu.memory_space<semaphore_mem>>) src(%arg5 : memref<128x256xbf16, #tpu.memory_space<any>>) dst(%arg22 : memref<128x256xbf16, #tpu.memory_space<vmem>>)
    %c0_29 = arith.constant 0 : index
    %c0_30 = arith.constant 0 : index
    %60 = vector.load %arg22[%c0_29, %c0_30] : memref<128x256xbf16, #tpu.memory_space<vmem>>, vector<128x256xbf16>
    %cst_31 = arith.constant dense<0.000000e+00> : vector<8x256xf32>
    %61 = tpu.matmul %57, %60, %cst_31 {dimension_numbers = #tpu.dot_dimension_numbers<[1], [0], [0], [1], [0, 0, 1, 1], [], []>} : vector<8x128xbf16>, vector<128x256xbf16>, vector<8x256xf32> -> vector<8x256xf32>
    %c0_32 = arith.constant 0 : index
    %c0_33 = arith.constant 0 : index
    %62 = vector.load %arg13[%c0_32, %c0_33] : memref<1x256xf32, #tpu.memory_space<vmem>>, vector<1x256xf32>
    %63 = vector.broadcast %62 : vector<1x256xf32> to vector<8x256xf32>
    %64 = arith.addf %61, %63 : vector<8x256xf32>
    %cst_34 = arith.constant 0.000000e+00 : f32
    %65 = vector.broadcast %cst_34 : f32 to vector<8x256xf32>
    %66 = arith.maximumf %64, %65 : vector<8x256xf32>
    %67 = arith.truncf %66 : vector<8x256xf32> to vector<8x256xbf16>
    %c5_i32_35 = arith.constant 5 : i32
    %68 = tpu.memref_slice %arg26[%c5_i32_35] : memref<8x!tpu.dma_semaphore, #tpu.memory_space<semaphore_mem>> -> memref<1x!tpu.dma_semaphore, #tpu.memory_space<semaphore_mem>>
    %69 = tpu.memref_squeeze %68 : memref<1x!tpu.dma_semaphore, #tpu.memory_space<semaphore_mem>> -> memref<!tpu.dma_semaphore, #tpu.memory_space<semaphore_mem>>
    tpu.wait_dma2 semaphore(%69 : memref<!tpu.dma_semaphore, #tpu.memory_space<semaphore_mem>>) src(%arg6 : memref<256x512xbf16, #tpu.memory_space<any>>) dst(%arg23 : memref<256x512xbf16, #tpu.memory_space<vmem>>)
    %c0_36 = arith.constant 0 : index
    %c0_37 = arith.constant 0 : index
    %70 = vector.load %arg23[%c0_36, %c0_37] : memref<256x512xbf16, #tpu.memory_space<vmem>>, vector<256x512xbf16>
    %cst_38 = arith.constant dense<0.000000e+00> : vector<8x512xf32>
    %71 = tpu.matmul %67, %70, %cst_38 {dimension_numbers = #tpu.dot_dimension_numbers<[1], [0], [0], [1], [0, 0, 1, 1], [], []>} : vector<8x256xbf16>, vector<256x512xbf16>, vector<8x512xf32> -> vector<8x512xf32>
    %c0_39 = arith.constant 0 : index
    %c0_40 = arith.constant 0 : index
    %72 = vector.load %arg14[%c0_39, %c0_40] : memref<1x512xf32, #tpu.memory_space<vmem>>, vector<1x512xf32>
    %73 = vector.broadcast %72 : vector<1x512xf32> to vector<8x512xf32>
    %74 = arith.addf %71, %73 : vector<8x512xf32>
    %cst_41 = arith.constant 0.000000e+00 : f32
    %75 = vector.broadcast %cst_41 : f32 to vector<8x512xf32>
    %76 = arith.maximumf %74, %75 : vector<8x512xf32>
    %77 = arith.truncf %76 : vector<8x512xf32> to vector<8x512xbf16>
    %c6_i32_42 = arith.constant 6 : i32
    %78 = tpu.memref_slice %arg26[%c6_i32_42] : memref<8x!tpu.dma_semaphore, #tpu.memory_space<semaphore_mem>> -> memref<1x!tpu.dma_semaphore, #tpu.memory_space<semaphore_mem>>
    %79 = tpu.memref_squeeze %78 : memref<1x!tpu.dma_semaphore, #tpu.memory_space<semaphore_mem>> -> memref<!tpu.dma_semaphore, #tpu.memory_space<semaphore_mem>>
    tpu.wait_dma2 semaphore(%79 : memref<!tpu.dma_semaphore, #tpu.memory_space<semaphore_mem>>) src(%arg7 : memref<512x1024xbf16, #tpu.memory_space<any>>) dst(%arg24 : memref<512x1024xbf16, #tpu.memory_space<vmem>>)
    %c0_43 = arith.constant 0 : index
    %c0_44 = arith.constant 0 : index
    %80 = vector.load %arg24[%c0_43, %c0_44] : memref<512x1024xbf16, #tpu.memory_space<vmem>>, vector<512x1024xbf16>
    %cst_45 = arith.constant dense<0.000000e+00> : vector<8x1024xf32>
    %81 = tpu.matmul %77, %80, %cst_45 {dimension_numbers = #tpu.dot_dimension_numbers<[1], [0], [0], [1], [0, 0, 1, 1], [], []>} : vector<8x512xbf16>, vector<512x1024xbf16>, vector<8x1024xf32> -> vector<8x1024xf32>
    %c0_46 = arith.constant 0 : index
    %c0_47 = arith.constant 0 : index
    %82 = vector.load %arg15[%c0_46, %c0_47] : memref<1x1024xf32, #tpu.memory_space<vmem>>, vector<1x1024xf32>
    %83 = vector.broadcast %82 : vector<1x1024xf32> to vector<8x1024xf32>
    %84 = arith.addf %81, %83 : vector<8x1024xf32>
    %cst_48 = arith.constant 0.000000e+00 : f32
    %85 = vector.broadcast %cst_48 : f32 to vector<8x1024xf32>
    %86 = arith.maximumf %84, %85 : vector<8x1024xf32>
    %87 = arith.truncf %86 : vector<8x1024xf32> to vector<8x1024xbf16>
    %c7_i32_49 = arith.constant 7 : i32
    %88 = tpu.memref_slice %arg26[%c7_i32_49] : memref<8x!tpu.dma_semaphore, #tpu.memory_space<semaphore_mem>> -> memref<1x!tpu.dma_semaphore, #tpu.memory_space<semaphore_mem>>
    %89 = tpu.memref_squeeze %88 : memref<1x!tpu.dma_semaphore, #tpu.memory_space<semaphore_mem>> -> memref<!tpu.dma_semaphore, #tpu.memory_space<semaphore_mem>>
    tpu.wait_dma2 semaphore(%89 : memref<!tpu.dma_semaphore, #tpu.memory_space<semaphore_mem>>) src(%arg8 : memref<1024x896xbf16, #tpu.memory_space<any>>) dst(%arg25 : memref<1024x896xbf16, #tpu.memory_space<vmem>>)
    %c0_50 = arith.constant 0 : index
    %c0_51 = arith.constant 0 : index
    %90 = vector.load %arg25[%c0_50, %c0_51] : memref<1024x896xbf16, #tpu.memory_space<vmem>>, vector<1024x896xbf16>
    %cst_52 = arith.constant dense<0.000000e+00> : vector<8x896xf32>
    %91 = tpu.matmul %87, %90, %cst_52 {dimension_numbers = #tpu.dot_dimension_numbers<[1], [0], [0], [1], [0, 0, 1, 1], [], []>} : vector<8x1024xbf16>, vector<1024x896xbf16>, vector<8x896xf32> -> vector<8x896xf32>
    %c0_53 = arith.constant 0 : index
    %c0_54 = arith.constant 0 : index
    %92 = vector.load %arg16[%c0_53, %c0_54] : memref<1x896xf32, #tpu.memory_space<vmem>>, vector<1x896xf32>
    %93 = vector.broadcast %92 : vector<1x896xf32> to vector<8x896xf32>
    %94 = arith.addf %91, %93 : vector<8x896xf32>
    %cst_55 = arith.constant 0.000000e+00 : f32
    %95 = vector.broadcast %cst_55 : f32 to vector<8x896xf32>
    %96 = arith.maximumf %94, %95 : vector<8x896xf32>
    %97 = vector.extract_strided_slice %96 {offsets = [0, 0], sizes = [8, 784], strides = [1, 1]} : vector<8x896xf32> to vector<8x784xf32>
    %c0_56 = arith.constant 0 : index
    %c0_57 = arith.constant 0 : index
    %98 = vector.load %arg17[%c0_56, %c0_57] : memref<8x784xf32, #tpu.memory_space<vmem>>, vector<8x784xf32>
    tpu.vector_store %arg17[%c0_56, %c0_57], %97 {strides = array<i32>} : memref<8x784xf32, #tpu.memory_space<vmem>>, vector<8x784xf32>,
    return
  }
}

</mosaic_0001>

<llo_original>
// kernel: ae_forward.1
$region0: #{ae_forward.1}
  #allocation0 [shape = 'u32[]', space=smem, size = 0x4, offset = 0x4, fixed_abs, tag = 'smem constant byte address 0x4 - core index']
  #allocation1 [shape = 'u32[144,128]{1,0:T(1,128)}', space=vmem, size = 0x12000, scoped, tag = 'internal scratch']
  #allocation2 [shape = 'bf16[784,1024]{1,0:T(16,128)(2,1)}', space=vmem, size = 0x188000, scoped, tag = 'scratch operand']
  #allocation3 [shape = 'bf16[1024,512]{1,0:T(16,128)(2,1)}', space=vmem, size = 0x100000, scoped, tag = 'scratch operand']
  #allocation4 [shape = 'bf16[512,256]{1,0:T(16,128)(2,1)}', space=vmem, size = 0x40000, scoped, tag = 'scratch operand']
  #allocation5 [shape = 'bf16[256,128]{1,0:T(16,128)(2,1)}', space=vmem, size = 0x10000, scoped, tag = 'scratch operand']
  #allocation6 [shape = 'bf16[128,256]{1,0:T(16,128)(2,1)}', space=vmem, size = 0x10000, scoped, tag = 'scratch operand']
  #allocation7 [shape = 'bf16[256,512]{1,0:T(16,128)(2,1)}', space=vmem, size = 0x40000, scoped, tag = 'scratch operand']
  #allocation8 [shape = 'bf16[512,1024]{1,0:T(16,128)(2,1)}', space=vmem, size = 0x100000, scoped, tag = 'scratch operand']
  #allocation9 [shape = 'bf16[1024,896]{1,0:T(16,128)(2,1)}', space=vmem, size = 0x1c0000, scoped, tag = 'scratch operand']
  #allocation10 [shape = 's32[8]{0}', space=sflag, size = 0x20, scoped, tag = 'scratch operand']
  #allocation27 [shape = 's32[]', space=sflag, size = 0x4, offset = 0, fixed_abs, tag = 'sflag constant byte address 0x0 - dummy sync flag']
  #allocation29 [shape = 's32[]', space=sflag, size = 0x4, offset = 0, fixed_abs, tag = 'sflag constant byte address 0x0 - dummy sync flag']
  #allocation31 [shape = 's32[]', space=sflag, size = 0x4, offset = 0, fixed_abs, tag = 'sflag constant byte address 0x0 - dummy sync flag']
  #allocation33 [shape = 's32[]', space=sflag, size = 0x4, offset = 0, fixed_abs, tag = 'sflag constant byte address 0x0 - dummy sync flag']
  #allocation34 [shape = 's32[]', space=sflag, size = 0x4, offset = 0, fixed_abs, tag = 'sflag constant byte address 0x0 - dummy sync flag']
  #allocation35 [shape = 'u32[]', space=smem, size = 0x4, offset = 0x44, fixed_abs, tag = 'smem constant byte address 0x44 - assertion arg 0']
  #allocation36 [shape = 'u32[]', space=smem, size = 0x4, offset = 0x48, fixed_abs, tag = 'smem constant byte address 0x48 - assertion arg 1']
  #allocation37 [shape = 's32[]', space=sflag, size = 0x4, offset = 0, fixed_abs, tag = 'sflag constant byte address 0x0 - dummy sync flag']
  #allocation39 [shape = 's32[]', space=sflag, size = 0x4, offset = 0, fixed_abs, tag = 'sflag constant byte address 0x0 - dummy sync flag']
  #allocation41 [shape = 's32[]', space=sflag, size = 0x4, offset = 0, fixed_abs, tag = 'sflag constant byte address 0x0 - dummy sync flag']
  #allocation43 [shape = 's32[]', space=sflag, size = 0x4, offset = 0, fixed_abs, tag = 'sflag constant byte address 0x0 - dummy sync flag']
  %s0 = inlined_call_operand.hbm [shape: f32[8,784], index: 0, kind: input, shape index: {}]
  %s1 = inlined_call_operand.hbm [shape: bf16[784,1024], index: 1, kind: input, shape index: {}]
  %s2 = inlined_call_operand.hbm [shape: bf16[1024,512], index: 2, kind: input, shape index: {}]
  %s3 = inlined_call_operand.hbm [shape: bf16[512,256], index: 3, kind: input, shape index: {}]
  %s4 = inlined_call_operand.hbm [shape: bf16[256,128], index: 4, kind: input, shape index: {}]
  %s5 = inlined_call_operand.hbm [shape: bf16[128,256], index: 5, kind: input, shape index: {}]
  %s6 = inlined_call_operand.hbm [shape: bf16[256,512], index: 6, kind: input, shape index: {}]
  %s7 = inlined_call_operand.hbm [shape: bf16[512,1024], index: 7, kind: input, shape index: {}]
  %s8 = inlined_call_operand.hbm [shape: bf16[1024,896], index: 8, kind: input, shape index: {}]
  %s9 = inlined_call_operand.hbm [shape: f32[1,1024], index: 9, kind: input, shape index: {}]
  %s10 = inlined_call_operand.hbm [shape: f32[1,512], index: 10, kind: input, shape index: {}]
  %s11 = inlined_call_operand.hbm [shape: f32[1,256], index: 11, kind: input, shape index: {}]
  %s12 = inlined_call_operand.hbm [shape: f32[1,128], index: 12, kind: input, shape index: {}]
  %s13 = inlined_call_operand.hbm [shape: f32[1,256], index: 13, kind: input, shape index: {}]
  %s14 = inlined_call_operand.hbm [shape: f32[1,512], index: 14, kind: input, shape index: {}]
  %s15 = inlined_call_operand.hbm [shape: f32[1,1024], index: 15, kind: input, shape index: {}]
  %s16 = inlined_call_operand.hbm [shape: f32[1,896], index: 16, kind: input, shape index: {}]
  %s17 = inlined_call_operand.hbm [shape: f32[8,784], index: 17, kind: output, shape index: {}]
  %s18 = sld [smem:[#allocation0]]
  $region86: #{ae_forward.1} parent=0
    _
  %s20 = ssub.s32 1, %s18
  %s21 = scalar_select 0, %s20, %s18
  $region1: #{ae_forward.1} parent=0
    #allocation11 [shape = 'u8[28672]{0}', space=vmem, size = 0x7000, scoped, tag = 'input window, operand 0, single buffered']
    #allocation12 [shape = 's32[1]{0}', space=sflag, size = 0x4, scoped, tag = 'scoped memory for ae_forward.1']
    #allocation13 [shape = 's32[1]{0}', space=sflag, size = 0x4, scoped, tag = 'scoped memory for ae_forward.1']
    #allocation14 [shape = 'u8[4096]{0}', space=vmem, size = 0x1000, scoped, tag = 'input window, operand 9, single buffered']
    #allocation15 [shape = 's32[1]{0}', space=sflag, size = 0x4, scoped, tag = 'scoped memory for ae_forward.1']
    #allocation16 [shape = 'u8[2048]{0}', space=vmem, size = 0x800, scoped, tag = 'input window, operand 10, single buffered']
    #allocation17 [shape = 'u8[1024]{0}', space=vmem, size = 0x400, scoped, tag = 'input window, operand 11, single buffered']
    #allocation18 [shape = 's32[1]{0}', space=sflag, size = 0x4, scoped, tag = 'scoped memory for ae_forward.1']
    #allocation19 [shape = 'u8[512]{0}', space=vmem, size = 0x400, scoped, tag = 'input window, operand 12, single buffered']
    #allocation20 [shape = 'u8[1024]{0}', space=vmem, size = 0x400, scoped, tag = 'input window, operand 13, single buffered']
    #allocation21 [shape = 's32[1]{0}', space=sflag, size = 0x4, scoped, tag = 'scoped memory for ae_forward.1']
    #allocation22 [shape = 'u8[2048]{0}', space=vmem, size = 0x800, scoped, tag = 'input window, operand 14, single buffered']
    #allocation23 [shape = 'u8[4096]{0}', space=vmem, size = 0x1000, scoped, tag = 'input window, operand 15, single buffered']
    #allocation24 [shape = 's32[1]{0}', space=sflag, size = 0x4, scoped, tag = 'scoped memory for ae_forward.1']
    #allocation25 [shape = 'u8[3584]{0}', space=vmem, size = 0x1000, scoped, tag = 'input window, operand 16, single buffered']
    #allocation26 [shape = 'u8[28672]{0}', space=vmem, size = 0x7000, scoped, tag = 'output window, operand 0, single buffered']
    #allocation28 [shape = 'u32[9]{0}', space=smem, size = 0x24, scoped, tag = 'DMA stride descriptor']
    #allocation30 [shape = 'u32[9]{0}', space=smem, size = 0x24, scoped, tag = 'DMA stride descriptor']
    #allocation32 [shape = 'u32[9]{0}', space=smem, size = 0x24, scoped, tag = 'DMA stride descriptor']
    #allocation38 [shape = 'u32[9]{0}', space=smem, size = 0x24, scoped, tag = 'DMA stride descriptor']
    #allocation40 [shape = 'u32[9]{0}', space=smem, size = 0x24, scoped, tag = 'DMA stride descriptor']
    #allocation42 [shape = 'u32[9]{0}', space=smem, size = 0x24, scoped, tag = 'DMA stride descriptor']
    #allocation44 [shape = 'u32[9]{0}', space=smem, size = 0x24, scoped, tag = 'DMA stride descriptor']
    %22 = vsyncpa [#allocation12], 0
    %23 = vsyncpa [#allocation15], 0
    %24 = vsyncpa [#allocation18], 0
    %25 = vsyncpa [#allocation21], 0
    %26 = vsyncpa [#allocation24], 0
    %27 = vsyncpa [#allocation13], 0
    // Predicated region
    $region2: #{ae_forward.1} parent=1 // pred_check
      _
    $region3: #{ae_forward.1} parent=1 // pred_check_branch
      %29 = sbr.rel (0) target = $region5
    $region4: #{ae_forward.1} parent=1 // pred_region
      %s31 = ssub.s32 896, 896
      %32 = vsyncadd [#allocation12], %s31
      %s34 = sshll.u32 [#allocation11], 4
      %s35 = int_to_ptr.vmem [resolvable:$true] %s34
      %37 = dma.hbm_to_vmem [thread:$0]  %s0, 896, %s35, [#allocation12]
    $region5: #{ae_forward.1} parent=1 // pred_fallthru
      _
    // Predicated region
    $region6: #{ae_forward.1} parent=1 // pred_check
      _
    $region7: #{ae_forward.1} parent=1 // pred_check_branch
      %39 = sbr.rel (0) target = $region9
    $region8: #{ae_forward.1} parent=1 // pred_region
      %s41 = ssub.s32 128, 128
      %42 = vsyncadd [#allocation15], %s41
      %s44 = sshll.u32 [#allocation14], 4
      %s45 = int_to_ptr.vmem [resolvable:$true] %s44
      %47 = dma.hbm_to_vmem [thread:$0]  %s9, 128, %s45, [#allocation15]
    $region9: #{ae_forward.1} parent=1 // pred_fallthru
      _
    // Predicated region
    $region10: #{ae_forward.1} parent=1 // pred_check
      _
    $region11: #{ae_forward.1} parent=1 // pred_check_branch
      %49 = sbr.rel (0) target = $region13
    $region12: #{ae_forward.1} parent=1 // pred_region
      %s51 = ssub.s32 64, 64
      %52 = vsyncadd [#allocation15], %s51
      %s54 = sshll.u32 [#allocation16], 4
      %s55 = int_to_ptr.vmem [resolvable:$true] %s54
      %57 = dma.hbm_to_vmem [thread:$0]  %s10, 64, %s55, [#allocation15]
    $region13: #{ae_forward.1} parent=1 // pred_fallthru
      _
    // Predicated region
    $region14: #{ae_forward.1} parent=1 // pred_check
      _
    $region15: #{ae_forward.1} parent=1 // pred_check_branch
      %59 = sbr.rel (0) target = $region17
    $region16: #{ae_forward.1} parent=1 // pred_region
      %s61 = ssub.s32 32, 32
      %62 = vsyncadd [#allocation18], %s61
      %s64 = sshll.u32 [#allocation17], 4
      %s65 = int_to_ptr.vmem [resolvable:$true] %s64
      %67 = dma.hbm_to_vmem [thread:$0]  %s11, 32, %s65, [#allocation18]
    $region17: #{ae_forward.1} parent=1 // pred_fallthru
      _
    // Predicated region
    $region18: #{ae_forward.1} parent=1 // pred_check
      _
    $region19: #{ae_forward.1} parent=1 // pred_check_branch
      %69 = sbr.rel (0) target = $region21
    $region20: #{ae_forward.1} parent=1 // pred_region
      %s71 = ssub.s32 16, 16
      %72 = vsyncadd [#allocation18], %s71
      %s74 = sshll.u32 [#allocation19], 4
      %s75 = int_to_ptr.vmem [resolvable:$true] %s74
      %77 = dma.hbm_to_vmem [thread:$0]  %s12, 16, %s75, [#allocation18]
    $region21: #{ae_forward.1} parent=1 // pred_fallthru
      _
    // Predicated region
    $region22: #{ae_forward.1} parent=1 // pred_check
      _
    $region23: #{ae_forward.1} parent=1 // pred_check_branch
      %79 = sbr.rel (0) target = $region25
    $region24: #{ae_forward.1} parent=1 // pred_region
      %s81 = ssub.s32 32, 32
      %82 = vsyncadd [#allocation21], %s81
      %s84 = sshll.u32 [#allocation20], 4
      %s85 = int_to_ptr.vmem [resolvable:$true] %s84
      %87 = dma.hbm_to_vmem [thread:$0]  %s13, 32, %s85, [#allocation21]
    $region25: #{ae_forward.1} parent=1 // pred_fallthru
      _
    // Predicated region
    $region26: #{ae_forward.1} parent=1 // pred_check
      _
    $region27: #{ae_forward.1} parent=1 // pred_check_branch
      %89 = sbr.rel (0) target = $region29
    $region28: #{ae_forward.1} parent=1 // pred_region
      %s91 = ssub.s32 64, 64
      %92 = vsyncadd [#allocation21], %s91
      %s94 = sshll.u32 [#allocation22], 4
      %s95 = int_to_ptr.vmem [resolvable:$true] %s94
      %97 = dma.hbm_to_vmem [thread:$0]  %s14, 64, %s95, [#allocation21]
    $region29: #{ae_forward.1} parent=1 // pred_fallthru
      _
    // Predicated region
    $region30: #{ae_forward.1} parent=1 // pred_check
      _
    $region31: #{ae_forward.1} parent=1 // pred_check_branch
      %99 = sbr.rel (0) target = $region33
    $region32: #{ae_forward.1} parent=1 // pred_region
      %s101 = ssub.s32 128, 128
      %102 = vsyncadd [#allocation24], %s101
      %s104 = sshll.u32 [#allocation23], 4
      %s105 = int_to_ptr.vmem [resolvable:$true] %s104
      %107 = dma.hbm_to_vmem [thread:$0]  %s15, 128, %s105, [#allocation24]
    $region33: #{ae_forward.1} parent=1 // pred_fallthru
      _
    // Predicated region
    $region34: #{ae_forward.1} parent=1 // pred_check
      _
    $region35: #{ae_forward.1} parent=1 // pred_check_branch
      %109 = sbr.rel (0) target = $region37
    $region36: #{ae_forward.1} parent=1 // pred_region
      %s111 = ssub.s32 112, 112
      %112 = vsyncadd [#allocation24], %s111
      %s114 = sshll.u32 [#allocation25], 4
      %s115 = int_to_ptr.vmem [resolvable:$true] %s114
      %117 = dma.hbm_to_vmem [thread:$0]  %s16, 112, %s115, [#allocation24]
    $region37: #{ae_forward.1} parent=1 // pred_fallthru
      _
    // Predicated region
    $region38: #{ae_forward.1} parent=1 // pred_check
      _
    $region39: #{ae_forward.1} parent=1 // pred_check_branch
      %119 = sbr.rel (0) target = $region41
    $region40: #{ae_forward.1} parent=1 // pred_region
      %120 = dma.done [#allocation12], 896
    $region41: #{ae_forward.1} parent=1 // pred_fallthru
      _
    // Predicated region
    $region42: #{ae_forward.1} parent=1 // pred_check
      _
    $region43: #{ae_forward.1} parent=1 // pred_check_branch
      %122 = sbr.rel (0) target = $region45
    $region44: #{ae_forward.1} parent=1 // pred_region
      %123 = dma.done [#allocation15], 128
    $region45: #{ae_forward.1} parent=1 // pred_fallthru
      _
    // Predicated region
    $region46: #{ae_forward.1} parent=1 // pred_check
      _
    $region47: #{ae_forward.1} parent=1 // pred_check_branch
      %125 = sbr.rel (0) target = $region49
    $region48: #{ae_forward.1} parent=1 // pred_region
      %126 = dma.done [#allocation15], 64
    $region49: #{ae_forward.1} parent=1 // pred_fallthru
      _
    // Predicated region
    $region50: #{ae_forward.1} parent=1 // pred_check
      _
    $region51: #{ae_forward.1} parent=1 // pred_check_branch
      %128 = sbr.rel (0) target = $region53
    $region52: #{ae_forward.1} parent=1 // pred_region
      %129 = dma.done [#allocation18], 32
    $region53: #{ae_forward.1} parent=1 // pred_fallthru
      _
    // Predicated region
    $region54: #{ae_forward.1} parent=1 // pred_check
      _
    $region55: #{ae_forward.1} parent=1 // pred_check_branch
      %131 = sbr.rel (0) target = $region57
    $region56: #{ae_forward.1} parent=1 // pred_region
      %132 = dma.done [#allocation18], 16
    $region57: #{ae_forward.1} parent=1 // pred_fallthru
      _
    // Predicated region
    $region58: #{ae_forward.1} parent=1 // pred_check
      _
    $region59: #{ae_forward.1} parent=1 // pred_check_branch
      %134 = sbr.rel (0) target = $region61
    $region60: #{ae_forward.1} parent=1 // pred_region
      %135 = dma.done [#allocation21], 32
    $region61: #{ae_forward.1} parent=1 // pred_fallthru
      _
    // Predicated region
    $region62: #{ae_forward.1} parent=1 // pred_check
      _
    $region63: #{ae_forward.1} parent=1 // pred_check_branch
      %137 = sbr.rel (0) target = $region65
    $region64: #{ae_forward.1} parent=1 // pred_region
      %138 = dma.done [#allocation21], 64
    $region65: #{ae_forward.1} parent=1 // pred_fallthru
      _
    // Predicated region
    $region66: #{ae_forward.1} parent=1 // pred_check
      _
    $region67: #{ae_forward.1} parent=1 // pred_check_branch
      %140 = sbr.rel (0) target = $region69
    $region68: #{ae_forward.1} parent=1 // pred_region
      %141 = dma.done [#allocation24], 128
    $region69: #{ae_forward.1} parent=1 // pred_fallthru
      _
    // Predicated region
    $region70: #{ae_forward.1} parent=1 // pred_check
      _
    $region71: #{ae_forward.1} parent=1 // pred_check_branch
      %143 = sbr.rel (0) target = $region73
    $region72: #{ae_forward.1} parent=1 // pred_region
      %144 = dma.done [#allocation24], 112
    $region73: #{ae_forward.1} parent=1 // pred_fallthru
      _
    %s147 = sshll.u32 1, 14
    %s148 = sxor.u32 4294967295, %s147
    %s150 = sld [smem:[#allocation0]]
    %s151 = sadd.s32 2, %s150
    %s153 = sshll.u32 7, 26
    %s154 = sxor.u32 4294967295, %s153
    %s155 = sand.u32 0, %s154
    %s156 = sshll.u32 %s151, 26
    %s157 = sor.u32 %s155, %s156
    %s158 = sshll.u32 [#allocation2], 4
    %s159 = int_to_ptr.vmem [resolvable:$true] %s158
    %162 = sst [smem:[#allocation28]] 1024
    %s163 = scalar_lea.smem [#allocation28], 1
    %164 = sst [smem:[%s163]] 1024
    %s165 = scalar_lea.smem [#allocation28], 2
    %166 = sst [smem:[%s165]] 8
    %s167 = scalar_lea.smem [#allocation28], 3
    %168 = sst [smem:[%s167]] 64
    %s169 = scalar_lea.smem [#allocation28], 4
    %170 = sst [smem:[%s169]] 128
    %s171 = scalar_lea.smem [#allocation28], 5
    %172 = sst [smem:[%s171]] 2
    %s173 = scalar_lea.smem [#allocation28], 6
    %174 = sst [smem:[%s173]] 512
    %s175 = scalar_lea.smem [#allocation28], 7
    %176 = sst [smem:[%s175]] 64
    %s177 = scalar_lea.smem [#allocation28], 8
    %178 = sst [smem:[%s177]] 4
    %180 = dma.general %s1, 50176, %s159, [#allocation10], [#allocation27], [#allocation28], %s157, 0
    %s181 = scalar_lea.sflag [#allocation10], 1
    %s183 = sshll.u32 1, 14
    %s184 = sxor.u32 4294967295, %s183
    %s186 = sadd.s32 2, %s150
    %s188 = sshll.u32 7, 26
    %s189 = sxor.u32 4294967295, %s188
    %s190 = sand.u32 0, %s189
    %s191 = sshll.u32 %s186, 26
    %s192 = sor.u32 %s190, %s191
    %s193 = sshll.u32 [#allocation3], 4
    %s194 = int_to_ptr.vmem [resolvable:$true] %s193
    %197 = sst [smem:[#allocation30]] 512
    %s198 = scalar_lea.smem [#allocation30], 1
    %199 = sst [smem:[%s198]] 512
    %s200 = scalar_lea.smem [#allocation30], 2
    %201 = sst [smem:[%s200]] 4
    %s202 = scalar_lea.smem [#allocation30], 3
    %203 = sst [smem:[%s202]] 64
    %s204 = scalar_lea.smem [#allocation30], 4
    %205 = sst [smem:[%s204]] 128
    %s206 = scalar_lea.smem [#allocation30], 5
    %207 = sst [smem:[%s206]] 2
    %s208 = scalar_lea.smem [#allocation30], 6
    %209 = sst [smem:[%s208]] 256
    %s210 = scalar_lea.smem [#allocation30], 7
    %211 = sst [smem:[%s210]] 64
    %s212 = scalar_lea.smem [#allocation30], 8
    %213 = sst [smem:[%s212]] 4
    %215 = dma.general %s2, 32768, %s194, %s181, [#allocation29], [#allocation30], %s192, 0
    %s216 = scalar_lea.sflag [#allocation10], 2
    %s218 = sshll.u32 1, 14
    %s219 = sxor.u32 4294967295, %s218
    %s221 = sadd.s32 2, %s150
    %s223 = sshll.u32 7, 26
    %s224 = sxor.u32 4294967295, %s223
    %s225 = sand.u32 0, %s224
    %s226 = sshll.u32 %s221, 26
    %s227 = sor.u32 %s225, %s226
    %s228 = sshll.u32 [#allocation4], 4
    %s229 = int_to_ptr.vmem [resolvable:$true] %s228
    %232 = sst [smem:[#allocation32]] 256
    %s233 = scalar_lea.smem [#allocation32], 1
    %234 = sst [smem:[%s233]] 256
    %s235 = scalar_lea.smem [#allocation32], 2
    %236 = sst [smem:[%s235]] 2
    %s237 = scalar_lea.smem [#allocation32], 3
    %238 = sst [smem:[%s237]] 64
    %s239 = scalar_lea.smem [#allocation32], 4
    %240 = sst [smem:[%s239]] 128
    %s241 = scalar_lea.smem [#allocation32], 5
    %242 = sst [smem:[%s241]] 2
    %s243 = scalar_lea.smem [#allocation32], 6
    %244 = sst [smem:[%s243]] 128
    %s245 = scalar_lea.smem [#allocation32], 7
    %246 = sst [smem:[%s245]] 64
    %s247 = scalar_lea.smem [#allocation32], 8
    %248 = sst [smem:[%s247]] 4
    %250 = dma.general %s3, 8192, %s229, %s216, [#allocation31], [#allocation32], %s227, 0
    %s251 = scalar_lea.sflag [#allocation10], 3
    // Predicated region
    $region74: #{ae_forward.1} parent=1 // pred_check
      _
    $region75: #{ae_forward.1} parent=1 // pred_check_branch
      %253 = sbr.rel target = $region77
    $region76: #{ae_forward.1} parent=1 // pred_region
      %254 = sst [smem:[#allocation35]] [#allocation34]
      %255 = sst [smem:[#allocation36]] [#allocation33]
    $region77: #{ae_forward.1} parent=1 // pred_fallthru
      _
    %257 = shalt.err (0)
    %s259 = sshll.u32 [#allocation5], 4
    %s260 = int_to_ptr.vmem [resolvable:$true] %s259
    %262 = dma.hbm_to_vmem [thread:$0]  %s4, 2048, %s260, %s251
    %s263 = scalar_lea.sflag [#allocation10], 4
    %s265 = sshll.u32 1, 14
    %s266 = sxor.u32 4294967295, %s265
    %s268 = sadd.s32 2, %s150
    %s270 = sshll.u32 7, 26
    %s271 = sxor.u32 4294967295, %s270
    %s272 = sand.u32 0, %s271
    %s273 = sshll.u32 %s268, 26
    %s274 = sor.u32 %s272, %s273
    %s275 = sshll.u32 [#allocation6], 4
    %s276 = int_to_ptr.vmem [resolvable:$true] %s275
    %279 = sst [smem:[#allocation38]] 256
    %s280 = scalar_lea.smem [#allocation38], 1
    %281 = sst [smem:[%s280]] 256
    %s282 = scalar_lea.smem [#allocation38], 2
    %283 = sst [smem:[%s282]] 2
    %s284 = scalar_lea.smem [#allocation38], 3
    %285 = sst [smem:[%s284]] 64
    %s286 = scalar_lea.smem [#allocation38], 4
    %287 = sst [smem:[%s286]] 128
    %s288 = scalar_lea.smem [#allocation38], 5
    %289 = sst [smem:[%s288]] 2
    %s290 = scalar_lea.smem [#allocation38], 6
    %291 = sst [smem:[%s290]] 128
    %s292 = scalar_lea.smem [#allocation38], 7
    %293 = sst [smem:[%s292]] 64
    %s294 = scalar_lea.smem [#allocation38], 8
    %295 = sst [smem:[%s294]] 4
    %297 = dma.general %s5, 2048, %s276, %s263, [#allocation37], [#allocation38], %s274, 0
    %s298 = scalar_lea.sflag [#allocation10], 5
    %s300 = sshll.u32 1, 14
    %s301 = sxor.u32 4294967295, %s300
    %s303 = sadd.s32 2, %s150
    %s305 = sshll.u32 7, 26
    %s306 = sxor.u32 4294967295, %s305
    %s307 = sand.u32 0, %s306
    %s308 = sshll.u32 %s303, 26
    %s309 = sor.u32 %s307, %s308
    %s310 = sshll.u32 [#allocation7], 4
    %s311 = int_to_ptr.vmem [resolvable:$true] %s310
    %314 = sst [smem:[#allocation40]] 512
    %s315 = scalar_lea.smem [#allocation40], 1
    %316 = sst [smem:[%s315]] 512
    %s317 = scalar_lea.smem [#allocation40], 2
    %318 = sst [smem:[%s317]] 4
    %s319 = scalar_lea.smem [#allocation40], 3
    %320 = sst [smem:[%s319]] 64
    %s321 = scalar_lea.smem [#allocation40], 4
    %322 = sst [smem:[%s321]] 128
    %s323 = scalar_lea.smem [#allocation40], 5
    %324 = sst [smem:[%s323]] 2
    %s325 = scalar_lea.smem [#allocation40], 6
    %326 = sst [smem:[%s325]] 256
    %s327 = scalar_lea.smem [#allocation40], 7
    %328 = sst [smem:[%s327]] 64
    %s329 = scalar_lea.smem [#allocation40], 8
    %330 = sst [smem:[%s329]] 4
    %332 = dma.general %s6, 8192, %s311, %s298, [#allocation39], [#allocation40], %s309, 0
    %s333 = scalar_lea.sflag [#allocation10], 6
    %s335 = sshll.u32 1, 14
    %s336 = sxor.u32 4294967295, %s335
    %s338 = sadd.s32 2, %s150
    %s340 = sshll.u32 7, 26
    %s341 = sxor.u32 4294967295, %s340
    %s342 = sand.u32 0, %s341
    %s343 = sshll.u32 %s338, 26
    %s344 = sor.u32 %s342, %s343
    %s345 = sshll.u32 [#allocation8], 4
    %s346 = int_to_ptr.vmem [resolvable:$true] %s345
    %349 = sst [smem:[#allocation42]] 1024
    %s350 = scalar_lea.smem [#allocation42], 1
    %351 = sst [smem:[%s350]] 1024
    %s352 = scalar_lea.smem [#allocation42], 2
    %353 = sst [smem:[%s352]] 8
    %s354 = scalar_lea.smem [#allocation42], 3
    %355 = sst [smem:[%s354]] 64
    %s356 = scalar_lea.smem [#allocation42], 4
    %357 = sst [smem:[%s356]] 128
    %s358 = scalar_lea.smem [#allocation42], 5
    %359 = sst [smem:[%s358]] 2
    %s360 = scalar_lea.smem [#allocation42], 6
    %361 = sst [smem:[%s360]] 512
    %s362 = scalar_lea.smem [#allocation42], 7
    %363 = sst [smem:[%s362]] 64
    %s364 = scalar_lea.smem [#allocation42], 8
    %365 = sst [smem:[%s364]] 4
    %367 = dma.general %s7, 32768, %s346, %s333, [#allocation41], [#allocation42], %s344, 0
    %s368 = scalar_lea.sflag [#allocation10], 7
    %s370 = sshll.u32 1, 14
    %s371 = sxor.u32 4294967295, %s370
    %s373 = sadd.s32 2, %s150
    %s375 = sshll.u32 7, 26
    %s376 = sxor.u32 4294967295, %s375
    %s377 = sand.u32 0, %s376
    %s378 = sshll.u32 %s373, 26
    %s379 = sor.u32 %s377, %s378
    %s380 = sshll.u32 [#allocation9], 4
    %s381 = int_to_ptr.vmem [resolvable:$true] %s380
    %384 = sst [smem:[#allocation44]] 896
    %s385 = scalar_lea.smem [#allocation44], 1
    %386 = sst [smem:[%s385]] 896
    %s387 = scalar_lea.smem [#allocation44], 2
    %388 = sst [smem:[%s387]] 7
    %s389 = scalar_lea.smem [#allocation44], 3
    %390 = sst [smem:[%s389]] 64
    %s391 = scalar_lea.smem [#allocation44], 4
    %392 = sst [smem:[%s391]] 128
    %s393 = scalar_lea.smem [#allocation44], 5
    %394 = sst [smem:[%s393]] 2
    %s395 = scalar_lea.smem [#allocation44], 6
    %396 = sst [smem:[%s395]] 448
    %s397 = scalar_lea.smem [#allocation44], 7
    %398 = sst [smem:[%s397]] 64
    %s399 = scalar_lea.smem [#allocation44], 8
    %400 = sst [smem:[%s399]] 4
    %402 = dma.general %s8, 57344, %s381, %s368, [#allocation43], [#allocation44], %s379, 0
    %v403 = vld [vmem:[#allocation11] sm:$0xff]
    %v404 = vld [vmem:[#allocation11 + $0x8] sm:$0xff]
    %v405 = vld [vmem:[#allocation11 + $0x10] sm:$0xff]
    %v406 = vld [vmem:[#allocation11 + $0x18] sm:$0xff]
    %v407 = vld [vmem:[#allocation11 + $0x20] sm:$0xff]
    %v408 = vld [vmem:[#allocation11 + $0x28] sm:$0xff]
    %v409 = vld [vmem:[#allocation11 + $0x30] sm:$0xff]
    %v410 = vpack.c.bf16 %v403, %v403
    %v411 = vpack.c.bf16 %v404, %v404
    %v412 = vpack.c.bf16 %v405, %v405
    %v413 = vpack.c.bf16 %v406, %v406
    %v414 = vpack.c.bf16 %v407, %v407
    %v415 = vpack.c.bf16 %v408, %v408
    %v416 = vpack.c.bf16 %v409, %v409
    %s417 = smul.u32 4, 98
    %s418 = smul.u32 %s417, 8
    %s419 = sshll.u32 %s418, 4
    %420 = dma.done [#allocation10], %s419
    %v421 = vld [vmem:[#allocation2] sm:$0xff]
    %v422 = vld [vmem:[#allocation2 + $0x8] sm:$0xff]
    %v423 = vld [vmem:[#allocation2 + $0x10] sm:$0xff]
    %v424 = vld [vmem:[#allocation2 + $0x18] sm:$0xff]
    %v425 = vld [vmem:[#allocation2 + $0x20] sm:$0xff]
    %v426 = vld [vmem:[#allocation2 + $0x28] sm:$0xff]
    %v427 = vld [vmem:[#allocation2 + $0x30] sm:$0xff]
    %v428 = vld [vmem:[#allocation2 + $0x38] sm:$0xff]
    %v429 = vld [vmem:[#allocation2 + $0x40] sm:$0xff]
    %v430 = vld [vmem:[#allocation2 + $0x48] sm:$0xff]
    %v431 = vld [vmem:[#allocation2 + $0x50] sm:$0xff]
    %v432 = vld [vmem:[#allocation2 + $0x58] sm:$0xff]
    %v433 = vld [vmem:[#allocation2 + $0x60] sm:$0xff]
    %v434 = vld [vmem:[#allocation2 + $0x68] sm:$0xff]
    %v435 = vld [vmem:[#allocation2 + $0x70] sm:$0xff]
    %v436 = vld [vmem:[#allocation2 + $0x78] sm:$0xff]
    %v437 = vld [vmem:[#allocation2 + $0x80] sm:$0xff]
    %v438 = vld [vmem:[#allocation2 + $0x88] sm:$0xff]
    %v439 = vld [vmem:[#allocation2 + $0x90] sm:$0xff]
    %v440 = vld [vmem:[#allocation2 + $0x98] sm:$0xff]
    %v441 = vld [vmem:[#allocation2 + $0xa0] sm:$0xff]
    %v442 = vld [vmem:[#allocation2 + $0xa8] sm:$0xff]
    %v443 = vld [vmem:[#allocation2 + $0xb0] sm:$0xff]
    %v444 = vld [vmem:[#allocation2 + $0xb8] sm:$0xff]
    %v445 = vld [vmem:[#allocation2 + $0xc0] sm:$0xff]
    %v446 = vld [vmem:[#allocation2 + $0xc8] sm:$0xff]
    %v447 = vld [vmem:[#allocation2 + $0xd0] sm:$0xff]
    %v448 = vld [vmem:[#allocation2 + $0xd8] sm:$0xff]
    %v449 = vld [vmem:[#allocation2 + $0xe0] sm:$0xff]
    %v450 = vld [vmem:[#allocation2 + $0xe8] sm:$0xff]
    %v451 = vld [vmem:[#allocation2 + $0xf0] sm:$0xff]
    %v452 = vld [vmem:[#allocation2 + $0xf8] sm:$0xff]
    %v453 = vld [vmem:[#allocation2 + $0x100] sm:$0xff]
    %v454 = vld [vmem:[#allocation2 + $0x108] sm:$0xff]
    %v455 = vld [vmem:[#allocation2 + $0x110] sm:$0xff]
    %v456 = vld [vmem:[#allocation2 + $0x118] sm:$0xff]
    %v457 = vld [vmem:[#allocation2 + $0x120] sm:$0xff]
    %v458 = vld [vmem:[#allocation2 + $0x128] sm:$0xff]
    %v459 = vld [vmem:[#allocation2 + $0x130] sm:$0xff]
    %v460 = vld [vmem:[#allocation2 + $0x138] sm:$0xff]
    %v461 = vld [vmem:[#allocation2 + $0x140] sm:$0xff]
    %v462 = vld [vmem:[#allocation2 + $0x148] sm:$0xff]
    %v463 = vld [vmem:[#allocation2 + $0x150] sm:$0xff]
    %v464 = vld [vmem:[#allocation2 + $0x158] sm:$0xff]
    %v465 = vld [vmem:[#allocation2 + $0x160] sm:$0xff]
    %v466 = vld [vmem:[#allocation2 + $0x168] sm:$0xff]
    %v467 = vld [vmem:[#allocation2 + $0x170] sm:$0xff]
    %v468 = vld [vmem:[#allocation2 + $0x178] sm:$0xff]
    %v469 = vld [vmem:[#allocation2 + $0x180] sm:$0xff]
    %v470 = vld [vmem:[#allocation2 + $0x188] sm:$0xff]
    %v471 = vld [vmem:[#allocation2 + $0x190] sm:$0xff]
    %v472 = vld [vmem:[#allocation2 + $0x198] sm:$0xff]
    %v473 = vld [vmem:[#allocation2 + $0x1a0] sm:$0xff]
    %v474 = vld [vmem:[#allocation2 + $0x1a8] sm:$0xff]
    %v475 = vld [vmem:[#allocation2 + $0x1b0] sm:$0xff]
    %v476 = vld [vmem:[#allocation2 + $0x1b8] sm:$0xff]
    %v477 = vld [vmem:[#allocation2 + $0x1c0] sm:$0xff]
    %v478 = vld [vmem:[#allocation2 + $0x1c8] sm:$0xff]
    %v479 = vld [vmem:[#allocation2 + $0x1d0] sm:$0xff]
    %v480 = vld [vmem:[#allocation2 + $0x1d8] sm:$0xff]
    %v481 = vld [vmem:[#allocation2 + $0x1e0] sm:$0xff]
    %v482 = vld [vmem:[#allocation2 + $0x1e8] sm:$0xff]
    %v483 = vld [vmem:[#allocation2 + $0x1f0] sm:$0xff]
    %v484 = vld [vmem:[#allocation2 + $0x1f8] sm:$0xff]
    %v485 = vld [vmem:[#allocation2 + $0x200] sm:$0xff]
    %v486 = vld [vmem:[#allocation2 + $0x208] sm:$0xff]
    %v487 = vld [vmem:[#allocation2 + $0x210] sm:$0xff]
    %v488 = vld [vmem:[#allocation2 + $0x218] sm:$0xff]
    %v489 = vld [vmem:[#allocation2 + $0x220] sm:$0xff]
    %v490 = vld [vmem:[#allocation2 + $0x228] sm:$0xff]
    %v491 = vld [vmem:[#allocation2 + $0x230] sm:$0xff]
    %v492 = vld [vmem:[#allocation2 + $0x238] sm:$0xff]
    %v493 = vld [vmem:[#allocation2 + $0x240] sm:$0xff]
    %v494 = vld [vmem:[#allocation2 + $0x248] sm:$0xff]
    %v495 = vld [vmem:[#allocation2 + $0x250] sm:$0xff]
    %v496 = vld [vmem:[#allocation2 + $0x258] sm:$0xff]
    %v497 = vld [vmem:[#allocation2 + $0x260] sm:$0xff]
    %v498 = vld [vmem:[#allocation2 + $0x268] sm:$0xff]
    %v499 = vld [vmem:[#allocation2 + $0x270] sm:$0xff]
    %v500 = vld [vmem:[#allocation2 + $0x278] sm:$0xff]
    %v501 = vld [vmem:[#allocation2 + $0x280] sm:$0xff]
    %v502 = vld [vmem:[#allocation2 + $0x288] sm:$0xff]
    %v503 = vld [vmem:[#allocation2 + $0x290] sm:$0xff]
    %v504 = vld [vmem:[#allocation2 + $0x298] sm:$0xff]
    %v505 = vld [vmem:[#allocation2 + $0x2a0] sm:$0xff]
    %v506 = vld [vmem:[#allocation2 + $0x2a8] sm:$0xff]
    %v507 = vld [vmem:[#allocation2 + $0x2b0] sm:$0xff]
    %v508 = vld [vmem:[#allocation2 + $0x2b8] sm:$0xff]
    %v509 = vld [vmem:[#allocation2 + $0x2c0] sm:$0xff]
    %v510 = vld [vmem:[#allocation2 + $0x2c8] sm:$0xff]
    %v511 = vld [vmem:[#allocation2 + $0x2d0] sm:$0xff]
    %v512 = vld [vmem:[#allocation2 + $0x2d8] sm:$0xff]
    %v513 = vld [vmem:[#allocation2 + $0x2e0] sm:$0xff]
    %v514 = vld [vmem:[#allocation2 + $0x2e8] sm:$0xff]
    %v515 = vld [vmem:[#allocation2 + $0x2f0] sm:$0xff]
    %v516 = vld [vmem:[#allocation2 + $0x2f8] sm:$0xff]
    %v517 = vld [vmem:[#allocation2 + $0x300] sm:$0xff]
    %v518 = vld [vmem:[#allocation2 + $0x308] sm:$0xff]
    %v519 = vld [vmem:[#allocation2 + $0x310] sm:$0xff]
    %v520 = vld [vmem:[#allocation2 + $0x318] sm:$0xff]
    %v521 = vld [vmem:[#allocation2 + $0x320] sm:$0xff]
    %v522 = vld [vmem:[#allocation2 + $0x328] sm:$0xff]
    %v523 = vld [vmem:[#allocation2 + $0x330] sm:$0xff]
    %v524 = vld [vmem:[#allocation2 + $0x338] sm:$0xff]
    %v525 = vld [vmem:[#allocation2 + $0x340] sm:$0xff]
    %v526 = vld [vmem:[#allocation2 + $0x348] sm:$0xff]
    %v527 = vld [vmem:[#allocation2 + $0x350] sm:$0xff]
    %v528 = vld [vmem:[#allocation2 + $0x358] sm:$0xff]
    %v529 = vld [vmem:[#allocation2 + $0x360] sm:$0xff]
    %v530 = vld [vmem:[#allocation2 + $0x368] sm:$0xff]
    %v531 = vld [vmem:[#allocation2 + $0x370] sm:$0xff]
    %v532 = vld [vmem:[#allocation2 + $0x378] sm:$0xff]
    %v533 = vld [vmem:[#allocation2 + $0x380] sm:$0xff]
    %v534 = vld [vmem:[#allocation2 + $0x388] sm:$0xff]
    %v535 = vld [vmem:[#allocation2 + $0x390] sm:$0xff]
    %v536 = vld [vmem:[#allocation2 + $0x398] sm:$0xff]
    %v537 = vld [vmem:[#allocation2 + $0x3a0] sm:$0xff]
    %v538 = vld [vmem:[#allocation2 + $0x3a8] sm:$0xff]
    %v539 = vld [vmem:[#allocation2 + $0x3b0] sm:$0xff]
    %v540 = vld [vmem:[#allocation2 + $0x3b8] sm:$0xff]
    %v541 = vld [vmem:[#allocation2 + $0x3c0] sm:$0xff]
    %v542 = vld [vmem:[#allocation2 + $0x3c8] sm:$0xff]
    %v543 = vld [vmem:[#allocation2 + $0x3d0] sm:$0xff]
    %v544 = vld [vmem:[#allocation2 + $0x3d8] sm:$0xff]
    %v545 = vld [vmem:[#allocation2 + $0x3e0] sm:$0xff]
    %v546 = vld [vmem:[#allocation2 + $0x3e8] sm:$0xff]
    %v547 = vld [vmem:[#allocation2 + $0x3f0] sm:$0xff]
    %v548 = vld [vmem:[#allocation2 + $0x3f8] sm:$0xff]
    %v549 = vld [vmem:[#allocation2 + $0x400] sm:$0xff]
    %v550 = vld [vmem:[#allocation2 + $0x408] sm:$0xff]
    %v551 = vld [vmem:[#allocation2 + $0x410] sm:$0xff]
    %v552 = vld [vmem:[#allocation2 + $0x418] sm:$0xff]
    %v553 = vld [vmem:[#allocation2 + $0x420] sm:$0xff]
    %v554 = vld [vmem:[#allocation2 + $0x428] sm:$0xff]
    %v555 = vld [vmem:[#allocation2 + $0x430] sm:$0xff]
    %v556 = vld [vmem:[#allocation2 + $0x438] sm:$0xff]
    %v557 = vld [vmem:[#allocation2 + $0x440] sm:$0xff]
    %v558 = vld [vmem:[#allocation2 + $0x448] sm:$0xff]
    %v559 = vld [vmem:[#allocation2 + $0x450] sm:$0xff]
    %v560 = vld [vmem:[#allocation2 + $0x458] sm:$0xff]
    %v561 = vld [vmem:[#allocation2 + $0x460] sm:$0xff]
    %v562 = vld [vmem:[#allocation2 + $0x468] sm:$0xff]
    %v563 = vld [vmem:[#allocation2 + $0x470] sm:$0xff]
    %v564 = vld [vmem:[#allocation2 + $0x478] sm:$0xff]
    %v565 = vld [vmem:[#allocation2 + $0x480] sm:$0xff]
    %v566 = vld [vmem:[#allocation2 + $0x488] sm:$0xff]
    %v567 = vld [vmem:[#allocation2 + $0x490] sm:$0xff]
    %v568 = vld [vmem:[#allocation2 + $0x498] sm:$0xff]
    %v569 = vld [vmem:[#allocation2 + $0x4a0] sm:$0xff]
    %v570 = vld [vmem:[#allocation2 + $0x4a8] sm:$0xff]
    %v571 = vld [vmem:[#allocation2 + $0x4b0] sm:$0xff]
    %v572 = vld [vmem:[#allocation2 + $0x4b8] sm:$0xff]
    %v573 = vld [vmem:[#allocation2 + $0x4c0] sm:$0xff]
    %v574 = vld [vmem:[#allocation2 + $0x4c8] sm:$0xff]
    %v575 = vld [vmem:[#allocation2 + $0x4d0] sm:$0xff]
    %v576 = vld [vmem:[#allocation2 + $0x4d8] sm:$0xff]
    %v577 = vld [vmem:[#allocation2 + $0x4e0] sm:$0xff]
    %v578 = vld [vmem:[#allocation2 + $0x4e8] sm:$0xff]
    %v579 = vld [vmem:[#allocation2 + $0x4f0] sm:$0xff]
    %v580 = vld [vmem:[#allocation2 + $0x4f8] sm:$0xff]
    %v581 = vld [vmem:[#allocation2 + $0x500] sm:$0xff]
    %v582 = vld [vmem:[#allocation2 + $0x508] sm:$0xff]
    %v583 = vld [vmem:[#allocation2 + $0x510] sm:$0xff]
    %v584 = vld [vmem:[#allocation2 + $0x518] sm:$0xff]
    %v585 = vld [vmem:[#allocation2 + $0x520] sm:$0xff]
    %v586 = vld [vmem:[#allocation2 + $0x528] sm:$0xff]
    %v587 = vld [vmem:[#allocation2 + $0x530] sm:$0xff]
    %v588 = vld [vmem:[#allocation2 + $0x538] sm:$0xff]
    %v589 = vld [vmem:[#allocation2 + $0x540] sm:$0xff]
    %v590 = vld [vmem:[#allocation2 + $0x548] sm:$0xff]
    %v591 = vld [vmem:[#allocation2 + $0x550] sm:$0xff]
    %v592 = vld [vmem:[#allocation2 + $0x558] sm:$0xff]
    %v593 = vld [vmem:[#allocation2 + $0x560] sm:$0xff]
    %v594 = vld [vmem:[#allocation2 + $0x568] sm:$0xff]
    %v595 = vld [vmem:[#allocation2 + $0x570] sm:$0xff]
    %v596 = vld [vmem:[#allocation2 + $0x578] sm:$0xff]
    %v597 = vld [vmem:[#allocation2 + $0x580] sm:$0xff]
    %v598 = vld [vmem:[#allocation2 + $0x588] sm:$0xff]
    %v599 = vld [vmem:[#allocation2 + $0x590] sm:$0xff]
    %v600 = vld [vmem:[#allocation2 + $0x598] sm:$0xff]
    %v601 = vld [vmem:[#allocation2 + $0x5a0] sm:$0xff]
    %v602 = vld [vmem:[#allocation2 + $0x5a8] sm:$0xff]
    %v603 = vld [vmem:[#allocation2 + $0x5b0] sm:$0xff]
    %v604 = vld [vmem:[#allocation2 + $0x5b8] sm:$0xff]
    %v605 = vld [vmem:[#allocation2 + $0x5c0] sm:$0xff]
    %v606 = vld [vmem:[#allocation2 + $0x5c8] sm:$0xff]
    %v607 = vld [vmem:[#allocation2 + $0x5d0] sm:$0xff]
    %v608 = vld [vmem:[#allocation2 + $0x5d8] sm:$0xff]
    %v609 = vld [vmem:[#allocation2 + $0x5e0] sm:$0xff]
    %v610 = vld [vmem:[#allocation2 + $0x5e8] sm:$0xff]
    %v611 = vld [vmem:[#allocation2 + $0x5f0] sm:$0xff]
    %v612 = vld [vmem:[#allocation2 + $0x5f8] sm:$0xff]
    %v613 = vld [vmem:[#allocation2 + $0x600] sm:$0xff]
    %v614 = vld [vmem:[#allocation2 + $0x608] sm:$0xff]
    %v615 = vld [vmem:[#allocation2 + $0x610] sm:$0xff]
    %v616 = vld [vmem:[#allocation2 + $0x618] sm:$0xff]
    %v617 = vld [vmem:[#allocation2 + $0x620] sm:$0xff]
    %v618 = vld [vmem:[#allocation2 + $0x628] sm:$0xff]
    %v619 = vld [vmem:[#allocation2 + $0x630] sm:$0xff]
    %v620 = vld [vmem:[#allocation2 + $0x638] sm:$0xff]
    %v621 = vld [vmem:[#allocation2 + $0x640] sm:$0xff]
    %v622 = vld [vmem:[#allocation2 + $0x648] sm:$0xff]
    %v623 = vld [vmem:[#allocation2 + $0x650] sm:$0xff]
    %v624 = vld [vmem:[#allocation2 + $0x658] sm:$0xff]
    %v625 = vld [vmem:[#allocation2 + $0x660] sm:$0xff]
    %v626 = vld [vmem:[#allocation2 + $0x668] sm:$0xff]
    %v627 = vld [vmem:[#allocation2 + $0x670] sm:$0xff]
    %v628 = vld [vmem:[#allocation2 + $0x678] sm:$0xff]
    %v629 = vld [vmem:[#allocation2 + $0x680] sm:$0xff]
    %v630 = vld [vmem:[#allocation2 + $0x688] sm:$0xff]
    %v631 = vld [vmem:[#allocation2 + $0x690] sm:$0xff]
    %v632 = vld [vmem:[#allocation2 + $0x698] sm:$0xff]
    %v633 = vld [vmem:[#allocation2 + $0x6a0] sm:$0xff]
    %v634 = vld [vmem:[#allocation2 + $0x6a8] sm:$0xff]
    %v635 = vld [vmem:[#allocation2 + $0x6b0] sm:$0xff]
    %v636 = vld [vmem:[#allocation2 + $0x6b8] sm:$0xff]
    %v637 = vld [vmem:[#allocation2 + $0x6c0] sm:$0xff]
    %v638 = vld [vmem:[#allocation2 + $0x6c8] sm:$0xff]
    %v639 = vld [vmem:[#allocation2 + $0x6d0] sm:$0xff]
    %v640 = vld [vmem:[#allocation2 + $0x6d8] sm:$0xff]
    %v641 = vld [vmem:[#allocation2 + $0x6e0] sm:$0xff]
    %v642 = vld [vmem:[#allocation2 + $0x6e8] sm:$0xff]
    %v643 = vld [vmem:[#allocation2 + $0x6f0] sm:$0xff]
    %v644 = vld [vmem:[#allocation2 + $0x6f8] sm:$0xff]
    %v645 = vld [vmem:[#allocation2 + $0x700] sm:$0xff]
    %v646 = vld [vmem:[#allocation2 + $0x708] sm:$0xff]
    %v647 = vld [vmem:[#allocation2 + $0x710] sm:$0xff]
    %v648 = vld [vmem:[#allocation2 + $0x718] sm:$0xff]
    %v649 = vld [vmem:[#allocation2 + $0x720] sm:$0xff]
    %v650 = vld [vmem:[#allocation2 + $0x728] sm:$0xff]
    %v651 = vld [vmem:[#allocation2 + $0x730] sm:$0xff]
    %v652 = vld [vmem:[#allocation2 + $0x738] sm:$0xff]
    %v653 = vld [vmem:[#allocation2 + $0x740] sm:$0xff]
    %v654 = vld [vmem:[#allocation2 + $0x748] sm:$0xff]
    %v655 = vld [vmem:[#allocation2 + $0x750] sm:$0xff]
    %v656 = vld [vmem:[#allocation2 + $0x758] sm:$0xff]
    %v657 = vld [vmem:[#allocation2 + $0x760] sm:$0xff]
    %v658 = vld [vmem:[#allocation2 + $0x768] sm:$0xff]
    %v659 = vld [vmem:[#allocation2 + $0x770] sm:$0xff]
    %v660 = vld [vmem:[#allocation2 + $0x778] sm:$0xff]
    %v661 = vld [vmem:[#allocation2 + $0x780] sm:$0xff]
    %v662 = vld [vmem:[#allocation2 + $0x788] sm:$0xff]
    %v663 = vld [vmem:[#allocation2 + $0x790] sm:$0xff]
    %v664 = vld [vmem:[#allocation2 + $0x798] sm:$0xff]
    %v665 = vld [vmem:[#allocation2 + $0x7a0] sm:$0xff]
    %v666 = vld [vmem:[#allocation2 + $0x7a8] sm:$0xff]
    %v667 = vld [vmem:[#allocation2 + $0x7b0] sm:$0xff]
    %v668 = vld [vmem:[#allocation2 + $0x7b8] sm:$0xff]
    %v669 = vld [vmem:[#allocation2 + $0x7c0] sm:$0xff]
    %v670 = vld [vmem:[#allocation2 + $0x7c8] sm:$0xff]
    %v671 = vld [vmem:[#allocation2 + $0x7d0] sm:$0xff]
    %v672 = vld [vmem:[#allocation2 + $0x7d8] sm:$0xff]
    %v673 = vld [vmem:[#allocation2 + $0x7e0] sm:$0xff]
    %v674 = vld [vmem:[#allocation2 + $0x7e8] sm:$0xff]
    %v675 = vld [vmem:[#allocation2 + $0x7f0] sm:$0xff]
    %v676 = vld [vmem:[#allocation2 + $0x7f8] sm:$0xff]
    %v677 = vld [vmem:[#allocation2 + $0x800] sm:$0xff]
    %v678 = vld [vmem:[#allocation2 + $0x808] sm:$0xff]
    %v679 = vld [vmem:[#allocation2 + $0x810] sm:$0xff]
    %v680 = vld [vmem:[#allocation2 + $0x818] sm:$0xff]
    %v681 = vld [vmem:[#allocation2 + $0x820] sm:$0xff]
    %v682 = vld [vmem:[#allocation2 + $0x828] sm:$0xff]
    %v683 = vld [vmem:[#allocation2 + $0x830] sm:$0xff]
    %v684 = vld [vmem:[#allocation2 + $0x838] sm:$0xff]
    %v685 = vld [vmem:[#allocation2 + $0x840] sm:$0xff]
    %v686 = vld [vmem:[#allocation2 + $0x848] sm:$0xff]
    %v687 = vld [vmem:[#allocation2 + $0x850] sm:$0xff]
    %v688 = vld [vmem:[#allocation2 + $0x858] sm:$0xff]
    %v689 = vld [vmem:[#allocation2 + $0x860] sm:$0xff]
    %v690 = vld [vmem:[#allocation2 + $0x868] sm:$0xff]
    %v691 = vld [vmem:[#allocation2 + $0x870] sm:$0xff]
    %v692 = vld [vmem:[#allocation2 + $0x878] sm:$0xff]
    %v693 = vld [vmem:[#allocation2 + $0x880] sm:$0xff]
    %v694 = vld [vmem:[#allocation2 + $0x888] sm:$0xff]
    %v695 = vld [vmem:[#allocation2 + $0x890] sm:$0xff]
    %v696 = vld [vmem:[#allocation2 + $0x898] sm:$0xff]
    %v697 = vld [vmem:[#allocation2 + $0x8a0] sm:$0xff]
    %v698 = vld [vmem:[#allocation2 + $0x8a8] sm:$0xff]
    %v699 = vld [vmem:[#allocation2 + $0x8b0] sm:$0xff]
    %v700 = vld [vmem:[#allocation2 + $0x8b8] sm:$0xff]
    %v701 = vld [vmem:[#allocation2 + $0x8c0] sm:$0xff]
    %v702 = vld [vmem:[#allocation2 + $0x8c8] sm:$0xff]
    %v703 = vld [vmem:[#allocation2 + $0x8d0] sm:$0xff]
    %v704 = vld [vmem:[#allocation2 + $0x8d8] sm:$0xff]
    %v705 = vld [vmem:[#allocation2 + $0x8e0] sm:$0xff]
    %v706 = vld [vmem:[#allocation2 + $0x8e8] sm:$0xff]
    %v707 = vld [vmem:[#allocation2 + $0x8f0] sm:$0xff]
    %v708 = vld [vmem:[#allocation2 + $0x8f8] sm:$0xff]
    %v709 = vld [vmem:[#allocation2 + $0x900] sm:$0xff]
    %v710 = vld [vmem:[#allocation2 + $0x908] sm:$0xff]
    %v711 = vld [vmem:[#allocation2 + $0x910] sm:$0xff]
    %v712 = vld [vmem:[#allocation2 + $0x918] sm:$0xff]
    %v713 = vld [vmem:[#allocation2 + $0x920] sm:$0xff]
    %v714 = vld [vmem:[#allocation2 + $0x928] sm:$0xff]
    %v715 = vld [vmem:[#allocation2 + $0x930] sm:$0xff]
    %v716 = vld [vmem:[#allocation2 + $0x938] sm:$0xff]
    %v717 = vld [vmem:[#allocation2 + $0x940] sm:$0xff]
    %v718 = vld [vmem:[#allocation2 + $0x948] sm:$0xff]
    %v719 = vld [vmem:[#allocation2 + $0x950] sm:$0xff]
    %v720 = vld [vmem:[#allocation2 + $0x958] sm:$0xff]
    %v721 = vld [vmem:[#allocation2 + $0x960] sm:$0xff]
    %v722 = vld [vmem:[#allocation2 + $0x968] sm:$0xff]
    %v723 = vld [vmem:[#allocation2 + $0x970] sm:$0xff]
    %v724 = vld [vmem:[#allocation2 + $0x978] sm:$0xff]
    %v725 = vld [vmem:[#allocation2 + $0x980] sm:$0xff]
    %v726 = vld [vmem:[#allocation2 + $0x988] sm:$0xff]
    %v727 = vld [vmem:[#allocation2 + $0x990] sm:$0xff]
    %v728 = vld [vmem:[#allocation2 + $0x998] sm:$0xff]
    %v729 = vld [vmem:[#allocation2 + $0x9a0] sm:$0xff]
    %v730 = vld [vmem:[#allocation2 + $0x9a8] sm:$0xff]
    %v731 = vld [vmem:[#allocation2 + $0x9b0] sm:$0xff]
    %v732 = vld [vmem:[#allocation2 + $0x9b8] sm:$0xff]
    %v733 = vld [vmem:[#allocation2 + $0x9c0] sm:$0xff]
    %v734 = vld [vmem:[#allocation2 + $0x9c8] sm:$0xff]
    %v735 = vld [vmem:[#allocation2 + $0x9d0] sm:$0xff]
    %v736 = vld [vmem:[#allocation2 + $0x9d8] sm:$0xff]
    %v737 = vld [vmem:[#allocation2 + $0x9e0] sm:$0xff]
    %v738 = vld [vmem:[#allocation2 + $0x9e8] sm:$0xff]
    %v739 = vld [vmem:[#allocation2 + $0x9f0] sm:$0xff]
    %v740 = vld [vmem:[#allocation2 + $0x9f8] sm:$0xff]
    %v741 = vld [vmem:[#allocation2 + $0xa00] sm:$0xff]
    %v742 = vld [vmem:[#allocation2 + $0xa08] sm:$0xff]
    %v743 = vld [vmem:[#allocation2 + $0xa10] sm:$0xff]
    %v744 = vld [vmem:[#allocation2 + $0xa18] sm:$0xff]
    %v745 = vld [vmem:[#allocation2 + $0xa20] sm:$0xff]
    %v746 = vld [vmem:[#allocation2 + $0xa28] sm:$0xff]
    %v747 = vld [vmem:[#allocation2 + $0xa30] sm:$0xff]
    %v748 = vld [vmem:[#allocation2 + $0xa38] sm:$0xff]
    %v749 = vld [vmem:[#allocation2 + $0xa40] sm:$0xff]
    %v750 = vld [vmem:[#allocation2 + $0xa48] sm:$0xff]
    %v751 = vld [vmem:[#allocation2 + $0xa50] sm:$0xff]
    %v752 = vld [vmem:[#allocation2 + $0xa58] sm:$0xff]
    %v753 = vld [vmem:[#allocation2 + $0xa60] sm:$0xff]
    %v754 = vld [vmem:[#allocation2 + $0xa68] sm:$0xff]
    %v755 = vld [vmem:[#allocation2 + $0xa70] sm:$0xff]
    %v756 = vld [vmem:[#allocation2 + $0xa78] sm:$0xff]
    %v757 = vld [vmem:[#allocation2 + $0xa80] sm:$0xff]
    %v758 = vld [vmem:[#allocation2 + $0xa88] sm:$0xff]
    %v759 = vld [vmem:[#allocation2 + $0xa90] sm:$0xff]
    %v760 = vld [vmem:[#allocation2 + $0xa98] sm:$0xff]
    %v761 = vld [vmem:[#allocation2 + $0xaa0] sm:$0xff]
    %v762 = vld [vmem:[#allocation2 + $0xaa8] sm:$0xff]
    %v763 = vld [vmem:[#allocation2 + $0xab0] sm:$0xff]
    %v764 = vld [vmem:[#allocation2 + $0xab8] sm:$0xff]
    %v765 = vld [vmem:[#allocation2 + $0xac0] sm:$0xff]
    %v766 = vld [vmem:[#allocation2 + $0xac8] sm:$0xff]
    %v767 = vld [vmem:[#allocation2 + $0xad0] sm:$0xff]
    %v768 = vld [vmem:[#allocation2 + $0xad8] sm:$0xff]
    %v769 = vld [vmem:[#allocation2 + $0xae0] sm:$0xff]
    %v770 = vld [vmem:[#allocation2 + $0xae8] sm:$0xff]
    %v771 = vld [vmem:[#allocation2 + $0xaf0] sm:$0xff]
    %v772 = vld [vmem:[#allocation2 + $0xaf8] sm:$0xff]
    %v773 = vld [vmem:[#allocation2 + $0xb00] sm:$0xff]
    %v774 = vld [vmem:[#allocation2 + $0xb08] sm:$0xff]
    %v775 = vld [vmem:[#allocation2 + $0xb10] sm:$0xff]
    %v776 = vld [vmem:[#allocation2 + $0xb18] sm:$0xff]
    %v777 = vld [vmem:[#allocation2 + $0xb20] sm:$0xff]
    %v778 = vld [vmem:[#allocation2 + $0xb28] sm:$0xff]
    %v779 = vld [vmem:[#allocation2 + $0xb30] sm:$0xff]
    %v780 = vld [vmem:[#allocation2 + $0xb38] sm:$0xff]
    %v781 = vld [vmem:[#allocation2 + $0xb40] sm:$0xff]
    %v782 = vld [vmem:[#allocation2 + $0xb48] sm:$0xff]
    %v783 = vld [vmem:[#allocation2 + $0xb50] sm:$0xff]
    %v784 = vld [vmem:[#allocation2 + $0xb58] sm:$0xff]
    %v785 = vld [vmem:[#allocation2 + $0xb60] sm:$0xff]
    %v786 = vld [vmem:[#allocation2 + $0xb68] sm:$0xff]
    %v787 = vld [vmem:[#allocation2 + $0xb70] sm:$0xff]
    %v788 = vld [vmem:[#allocation2 + $0xb78] sm:$0xff]
    %v789 = vld [vmem:[#allocation2 + $0xb80] sm:$0xff]
    %v790 = vld [vmem:[#allocation2 + $0xb88] sm:$0xff]
    %v791 = vld [vmem:[#allocation2 + $0xb90] sm:$0xff]
    %v792 = vld [vmem:[#allocation2 + $0xb98] sm:$0xff]
    %v793 = vld [vmem:[#allocation2 + $0xba0] sm:$0xff]
    %v794 = vld [vmem:[#allocation2 + $0xba8] sm:$0xff]
    %v795 = vld [vmem:[#allocation2 + $0xbb0] sm:$0xff]
    %v796 = vld [vmem:[#allocation2 + $0xbb8] sm:$0xff]
    %v797 = vld [vmem:[#allocation2 + $0xbc0] sm:$0xff]
    %v798 = vld [vmem:[#allocation2 + $0xbc8] sm:$0xff]
    %v799 = vld [vmem:[#allocation2 + $0xbd0] sm:$0xff]
    %v800 = vld [vmem:[#allocation2 + $0xbd8] sm:$0xff]
    %v801 = vld [vmem:[#allocation2 + $0xbe0] sm:$0xff]
    %v802 = vld [vmem:[#allocation2 + $0xbe8] sm:$0xff]
    %v803 = vld [vmem:[#allocation2 + $0xbf0] sm:$0xff]
    %v804 = vld [vmem:[#allocation2 + $0xbf8] sm:$0xff]
    %v805 = vld [vmem:[#allocation2 + $0xc00] sm:$0xff]
    %v806 = vld [vmem:[#allocation2 + $0xc08] sm:$0xff]
    %v807 = vld [vmem:[#allocation2 + $0xc10] sm:$0xff]
    %v808 = vld [vmem:[#allocation2 + $0xc18] sm:$0xff]
    %v809 = vld [vmem:[#allocation2 + $0xc20] sm:$0xff]
    %v810 = vld [vmem:[#allocation2 + $0xc28] sm:$0xff]
    %v811 = vld [vmem:[#allocation2 + $0xc30] sm:$0xff]
    %v812 = vld [vmem:[#allocation2 + $0xc38] sm:$0xff]
    %v813 = vld [vmem:[#allocation14] sm:$0xff]
    %v815 = vlaneseq
    %v816 = vshrl.u32 %v815, 7
    %v817 = vsub.s32 0, %v816
    %v818 = vrot.slane %v813, %v817
    %v819 = vlaneseq
    %v820 = vshrl.u32 %v819, 7
    %v821 = vsub.s32 1, %v820
    %v822 = vrot.slane %v813, %v821
    %v823 = vlaneseq
    %v824 = vshrl.u32 %v823, 7
    %v825 = vsub.s32 2, %v824
    %v826 = vrot.slane %v813, %v825
    %v827 = vlaneseq
    %v828 = vshrl.u32 %v827, 7
    %v829 = vsub.s32 3, %v828
    %v830 = vrot.slane %v813, %v829
    %v831 = vlaneseq
    %v832 = vshrl.u32 %v831, 7
    %v833 = vsub.s32 4, %v832
    %v834 = vrot.slane %v813, %v833
    %v835 = vlaneseq
    %v836 = vshrl.u32 %v835, 7
    %v837 = vsub.s32 5, %v836
    %v838 = vrot.slane %v813, %v837
    %v839 = vlaneseq
    %v840 = vshrl.u32 %v839, 7
    %v841 = vsub.s32 6, %v840
    %v842 = vrot.slane %v813, %v841
    %v843 = vlaneseq
    %v844 = vshrl.u32 %v843, 7
    %v845 = vsub.s32 7, %v844
    %v846 = vrot.slane %v813, %v845
    %vm855 = vcmask 130048
    %v857 = vsel %vm855, %v416, 0
    %859 = vmatprep.subr.bf16.mxu0 %v422
    %860 = vmatpush1.bf16.msra.mxu0 %v421
    %861 = vmatprep.subr.bf16.mxu0 %v430
    %862 = vmatpush1.bf16.msra.mxu0 %v429
    %863 = vmatprep.subr.bf16.mxu0 %v438
    %864 = vmatpush1.bf16.msra.mxu0 %v437
    %865 = vmatprep.subr.bf16.mxu0 %v446
    %866 = vmatpush1.bf16.msra.mxu0 %v445
    %867 = vmatprep.subr.bf16.mxu0 %v454
    %868 = vmatpush1.bf16.msra.mxu0 %v453
    %869 = vmatprep.subr.bf16.mxu0 %v462
    %870 = vmatpush1.bf16.msra.mxu0 %v461
    %871 = vmatprep.subr.bf16.mxu0 %v470
    %872 = vmatpush1.bf16.msra.mxu0 %v469
    %873 = vmatprep.subr.bf16.mxu0 %v478
    %874 = vmatpush1.bf16.msra.mxu0 %v477
    %875 = vmatprep.subr.bf16.mxu0 %v486
    %876 = vmatpush1.bf16.msra.mxu0 %v485
    %877 = vmatprep.subr.bf16.mxu0 %v494
    %878 = vmatpush1.bf16.msra.mxu0 %v493
    %879 = vmatprep.subr.bf16.mxu0 %v502
    %880 = vmatpush1.bf16.msra.mxu0 %v501
    %881 = vmatprep.subr.bf16.mxu0 %v510
    %882 = vmatpush1.bf16.msra.mxu0 %v509
    %883 = vmatprep.subr.bf16.mxu0 %v518
    %884 = vmatpush1.bf16.msra.mxu0 %v517
    %885 = vmatprep.subr.bf16.mxu0 %v526
    %886 = vmatpush1.bf16.msra.mxu0 %v525
    %887 = vmatprep.subr.bf16.mxu0 %v534
    %888 = vmatpush1.bf16.msra.mxu0 %v533
    %889 = vmatprep.subr.bf16.mxu0 %v542
    %890 = vmatpush1.bf16.msra.mxu0 %v541
    %891 = vmatprep.mubr.bf16.mxu0 %v411
    %892 = vmatmul.mubr.bf16.gmra.mrb[0].mxu0 %v410
    %v893 = vpop.f32.mrb[0].mxu0
    %v894 = vadd.f32 %v818, %v893
    %v895 = vpop.f32.mrb[0].mxu0
    %v896 = vadd.f32 %v822, %v895
    %v897 = vpop.f32.mrb[0].mxu0
    %v898 = vpop.f32.mrb[0].mxu0
    %899 = vdwg.mxu0
    %900 = vmatprep.subr.bf16.mxu0 %v550
    %901 = vmatpush1.bf16.msra.mxu0 %v549
    %902 = vmatprep.subr.bf16.mxu0 %v558
    %903 = vmatpush1.bf16.msra.mxu0 %v557
    %904 = vmatprep.subr.bf16.mxu0 %v566
    %905 = vmatpush1.bf16.msra.mxu0 %v565
    %906 = vmatprep.subr.bf16.mxu0 %v574
    %907 = vmatpush1.bf16.msra.mxu0 %v573
    %908 = vmatprep.subr.bf16.mxu0 %v582
    %909 = vmatpush1.bf16.msra.mxu0 %v581
    %910 = vmatprep.subr.bf16.mxu0 %v590
    %911 = vmatpush1.bf16.msra.mxu0 %v589
    %912 = vmatprep.subr.bf16.mxu0 %v598
    %913 = vmatpush1.bf16.msra.mxu0 %v597
    %914 = vmatprep.subr.bf16.mxu0 %v606
    %915 = vmatpush1.bf16.msra.mxu0 %v605
    %916 = vmatprep.subr.bf16.mxu0 %v614
    %917 = vmatpush1.bf16.msra.mxu0 %v613
    %918 = vmatprep.subr.bf16.mxu0 %v622
    %919 = vmatpush1.bf16.msra.mxu0 %v621
    %920 = vmatprep.subr.bf16.mxu0 %v630
    %921 = vmatpush1.bf16.msra.mxu0 %v629
    %922 = vmatprep.subr.bf16.mxu0 %v638
    %923 = vmatpush1.bf16.msra.mxu0 %v637
    %924 = vmatprep.subr.bf16.mxu0 %v646
    %925 = vmatpush1.bf16.msra.mxu0 %v645
    %926 = vmatprep.subr.bf16.mxu0 %v654
    %927 = vmatpush1.bf16.msra.mxu0 %v653
    %928 = vmatprep.subr.bf16.mxu0 %v662
    %929 = vmatpush1.bf16.msra.mxu0 %v661
    %930 = vmatprep.subr.bf16.mxu0 %v670
    %931 = vmatpush1.bf16.msra.mxu0 %v669
    %932 = vmatprep.mubr.bf16.mxu0 %v413
    %933 = vmatmul.mubr.bf16.gmra.mrb[0].mxu0 %v412
    %v934 = vpop.f32.mrb[0].mxu0
    %v935 = vadd.f32 %v894, %v934
    %v936 = vpop.f32.mrb[0].mxu0
    %v937 = vadd.f32 %v896, %v936
    %v938 = vpop.f32.mrb[0].mxu0
    %v939 = vpop.f32.mrb[0].mxu0
    %940 = vdwg.mxu0
    %941 = vmatprep.subr.bf16.mxu0 %v678
    %942 = vmatpush1.bf16.msra.mxu0 %v677
    %943 = vmatprep.subr.bf16.mxu0 %v686
    %944 = vmatpush1.bf16.msra.mxu0 %v685
    %945 = vmatprep.subr.bf16.mxu0 %v694
    %946 = vmatpush1.bf16.msra.mxu0 %v693
    %947 = vmatprep.subr.bf16.mxu0 %v702
    %948 = vmatpush1.bf16.msra.mxu0 %v701
    %949 = vmatprep.subr.bf16.mxu0 %v710
    %950 = vmatpush1.bf16.msra.mxu0 %v709
    %951 = vmatprep.subr.bf16.mxu0 %v718
    %952 = vmatpush1.bf16.msra.mxu0 %v717
    %953 = vmatprep.subr.bf16.mxu0 %v726
    %954 = vmatpush1.bf16.msra.mxu0 %v725
    %955 = vmatprep.subr.bf16.mxu0 %v734
    %956 = vmatpush1.bf16.msra.mxu0 %v733
    %957 = vmatprep.subr.bf16.mxu0 %v742
    %958 = vmatpush1.bf16.msra.mxu0 %v741
    %959 = vmatprep.subr.bf16.mxu0 %v750
    %960 = vmatpush1.bf16.msra.mxu0 %v749
    %961 = vmatprep.subr.bf16.mxu0 %v758
    %962 = vmatpush1.bf16.msra.mxu0 %v757
    %963 = vmatprep.subr.bf16.mxu0 %v766
    %964 = vmatpush1.bf16.msra.mxu0 %v765
    %965 = vmatprep.subr.bf16.mxu0 %v774
    %966 = vmatpush1.bf16.msra.mxu0 %v773
    %967 = vmatprep.subr.bf16.mxu0 %v782
    %968 = vmatpush1.bf16.msra.mxu0 %v781
    %969 = vmatprep.subr.bf16.mxu0 %v790
    %970 = vmatpush1.bf16.msra.mxu0 %v789
    %971 = vmatprep.subr.bf16.mxu0 %v798
    %972 = vmatpush1.bf16.msra.mxu0 %v797
    %973 = vmatprep.mubr.bf16.mxu0 %v415
    %974 = vmatmul.mubr.bf16.gmra.mrb[0].mxu0 %v414
    %v975 = vpop.f32.mrb[0].mxu0
    %v976 = vadd.f32 %v935, %v975
    %v977 = vpop.f32.mrb[0].mxu0
    %v978 = vadd.f32 %v937, %v977
    %v979 = vpop.f32.mrb[0].mxu0
    %v980 = vpop.f32.mrb[0].mxu0
    %981 = vdwg.mxu0
    %982 = vmatprep.subr.bf16.mxu0 %v806
    %983 = vmatpush1.bf16.msra.mxu0 %v805
    %984 = vmatprep.subr.bf16.mxu0 0
    %985 = vmatpush1.bf16.msra.mxu0 0
    %986 = vmatprep.subr.bf16.mxu0 0
    %987 = vmatpush1.bf16.msra.mxu0 0
    %988 = vmatprep.subr.bf16.mxu0 0
    %989 = vmatpush1.bf16.msra.mxu0 0
    %990 = vmatprep.subr.bf16.mxu0 0
    %991 = vmatpush1.bf16.msra.mxu0 0
    %992 = vmatprep.subr.bf16.mxu0 0
    %993 = vmatpush1.bf16.msra.mxu0 0
    %994 = vmatprep.subr.bf16.mxu0 0
    %995 = vmatpush1.bf16.msra.mxu0 0
    %996 = vmatprep.subr.bf16.mxu0 0
    %997 = vmatpush1.bf16.msra.mxu0 0
    %998 = vmatprep.subr.bf16.mxu0 0
    %999 = vmatpush1.bf16.msra.mxu0 0
    %1000 = vmatprep.subr.bf16.mxu0 0
    %1001 = vmatpush1.bf16.msra.mxu0 0
    %1002 = vmatprep.subr.bf16.mxu0 0
    %1003 = vmatpush1.bf16.msra.mxu0 0
    %1004 = vmatprep.subr.bf16.mxu0 0
    %1005 = vmatpush1.bf16.msra.mxu0 0
    %1006 = vmatprep.subr.bf16.mxu0 0
    %1007 = vmatpush1.bf16.msra.mxu0 0
    %1008 = vmatprep.subr.bf16.mxu0 0
    %1009 = vmatpush1.bf16.msra.mxu0 0
    %1010 = vmatprep.subr.bf16.mxu0 0
    %1011 = vmatpush1.bf16.msra.mxu0 0
    %1012 = vmatprep.subr.bf16.mxu0 0
    %1013 = vmatpush1.bf16.msra.mxu0 0
    %1014 = vmatprep.mubr.bf16.mxu0 0
    %1015 = vmatmul.mubr.bf16.gmra.mrb[0].mxu0 %v857
    %v1016 = vpop.f32.mrb[0].mxu0
    %v1017 = vadd.f32 %v976, %v1016
    %v1018 = vpop.f32.mrb[0].mxu0
    %v1019 = vadd.f32 %v978, %v1018
    %v1020 = vpop.f32.mrb[0].mxu0
    %v1021 = vpop.f32.mrb[0].mxu0
    %1022 = vdwg.mxu0
    %1023 = vmatprep.subr.bf16.mxu0 %v424
    %1024 = vmatpush1.bf16.msra.mxu0 %v423
    %1025 = vmatprep.subr.bf16.mxu0 %v432
    %1026 = vmatpush1.bf16.msra.mxu0 %v431
    %1027 = vmatprep.subr.bf16.mxu0 %v440
    %1028 = vmatpush1.bf16.msra.mxu0 %v439
    %1029 = vmatprep.subr.bf16.mxu0 %v448
    %1030 = vmatpush1.bf16.msra.mxu0 %v447
    %1031 = vmatprep.subr.bf16.mxu0 %v456
    %1032 = vmatpush1.bf16.msra.mxu0 %v455
    %1033 = vmatprep.subr.bf16.mxu0 %v464
    %1034 = vmatpush1.bf16.msra.mxu0 %v463
    %1035 = vmatprep.subr.bf16.mxu0 %v472
    %1036 = vmatpush1.bf16.msra.mxu0 %v471
    %1037 = vmatprep.subr.bf16.mxu0 %v480
    %1038 = vmatpush1.bf16.msra.mxu0 %v479
    %1039 = vmatprep.subr.bf16.mxu0 %v488
    %1040 = vmatpush1.bf16.msra.mxu0 %v487
    %1041 = vmatprep.subr.bf16.mxu0 %v496
    %1042 = vmatpush1.bf16.msra.mxu0 %v495
    %1043 = vmatprep.subr.bf16.mxu0 %v504
    %1044 = vmatpush1.bf16.msra.mxu0 %v503
    %1045 = vmatprep.subr.bf16.mxu0 %v512
    %1046 = vmatpush1.bf16.msra.mxu0 %v511
    %1047 = vmatprep.subr.bf16.mxu0 %v520
    %1048 = vmatpush1.bf16.msra.mxu0 %v519
    %1049 = vmatprep.subr.bf16.mxu0 %v528
    %1050 = vmatpush1.bf16.msra.mxu0 %v527
    %1051 = vmatprep.subr.bf16.mxu0 %v536
    %1052 = vmatpush1.bf16.msra.mxu0 %v535
    %1053 = vmatprep.subr.bf16.mxu0 %v544
    %1054 = vmatpush1.bf16.msra.mxu0 %v543
    %1055 = vmatprep.mubr.bf16.mxu0 %v411
    %1056 = vmatmul.mubr.bf16.gmra.mrb[0].mxu0 %v410
    %v1057 = vpop.f32.mrb[0].mxu0
    %v1058 = vadd.f32 %v826, %v1057
    %v1059 = vpop.f32.mrb[0].mxu0
    %v1060 = vadd.f32 %v830, %v1059
    %v1061 = vpop.f32.mrb[0].mxu0
    %v1062 = vpop.f32.mrb[0].mxu0
    %1063 = vdwg.mxu0
    %1064 = vmatprep.subr.bf16.mxu0 %v552
    %1065 = vmatpush1.bf16.msra.mxu0 %v551
    %1066 = vmatprep.subr.bf16.mxu0 %v560
    %1067 = vmatpush1.bf16.msra.mxu0 %v559
    %1068 = vmatprep.subr.bf16.mxu0 %v568
    %1069 = vmatpush1.bf16.msra.mxu0 %v567
    %1070 = vmatprep.subr.bf16.mxu0 %v576
    %1071 = vmatpush1.bf16.msra.mxu0 %v575
    %1072 = vmatprep.subr.bf16.mxu0 %v584
    %1073 = vmatpush1.bf16.msra.mxu0 %v583
    %1074 = vmatprep.subr.bf16.mxu0 %v592
    %1075 = vmatpush1.bf16.msra.mxu0 %v591
    %1076 = vmatprep.subr.bf16.mxu0 %v600
    %1077 = vmatpush1.bf16.msra.mxu0 %v599
    %1078 = vmatprep.subr.bf16.mxu0 %v608
    %1079 = vmatpush1.bf16.msra.mxu0 %v607
    %1080 = vmatprep.subr.bf16.mxu0 %v616
    %1081 = vmatpush1.bf16.msra.mxu0 %v615
    %1082 = vmatprep.subr.bf16.mxu0 %v624
    %1083 = vmatpush1.bf16.msra.mxu0 %v623
    %1084 = vmatprep.subr.bf16.mxu0 %v632
    %1085 = vmatpush1.bf16.msra.mxu0 %v631
    %1086 = vmatprep.subr.bf16.mxu0 %v640
    %1087 = vmatpush1.bf16.msra.mxu0 %v639
    %1088 = vmatprep.subr.bf16.mxu0 %v648
    %1089 = vmatpush1.bf16.msra.mxu0 %v647
    %1090 = vmatprep.subr.bf16.mxu0 %v656
    %1091 = vmatpush1.bf16.msra.mxu0 %v655
    %1092 = vmatprep.subr.bf16.mxu0 %v664
    %1093 = vmatpush1.bf16.msra.mxu0 %v663
    %1094 = vmatprep.subr.bf16.mxu0 %v672
    %1095 = vmatpush1.bf16.msra.mxu0 %v671
    %1096 = vmatprep.mubr.bf16.mxu0 %v413
    %1097 = vmatmul.mubr.bf16.gmra.mrb[0].mxu0 %v412
    %v1098 = vpop.f32.mrb[0].mxu0
    %v1099 = vadd.f32 %v1058, %v1098
    %v1100 = vpop.f32.mrb[0].mxu0
    %v1101 = vadd.f32 %v1060, %v1100
    %v1102 = vpop.f32.mrb[0].mxu0
    %v1103 = vpop.f32.mrb[0].mxu0
    %1104 = vdwg.mxu0
    %1105 = vmatprep.subr.bf16.mxu0 %v680
    %1106 = vmatpush1.bf16.msra.mxu0 %v679
    %1107 = vmatprep.subr.bf16.mxu0 %v688
    %1108 = vmatpush1.bf16.msra.mxu0 %v687
    %1109 = vmatprep.subr.bf16.mxu0 %v696
    %1110 = vmatpush1.bf16.msra.mxu0 %v695
    %1111 = vmatprep.subr.bf16.mxu0 %v704
    %1112 = vmatpush1.bf16.msra.mxu0 %v703
    %1113 = vmatprep.subr.bf16.mxu0 %v712
    %1114 = vmatpush1.bf16.msra.mxu0 %v711
    %1115 = vmatprep.subr.bf16.mxu0 %v720
    %1116 = vmatpush1.bf16.msra.mxu0 %v719
    %1117 = vmatprep.subr.bf16.mxu0 %v728
    %1118 = vmatpush1.bf16.msra.mxu0 %v727
    %1119 = vmatprep.subr.bf16.mxu0 %v736
    %1120 = vmatpush1.bf16.msra.mxu0 %v735
    %1121 = vmatprep.subr.bf16.mxu0 %v744
    %1122 = vmatpush1.bf16.msra.mxu0 %v743
    %1123 = vmatprep.subr.bf16.mxu0 %v752
    %1124 = vmatpush1.bf16.msra.mxu0 %v751
    %1125 = vmatprep.subr.bf16.mxu0 %v760
    %1126 = vmatpush1.bf16.msra.mxu0 %v759
    %1127 = vmatprep.subr.bf16.mxu0 %v768
    %1128 = vmatpush1.bf16.msra.mxu0 %v767
    %1129 = vmatprep.subr.bf16.mxu0 %v776
    %1130 = vmatpush1.bf16.msra.mxu0 %v775
    %1131 = vmatprep.subr.bf16.mxu0 %v784
    %1132 = vmatpush1.bf16.msra.mxu0 %v783
    %1133 = vmatprep.subr.bf16.mxu0 %v792
    %1134 = vmatpush1.bf16.msra.mxu0 %v791
    %1135 = vmatprep.subr.bf16.mxu0 %v800
    %1136 = vmatpush1.bf16.msra.mxu0 %v799
    %1137 = vmatprep.mubr.bf16.mxu0 %v415
    %1138 = vmatmul.mubr.bf16.gmra.mrb[0].mxu0 %v414
    %v1139 = vpop.f32.mrb[0].mxu0
    %v1140 = vadd.f32 %v1099, %v1139
    %v1141 = vpop.f32.mrb[0].mxu0
    %v1142 = vadd.f32 %v1101, %v1141
    %v1143 = vpop.f32.mrb[0].mxu0
    %v1144 = vpop.f32.mrb[0].mxu0
    %1145 = vdwg.mxu0
    %1146 = vmatprep.subr.bf16.mxu0 %v808
    %1147 = vmatpush1.bf16.msra.mxu0 %v807
    %1148 = vmatprep.subr.bf16.mxu0 0
    %1149 = vmatpush1.bf16.msra.mxu0 0
    %1150 = vmatprep.subr.bf16.mxu0 0
    %1151 = vmatpush1.bf16.msra.mxu0 0
    %1152 = vmatprep.subr.bf16.mxu0 0
    %1153 = vmatpush1.bf16.msra.mxu0 0
    %1154 = vmatprep.subr.bf16.mxu0 0
    %1155 = vmatpush1.bf16.msra.mxu0 0
    %1156 = vmatprep.subr.bf16.mxu0 0
    %1157 = vmatpush1.bf16.msra.mxu0 0
    %1158 = vmatprep.subr.bf16.mxu0 0
    %1159 = vmatpush1.bf16.msra.mxu0 0
    %1160 = vmatprep.subr.bf16.mxu0 0
    %1161 = vmatpush1.bf16.msra.mxu0 0
    %1162 = vmatprep.subr.bf16.mxu0 0
    %1163 = vmatpush1.bf16.msra.mxu0 0
    %1164 = vmatprep.subr.bf16.mxu0 0
    %1165 = vmatpush1.bf16.msra.mxu0 0
    %1166 = vmatprep.subr.bf16.mxu0 0
    %1167 = vmatpush1.bf16.msra.mxu0 0
    %1168 = vmatprep.subr.bf16.mxu0 0
    %1169 = vmatpush1.bf16.msra.mxu0 0
    %1170 = vmatprep.subr.bf16.mxu0 0
    %1171 = vmatpush1.bf16.msra.mxu0 0
    %1172 = vmatprep.subr.bf16.mxu0 0
    %1173 = vmatpush1.bf16.msra.mxu0 0
    %1174 = vmatprep.subr.bf16.mxu0 0
    %1175 = vmatpush1.bf16.msra.mxu0 0
    %1176 = vmatprep.subr.bf16.mxu0 0
    %1177 = vmatpush1.bf16.msra.mxu0 0
    %1178 = vmatprep.mubr.bf16.mxu0 0
    %1179 = vmatmul.mubr.bf16.gmra.mrb[0].mxu0 %v857
    %v1180 = vpop.f32.mrb[0].mxu0
    %v1181 = vadd.f32 %v1140, %v1180
    %v1182 = vpop.f32.mrb[0].mxu0
    %v1183 = vadd.f32 %v1142, %v1182
    %v1184 = vpop.f32.mrb[0].mxu0
    %v1185 = vpop.f32.mrb[0].mxu0
    %1186 = vdwg.mxu0
    %1187 = vmatprep.subr.bf16.mxu0 %v426
    %1188 = vmatpush1.bf16.msra.mxu0 %v425
    %1189 = vmatprep.subr.bf16.mxu0 %v434
    %1190 = vmatpush1.bf16.msra.mxu0 %v433
    %1191 = vmatprep.subr.bf16.mxu0 %v442
    %1192 = vmatpush1.bf16.msra.mxu0 %v441
    %1193 = vmatprep.subr.bf16.mxu0 %v450
    %1194 = vmatpush1.bf16.msra.mxu0 %v449
    %1195 = vmatprep.subr.bf16.mxu0 %v458
    %1196 = vmatpush1.bf16.msra.mxu0 %v457
    %1197 = vmatprep.subr.bf16.mxu0 %v466
    %1198 = vmatpush1.bf16.msra.mxu0 %v465
    %1199 = vmatprep.subr.bf16.mxu0 %v474
    %1200 = vmatpush1.bf16.msra.mxu0 %v473
    %1201 = vmatprep.subr.bf16.mxu0 %v482
    %1202 = vmatpush1.bf16.msra.mxu0 %v481
    %1203 = vmatprep.subr.bf16.mxu0 %v490
    %1204 = vmatpush1.bf16.msra.mxu0 %v489
    %1205 = vmatprep.subr.bf16.mxu0 %v498
    %1206 = vmatpush1.bf16.msra.mxu0 %v497
    %1207 = vmatprep.subr.bf16.mxu0 %v506
    %1208 = vmatpush1.bf16.msra.mxu0 %v505
    %1209 = vmatprep.subr.bf16.mxu0 %v514
    %1210 = vmatpush1.bf16.msra.mxu0 %v513
    %1211 = vmatprep.subr.bf16.mxu0 %v522
    %1212 = vmatpush1.bf16.msra.mxu0 %v521
    %1213 = vmatprep.subr.bf16.mxu0 %v530
    %1214 = vmatpush1.bf16.msra.mxu0 %v529
    %1215 = vmatprep.subr.bf16.mxu0 %v538
    %1216 = vmatpush1.bf16.msra.mxu0 %v537
    %1217 = vmatprep.subr.bf16.mxu0 %v546
    %1218 = vmatpush1.bf16.msra.mxu0 %v545
    %1219 = vmatprep.mubr.bf16.mxu0 %v411
    %1220 = vmatmul.mubr.bf16.gmra.mrb[0].mxu0 %v410
    %v1221 = vpop.f32.mrb[0].mxu0
    %v1222 = vadd.f32 %v834, %v1221
    %v1223 = vpop.f32.mrb[0].mxu0
    %v1224 = vadd.f32 %v838, %v1223
    %v1225 = vpop.f32.mrb[0].mxu0
    %v1226 = vpop.f32.mrb[0].mxu0
    %1227 = vdwg.mxu0
    %1228 = vmatprep.subr.bf16.mxu0 %v554
    %1229 = vmatpush1.bf16.msra.mxu0 %v553
    %1230 = vmatprep.subr.bf16.mxu0 %v562
    %1231 = vmatpush1.bf16.msra.mxu0 %v561
    %1232 = vmatprep.subr.bf16.mxu0 %v570
    %1233 = vmatpush1.bf16.msra.mxu0 %v569
    %1234 = vmatprep.subr.bf16.mxu0 %v578
    %1235 = vmatpush1.bf16.msra.mxu0 %v577
    %1236 = vmatprep.subr.bf16.mxu0 %v586
    %1237 = vmatpush1.bf16.msra.mxu0 %v585
    %1238 = vmatprep.subr.bf16.mxu0 %v594
    %1239 = vmatpush1.bf16.msra.mxu0 %v593
    %1240 = vmatprep.subr.bf16.mxu0 %v602
    %1241 = vmatpush1.bf16.msra.mxu0 %v601
    %1242 = vmatprep.subr.bf16.mxu0 %v610
    %1243 = vmatpush1.bf16.msra.mxu0 %v609
    %1244 = vmatprep.subr.bf16.mxu0 %v618
    %1245 = vmatpush1.bf16.msra.mxu0 %v617
    %1246 = vmatprep.subr.bf16.mxu0 %v626
    %1247 = vmatpush1.bf16.msra.mxu0 %v625
    %1248 = vmatprep.subr.bf16.mxu0 %v634
    %1249 = vmatpush1.bf16.msra.mxu0 %v633
    %1250 = vmatprep.subr.bf16.mxu0 %v642
    %1251 = vmatpush1.bf16.msra.mxu0 %v641
    %1252 = vmatprep.subr.bf16.mxu0 %v650
    %1253 = vmatpush1.bf16.msra.mxu0 %v649
    %1254 = vmatprep.subr.bf16.mxu0 %v658
    %1255 = vmatpush1.bf16.msra.mxu0 %v657
    %1256 = vmatprep.subr.bf16.mxu0 %v666
    %1257 = vmatpush1.bf16.msra.mxu0 %v665
    %1258 = vmatprep.subr.bf16.mxu0 %v674
    %1259 = vmatpush1.bf16.msra.mxu0 %v673
    %1260 = vmatprep.mubr.bf16.mxu0 %v413
    %1261 = vmatmul.mubr.bf16.gmra.mrb[0].mxu0 %v412
    %v1262 = vpop.f32.mrb[0].mxu0
    %v1263 = vadd.f32 %v1222, %v1262
    %v1264 = vpop.f32.mrb[0].mxu0
    %v1265 = vadd.f32 %v1224, %v1264
    %v1266 = vpop.f32.mrb[0].mxu0
    %v1267 = vpop.f32.mrb[0].mxu0
    %1268 = vdwg.mxu0
    %1269 = vmatprep.subr.bf16.mxu0 %v682
    %1270 = vmatpush1.bf16.msra.mxu0 %v681
    %1271 = vmatprep.subr.bf16.mxu0 %v690
    %1272 = vmatpush1.bf16.msra.mxu0 %v689
    %1273 = vmatprep.subr.bf16.mxu0 %v698
    %1274 = vmatpush1.bf16.msra.mxu0 %v697
    %1275 = vmatprep.subr.bf16.mxu0 %v706
    %1276 = vmatpush1.bf16.msra.mxu0 %v705
    %1277 = vmatprep.subr.bf16.mxu0 %v714
    %1278 = vmatpush1.bf16.msra.mxu0 %v713
    %1279 = vmatprep.subr.bf16.mxu0 %v722
    %1280 = vmatpush1.bf16.msra.mxu0 %v721
    %1281 = vmatprep.subr.bf16.mxu0 %v730
    %1282 = vmatpush1.bf16.msra.mxu0 %v729
    %1283 = vmatprep.subr.bf16.mxu0 %v738
    %1284 = vmatpush1.bf16.msra.mxu0 %v737
    %1285 = vmatprep.subr.bf16.mxu0 %v746
    %1286 = vmatpush1.bf16.msra.mxu0 %v745
    %1287 = vmatprep.subr.bf16.mxu0 %v754
    %1288 = vmatpush1.bf16.msra.mxu0 %v753
    %1289 = vmatprep.subr.bf16.mxu0 %v762
    %1290 = vmatpush1.bf16.msra.mxu0 %v761
    %1291 = vmatprep.subr.bf16.mxu0 %v770
    %1292 = vmatpush1.bf16.msra.mxu0 %v769
    %1293 = vmatprep.subr.bf16.mxu0 %v778
    %1294 = vmatpush1.bf16.msra.mxu0 %v777
    %1295 = vmatprep.subr.bf16.mxu0 %v786
    %1296 = vmatpush1.bf16.msra.mxu0 %v785
    %1297 = vmatprep.subr.bf16.mxu0 %v794
    %1298 = vmatpush1.bf16.msra.mxu0 %v793
    %1299 = vmatprep.subr.bf16.mxu0 %v802
    %1300 = vmatpush1.bf16.msra.mxu0 %v801
    %1301 = vmatprep.mubr.bf16.mxu0 %v415
    %1302 = vmatmul.mubr.bf16.gmra.mrb[0].mxu0 %v414
    %v1303 = vpop.f32.mrb[0].mxu0
    %v1304 = vadd.f32 %v1263, %v1303
    %v1305 = vpop.f32.mrb[0].mxu0
    %v1306 = vadd.f32 %v1265, %v1305
    %v1307 = vpop.f32.mrb[0].mxu0
    %v1308 = vpop.f32.mrb[0].mxu0
    %1309 = vdwg.mxu0
    %1310 = vmatprep.subr.bf16.mxu0 %v810
    %1311 = vmatpush1.bf16.msra.mxu0 %v809
    %1312 = vmatprep.subr.bf16.mxu0 0
    %1313 = vmatpush1.bf16.msra.mxu0 0
    %1314 = vmatprep.subr.bf16.mxu0 0
    %1315 = vmatpush1.bf16.msra.mxu0 0
    %1316 = vmatprep.subr.bf16.mxu0 0
    %1317 = vmatpush1.bf16.msra.mxu0 0
    %1318 = vmatprep.subr.bf16.mxu0 0
    %1319 = vmatpush1.bf16.msra.mxu0 0
    %1320 = vmatprep.subr.bf16.mxu0 0
    %1321 = vmatpush1.bf16.msra.mxu0 0
    %1322 = vmatprep.subr.bf16.mxu0 0
    %1323 = vmatpush1.bf16.msra.mxu0 0
    %1324 = vmatprep.subr.bf16.mxu0 0
    %1325 = vmatpush1.bf16.msra.mxu0 0
    %1326 = vmatprep.subr.bf16.mxu0 0
    %1327 = vmatpush1.bf16.msra.mxu0 0
    %1328 = vmatprep.subr.bf16.mxu0 0
    %1329 = vmatpush1.bf16.msra.mxu0 0
    %1330 = vmatprep.subr.bf16.mxu0 0
    %1331 = vmatpush1.bf16.msra.mxu0 0
    %1332 = vmatprep.subr.bf16.mxu0 0
    %1333 = vmatpush1.bf16.msra.mxu0 0
    %1334 = vmatprep.subr.bf16.mxu0 0
    %1335 = vmatpush1.bf16.msra.mxu0 0
    %1336 = vmatprep.subr.bf16.mxu0 0
    %1337 = vmatpush1.bf16.msra.mxu0 0
    %1338 = vmatprep.subr.bf16.mxu0 0
    %1339 = vmatpush1.bf16.msra.mxu0 0
    %1340 = vmatprep.subr.bf16.mxu0 0
    %1341 = vmatpush1.bf16.msra.mxu0 0
    %1342 = vmatprep.mubr.bf16.mxu0 0
    %1343 = vmatmul.mubr.bf16.gmra.mrb[0].mxu0 %v857
    %v1344 = vpop.f32.mrb[0].mxu0
    %v1345 = vadd.f32 %v1304, %v1344
    %v1346 = vpop.f32.mrb[0].mxu0
    %v1347 = vadd.f32 %v1306, %v1346
    %v1348 = vpop.f32.mrb[0].mxu0
    %v1349 = vpop.f32.mrb[0].mxu0
    %1350 = vdwg.mxu0
    %1351 = vmatprep.subr.bf16.mxu0 %v428
    %1352 = vmatpush1.bf16.msra.mxu0 %v427
    %1353 = vmatprep.subr.bf16.mxu0 %v436
    %1354 = vmatpush1.bf16.msra.mxu0 %v435
    %1355 = vmatprep.subr.bf16.mxu0 %v444
    %1356 = vmatpush1.bf16.msra.mxu0 %v443
    %1357 = vmatprep.subr.bf16.mxu0 %v452
    %1358 = vmatpush1.bf16.msra.mxu0 %v451
    %1359 = vmatprep.subr.bf16.mxu0 %v460
    %1360 = vmatpush1.bf16.msra.mxu0 %v459
    %1361 = vmatprep.subr.bf16.mxu0 %v468
    %1362 = vmatpush1.bf16.msra.mxu0 %v467
    %1363 = vmatprep.subr.bf16.mxu0 %v476
    %1364 = vmatpush1.bf16.msra.mxu0 %v475
    %1365 = vmatprep.subr.bf16.mxu0 %v484
    %1366 = vmatpush1.bf16.msra.mxu0 %v483
    %1367 = vmatprep.subr.bf16.mxu0 %v492
    %1368 = vmatpush1.bf16.msra.mxu0 %v491
    %1369 = vmatprep.subr.bf16.mxu0 %v500
    %1370 = vmatpush1.bf16.msra.mxu0 %v499
    %1371 = vmatprep.subr.bf16.mxu0 %v508
    %1372 = vmatpush1.bf16.msra.mxu0 %v507
    %1373 = vmatprep.subr.bf16.mxu0 %v516
    %1374 = vmatpush1.bf16.msra.mxu0 %v515
    %1375 = vmatprep.subr.bf16.mxu0 %v524
    %1376 = vmatpush1.bf16.msra.mxu0 %v523
    %1377 = vmatprep.subr.bf16.mxu0 %v532
    %1378 = vmatpush1.bf16.msra.mxu0 %v531
    %1379 = vmatprep.subr.bf16.mxu0 %v540
    %1380 = vmatpush1.bf16.msra.mxu0 %v539
    %1381 = vmatprep.subr.bf16.mxu0 %v548
    %1382 = vmatpush1.bf16.msra.mxu0 %v547
    %1383 = vmatprep.mubr.bf16.mxu0 %v411
    %1384 = vmatmul.mubr.bf16.gmra.mrb[0].mxu0 %v410
    %v1385 = vpop.f32.mrb[0].mxu0
    %v1386 = vadd.f32 %v842, %v1385
    %v1387 = vpop.f32.mrb[0].mxu0
    %v1388 = vadd.f32 %v846, %v1387
    %v1389 = vpop.f32.mrb[0].mxu0
    %v1390 = vpop.f32.mrb[0].mxu0
    %1391 = vdwg.mxu0
    %1392 = vmatprep.subr.bf16.mxu0 %v556
    %1393 = vmatpush1.bf16.msra.mxu0 %v555
    %1394 = vmatprep.subr.bf16.mxu0 %v564
    %1395 = vmatpush1.bf16.msra.mxu0 %v563
    %1396 = vmatprep.subr.bf16.mxu0 %v572
    %1397 = vmatpush1.bf16.msra.mxu0 %v571
    %1398 = vmatprep.subr.bf16.mxu0 %v580
    %1399 = vmatpush1.bf16.msra.mxu0 %v579
    %1400 = vmatprep.subr.bf16.mxu0 %v588
    %1401 = vmatpush1.bf16.msra.mxu0 %v587
    %1402 = vmatprep.subr.bf16.mxu0 %v596
    %1403 = vmatpush1.bf16.msra.mxu0 %v595
    %1404 = vmatprep.subr.bf16.mxu0 %v604
    %1405 = vmatpush1.bf16.msra.mxu0 %v603
    %1406 = vmatprep.subr.bf16.mxu0 %v612
    %1407 = vmatpush1.bf16.msra.mxu0 %v611
    %1408 = vmatprep.subr.bf16.mxu0 %v620
    %1409 = vmatpush1.bf16.msra.mxu0 %v619
    %1410 = vmatprep.subr.bf16.mxu0 %v628
    %1411 = vmatpush1.bf16.msra.mxu0 %v627
    %1412 = vmatprep.subr.bf16.mxu0 %v636
    %1413 = vmatpush1.bf16.msra.mxu0 %v635
    %1414 = vmatprep.subr.bf16.mxu0 %v644
    %1415 = vmatpush1.bf16.msra.mxu0 %v643
    %1416 = vmatprep.subr.bf16.mxu0 %v652
    %1417 = vmatpush1.bf16.msra.mxu0 %v651
    %1418 = vmatprep.subr.bf16.mxu0 %v660
    %1419 = vmatpush1.bf16.msra.mxu0 %v659
    %1420 = vmatprep.subr.bf16.mxu0 %v668
    %1421 = vmatpush1.bf16.msra.mxu0 %v667
    %1422 = vmatprep.subr.bf16.mxu0 %v676
    %1423 = vmatpush1.bf16.msra.mxu0 %v675
    %1424 = vmatprep.mubr.bf16.mxu0 %v413
    %1425 = vmatmul.mubr.bf16.gmra.mrb[0].mxu0 %v412
    %v1426 = vpop.f32.mrb[0].mxu0
    %v1427 = vadd.f32 %v1386, %v1426
    %v1428 = vpop.f32.mrb[0].mxu0
    %v1429 = vadd.f32 %v1388, %v1428
    %v1430 = vpop.f32.mrb[0].mxu0
    %v1431 = vpop.f32.mrb[0].mxu0
    %1432 = vdwg.mxu0
    %1433 = vmatprep.subr.bf16.mxu0 %v684
    %1434 = vmatpush1.bf16.msra.mxu0 %v683
    %1435 = vmatprep.subr.bf16.mxu0 %v692
    %1436 = vmatpush1.bf16.msra.mxu0 %v691
    %1437 = vmatprep.subr.bf16.mxu0 %v700
    %1438 = vmatpush1.bf16.msra.mxu0 %v699
    %1439 = vmatprep.subr.bf16.mxu0 %v708
    %1440 = vmatpush1.bf16.msra.mxu0 %v707
    %1441 = vmatprep.subr.bf16.mxu0 %v716
    %1442 = vmatpush1.bf16.msra.mxu0 %v715
    %1443 = vmatprep.subr.bf16.mxu0 %v724
    %1444 = vmatpush1.bf16.msra.mxu0 %v723
    %1445 = vmatprep.subr.bf16.mxu0 %v732
    %1446 = vmatpush1.bf16.msra.mxu0 %v731
    %1447 = vmatprep.subr.bf16.mxu0 %v740
    %1448 = vmatpush1.bf16.msra.mxu0 %v739
    %1449 = vmatprep.subr.bf16.mxu0 %v748
    %1450 = vmatpush1.bf16.msra.mxu0 %v747
    %1451 = vmatprep.subr.bf16.mxu0 %v756
    %1452 = vmatpush1.bf16.msra.mxu0 %v755
    %1453 = vmatprep.subr.bf16.mxu0 %v764
    %1454 = vmatpush1.bf16.msra.mxu0 %v763
    %1455 = vmatprep.subr.bf16.mxu0 %v772
    %1456 = vmatpush1.bf16.msra.mxu0 %v771
    %1457 = vmatprep.subr.bf16.mxu0 %v780
    %1458 = vmatpush1.bf16.msra.mxu0 %v779
    %1459 = vmatprep.subr.bf16.mxu0 %v788
    %1460 = vmatpush1.bf16.msra.mxu0 %v787
    %1461 = vmatprep.subr.bf16.mxu0 %v796
    %1462 = vmatpush1.bf16.msra.mxu0 %v795
    %1463 = vmatprep.subr.bf16.mxu0 %v804
    %1464 = vmatpush1.bf16.msra.mxu0 %v803
    %1465 = vmatprep.mubr.bf16.mxu0 %v415
    %1466 = vmatmul.mubr.bf16.gmra.mrb[0].mxu0 %v414
    %v1467 = vpop.f32.mrb[0].mxu0
    %v1468 = vadd.f32 %v1427, %v1467
    %v1469 = vpop.f32.mrb[0].mxu0
    %v1470 = vadd.f32 %v1429, %v1469
    %v1471 = vpop.f32.mrb[0].mxu0
    %v1472 = vpop.f32.mrb[0].mxu0
    %1473 = vdwg.mxu0
    %1474 = vmatprep.subr.bf16.mxu0 %v812
    %1475 = vmatpush1.bf16.msra.mxu0 %v811
    %1476 = vmatprep.subr.bf16.mxu0 0
    %1477 = vmatpush1.bf16.msra.mxu0 0
    %1478 = vmatprep.subr.bf16.mxu0 0
    %1479 = vmatpush1.bf16.msra.mxu0 0
    %1480 = vmatprep.subr.bf16.mxu0 0
    %1481 = vmatpush1.bf16.msra.mxu0 0
    %1482 = vmatprep.subr.bf16.mxu0 0
    %1483 = vmatpush1.bf16.msra.mxu0 0
    %1484 = vmatprep.subr.bf16.mxu0 0
    %1485 = vmatpush1.bf16.msra.mxu0 0
    %1486 = vmatprep.subr.bf16.mxu0 0
    %1487 = vmatpush1.bf16.msra.mxu0 0
    %1488 = vmatprep.subr.bf16.mxu0 0
    %1489 = vmatpush1.bf16.msra.mxu0 0
    %1490 = vmatprep.subr.bf16.mxu0 0
    %1491 = vmatpush1.bf16.msra.mxu0 0
    %1492 = vmatprep.subr.bf16.mxu0 0
    %1493 = vmatpush1.bf16.msra.mxu0 0
    %1494 = vmatprep.subr.bf16.mxu0 0
    %1495 = vmatpush1.bf16.msra.mxu0 0
    %1496 = vmatprep.subr.bf16.mxu0 0
    %1497 = vmatpush1.bf16.msra.mxu0 0
    %1498 = vmatprep.subr.bf16.mxu0 0
    %1499 = vmatpush1.bf16.msra.mxu0 0
    %1500 = vmatprep.subr.bf16.mxu0 0
    %1501 = vmatpush1.bf16.msra.mxu0 0
    %1502 = vmatprep.subr.bf16.mxu0 0
    %1503 = vmatpush1.bf16.msra.mxu0 0
    %1504 = vmatprep.subr.bf16.mxu0 0
    %1505 = vmatpush1.bf16.msra.mxu0 0
    %1506 = vmatprep.mubr.bf16.mxu0 0
    %1507 = vmatmul.mubr.bf16.gmra.mrb[0].mxu0 %v857
    %v1508 = vpop.f32.mrb[0].mxu0
    %v1509 = vadd.f32 %v1468, %v1508
    %v1510 = vpop.f32.mrb[0].mxu0
    %v1511 = vadd.f32 %v1470, %v1510
    %v1512 = vpop.f32.mrb[0].mxu0
    %v1513 = vpop.f32.mrb[0].mxu0
    %1514 = vdwg.mxu0
    %v1515 = vmax.f32 %v1017, 0.0
    %v1516 = vmax.f32 %v1019, 0.0
    %v1517 = vmax.f32 %v1181, 0.0
    %v1518 = vmax.f32 %v1183, 0.0
    %v1519 = vmax.f32 %v1345, 0.0
    %v1520 = vmax.f32 %v1347, 0.0
    %v1521 = vmax.f32 %v1509, 0.0
    %v1522 = vmax.f32 %v1511, 0.0
    %v1523 = vpack.c.bf16 %v1515, %v1515
    %v1524 = vpack.c.bf16 %v1516, %v1516
    %v1525 = vpack.c.bf16 %v1517, %v1517
    %v1526 = vpack.c.bf16 %v1518, %v1518
    %v1527 = vpack.c.bf16 %v1519, %v1519
    %v1528 = vpack.c.bf16 %v1520, %v1520
    %v1529 = vpack.c.bf16 %v1521, %v1521
    %v1530 = vpack.c.bf16 %v1522, %v1522
    %s1531 = smul.u32 4, 128
    %s1532 = smul.u32 %s1531, 4
    %s1533 = sshll.u32 %s1532, 4
    %1534 = dma.done %s181, %s1533
    %v1535 = vld [vmem:[#allocation3] sm:$0xff]
    %v1536 = vld [vmem:[#allocation3 + $0x8] sm:$0xff]
    %v1537 = vld [vmem:[#allocation3 + $0x10] sm:$0xff]
    %v1538 = vld [vmem:[#allocation3 + $0x18] sm:$0xff]
    %v1539 = vld [vmem:[#allocation3 + $0x20] sm:$0xff]
    %v1540 = vld [vmem:[#allocation3 + $0x28] sm:$0xff]
    %v1541 = vld [vmem:[#allocation3 + $0x30] sm:$0xff]
    %v1542 = vld [vmem:[#allocation3 + $0x38] sm:$0xff]
    %v1543 = vld [vmem:[#allocation3 + $0x40] sm:$0xff]
    %v1544 = vld [vmem:[#allocation3 + $0x48] sm:$0xff]
    %v1545 = vld [vmem:[#allocation3 + $0x50] sm:$0xff]
    %v1546 = vld [vmem:[#allocation3 + $0x58] sm:$0xff]
    %v1547 = vld [vmem:[#allocation3 + $0x60] sm:$0xff]
    %v1548 = vld [vmem:[#allocation3 + $0x68] sm:$0xff]
    %v1549 = vld [vmem:[#allocation3 + $0x70] sm:$0xff]
    %v1550 = vld [vmem:[#allocation3 + $0x78] sm:$0xff]
    %v1551 = vld [vmem:[#allocation3 + $0x80] sm:$0xff]
    %v1552 = vld [vmem:[#allocation3 + $0x88] sm:$0xff]
    %v1553 = vld [vmem:[#allocation3 + $0x90] sm:$0xff]
    %v1554 = vld [vmem:[#allocation3 + $0x98] sm:$0xff]
    %v1555 = vld [vmem:[#allocation3 + $0xa0] sm:$0xff]
    %v1556 = vld [vmem:[#allocation3 + $0xa8] sm:$0xff]
    %v1557 = vld [vmem:[#allocation3 + $0xb0] sm:$0xff]
    %v1558 = vld [vmem:[#allocation3 + $0xb8] sm:$0xff]
    %v1559 = vld [vmem:[#allocation3 + $0xc0] sm:$0xff]
    %v1560 = vld [vmem:[#allocation3 + $0xc8] sm:$0xff]
    %v1561 = vld [vmem:[#allocation3 + $0xd0] sm:$0xff]
    %v1562 = vld [vmem:[#allocation3 + $0xd8] sm:$0xff]
    %v1563 = vld [vmem:[#allocation3 + $0xe0] sm:$0xff]
    %v1564 = vld [vmem:[#allocation3 + $0xe8] sm:$0xff]
    %v1565 = vld [vmem:[#allocation3 + $0xf0] sm:$0xff]
    %v1566 = vld [vmem:[#allocation3 + $0xf8] sm:$0xff]
    %v1567 = vld [vmem:[#allocation3 + $0x100] sm:$0xff]
    %v1568 = vld [vmem:[#allocation3 + $0x108] sm:$0xff]
    %v1569 = vld [vmem:[#allocation3 + $0x110] sm:$0xff]
    %v1570 = vld [vmem:[#allocation3 + $0x118] sm:$0xff]
    %v1571 = vld [vmem:[#allocation3 + $0x120] sm:$0xff]
    %v1572 = vld [vmem:[#allocation3 + $0x128] sm:$0xff]
    %v1573 = vld [vmem:[#allocation3 + $0x130] sm:$0xff]
    %v1574 = vld [vmem:[#allocation3 + $0x138] sm:$0xff]
    %v1575 = vld [vmem:[#allocation3 + $0x140] sm:$0xff]
    %v1576 = vld [vmem:[#allocation3 + $0x148] sm:$0xff]
    %v1577 = vld [vmem:[#allocation3 + $0x150] sm:$0xff]
    %v1578 = vld [vmem:[#allocation3 + $0x158] sm:$0xff]
    %v1579 = vld [vmem:[#allocation3 + $0x160] sm:$0xff]
    %v1580 = vld [vmem:[#allocation3 + $0x168] sm:$0xff]
    %v1581 = vld [vmem:[#allocation3 + $0x170] sm:$0xff]
    %v1582 = vld [vmem:[#allocation3 + $0x178] sm:$0xff]
    %v1583 = vld [vmem:[#allocation3 + $0x180] sm:$0xff]
    %v1584 = vld [vmem:[#allocation3 + $0x188] sm:$0xff]
    %v1585 = vld [vmem:[#allocation3 + $0x190] sm:$0xff]
    %v1586 = vld [vmem:[#allocation3 + $0x198] sm:$0xff]
    %v1587 = vld [vmem:[#allocation3 + $0x1a0] sm:$0xff]
    %v1588 = vld [vmem:[#allocation3 + $0x1a8] sm:$0xff]
    %v1589 = vld [vmem:[#allocation3 + $0x1b0] sm:$0xff]
    %v1590 = vld [vmem:[#allocation3 + $0x1b8] sm:$0xff]
    %v1591 = vld [vmem:[#allocation3 + $0x1c0] sm:$0xff]
    %v1592 = vld [vmem:[#allocation3 + $0x1c8] sm:$0xff]
    %v1593 = vld [vmem:[#allocation3 + $0x1d0] sm:$0xff]
    %v1594 = vld [vmem:[#allocation3 + $0x1d8] sm:$0xff]
    %v1595 = vld [vmem:[#allocation3 + $0x1e0] sm:$0xff]
    %v1596 = vld [vmem:[#allocation3 + $0x1e8] sm:$0xff]
    %v1597 = vld [vmem:[#allocation3 + $0x1f0] sm:$0xff]
    %v1598 = vld [vmem:[#allocation3 + $0x1f8] sm:$0xff]
    %v1599 = vld [vmem:[#allocation3 + $0x200] sm:$0xff]
    %v1600 = vld [vmem:[#allocation3 + $0x208] sm:$0xff]
    %v1601 = vld [vmem:[#allocation3 + $0x210] sm:$0xff]
    %v1602 = vld [vmem:[#allocation3 + $0x218] sm:$0xff]
    %v1603 = vld [vmem:[#allocation3 + $0x220] sm:$0xff]
    %v1604 = vld [vmem:[#allocation3 + $0x228] sm:$0xff]
    %v1605 = vld [vmem:[#allocation3 + $0x230] sm:$0xff]
    %v1606 = vld [vmem:[#allocation3 + $0x238] sm:$0xff]
    %v1607 = vld [vmem:[#allocation3 + $0x240] sm:$0xff]
    %v1608 = vld [vmem:[#allocation3 + $0x248] sm:$0xff]
    %v1609 = vld [vmem:[#allocation3 + $0x250] sm:$0xff]
    %v1610 = vld [vmem:[#allocation3 + $0x258] sm:$0xff]
    %v1611 = vld [vmem:[#allocation3 + $0x260] sm:$0xff]
    %v1612 = vld [vmem:[#allocation3 + $0x268] sm:$0xff]
    %v1613 = vld [vmem:[#allocation3 + $0x270] sm:$0xff]
    %v1614 = vld [vmem:[#allocation3 + $0x278] sm:$0xff]
    %v1615 = vld [vmem:[#allocation3 + $0x280] sm:$0xff]
    %v1616 = vld [vmem:[#allocation3 + $0x288] sm:$0xff]
    %v1617 = vld [vmem:[#allocation3 + $0x290] sm:$0xff]
    %v1618 = vld [vmem:[#allocation3 + $0x298] sm:$0xff]
    %v1619 = vld [vmem:[#allocation3 + $0x2a0] sm:$0xff]
    %v1620 = vld [vmem:[#allocation3 + $0x2a8] sm:$0xff]
    %v1621 = vld [vmem:[#allocation3 + $0x2b0] sm:$0xff]
    %v1622 = vld [vmem:[#allocation3 + $0x2b8] sm:$0xff]
    %v1623 = vld [vmem:[#allocation3 + $0x2c0] sm:$0xff]
    %v1624 = vld [vmem:[#allocation3 + $0x2c8] sm:$0xff]
    %v1625 = vld [vmem:[#allocation3 + $0x2d0] sm:$0xff]
    %v1626 = vld [vmem:[#allocation3 + $0x2d8] sm:$0xff]
    %v1627 = vld [vmem:[#allocation3 + $0x2e0] sm:$0xff]
    %v1628 = vld [vmem:[#allocation3 + $0x2e8] sm:$0xff]
    %v1629 = vld [vmem:[#allocation3 + $0x2f0] sm:$0xff]
    %v1630 = vld [vmem:[#allocation3 + $0x2f8] sm:$0xff]
    %v1631 = vld [vmem:[#allocation3 + $0x300] sm:$0xff]
    %v1632 = vld [vmem:[#allocation3 + $0x308] sm:$0xff]
    %v1633 = vld [vmem:[#allocation3 + $0x310] sm:$0xff]
    %v1634 = vld [vmem:[#allocation3 + $0x318] sm:$0xff]
    %v1635 = vld [vmem:[#allocation3 + $0x320] sm:$0xff]
    %v1636 = vld [vmem:[#allocation3 + $0x328] sm:$0xff]
    %v1637 = vld [vmem:[#allocation3 + $0x330] sm:$0xff]
    %v1638 = vld [vmem:[#allocation3 + $0x338] sm:$0xff]
    %v1639 = vld [vmem:[#allocation3 + $0x340] sm:$0xff]
    %v1640 = vld [vmem:[#allocation3 + $0x348] sm:$0xff]
    %v1641 = vld [vmem:[#allocation3 + $0x350] sm:$0xff]
    %v1642 = vld [vmem:[#allocation3 + $0x358] sm:$0xff]
    %v1643 = vld [vmem:[#allocation3 + $0x360] sm:$0xff]
    %v1644 = vld [vmem:[#allocation3 + $0x368] sm:$0xff]
    %v1645 = vld [vmem:[#allocation3 + $0x370] sm:$0xff]
    %v1646 = vld [vmem:[#allocation3 + $0x378] sm:$0xff]
    %v1647 = vld [vmem:[#allocation3 + $0x380] sm:$0xff]
    %v1648 = vld [vmem:[#allocation3 + $0x388] sm:$0xff]
    %v1649 = vld [vmem:[#allocation3 + $0x390] sm:$0xff]
    %v1650 = vld [vmem:[#allocation3 + $0x398] sm:$0xff]
    %v1651 = vld [vmem:[#allocation3 + $0x3a0] sm:$0xff]
    %v1652 = vld [vmem:[#allocation3 + $0x3a8] sm:$0xff]
    %v1653 = vld [vmem:[#allocation3 + $0x3b0] sm:$0xff]
    %v1654 = vld [vmem:[#allocation3 + $0x3b8] sm:$0xff]
    %v1655 = vld [vmem:[#allocation3 + $0x3c0] sm:$0xff]
    %v1656 = vld [vmem:[#allocation3 + $0x3c8] sm:$0xff]
    %v1657 = vld [vmem:[#allocation3 + $0x3d0] sm:$0xff]
    %v1658 = vld [vmem:[#allocation3 + $0x3d8] sm:$0xff]
    %v1659 = vld [vmem:[#allocation3 + $0x3e0] sm:$0xff]
    %v1660 = vld [vmem:[#allocation3 + $0x3e8] sm:$0xff]
    %v1661 = vld [vmem:[#allocation3 + $0x3f0] sm:$0xff]
    %v1662 = vld [vmem:[#allocation3 + $0x3f8] sm:$0xff]
    %v1663 = vld [vmem:[#allocation3 + $0x400] sm:$0xff]
    %v1664 = vld [vmem:[#allocation3 + $0x408] sm:$0xff]
    %v1665 = vld [vmem:[#allocation3 + $0x410] sm:$0xff]
    %v1666 = vld [vmem:[#allocation3 + $0x418] sm:$0xff]
    %v1667 = vld [vmem:[#allocation3 + $0x420] sm:$0xff]
    %v1668 = vld [vmem:[#allocation3 + $0x428] sm:$0xff]
    %v1669 = vld [vmem:[#allocation3 + $0x430] sm:$0xff]
    %v1670 = vld [vmem:[#allocation3 + $0x438] sm:$0xff]
    %v1671 = vld [vmem:[#allocation3 + $0x440] sm:$0xff]
    %v1672 = vld [vmem:[#allocation3 + $0x448] sm:$0xff]
    %v1673 = vld [vmem:[#allocation3 + $0x450] sm:$0xff]
    %v1674 = vld [vmem:[#allocation3 + $0x458] sm:$0xff]
    %v1675 = vld [vmem:[#allocation3 + $0x460] sm:$0xff]
    %v1676 = vld [vmem:[#allocation3 + $0x468] sm:$0xff]
    %v1677 = vld [vmem:[#allocation3 + $0x470] sm:$0xff]
    %v1678 = vld [vmem:[#allocation3 + $0x478] sm:$0xff]
    %v1679 = vld [vmem:[#allocation3 + $0x480] sm:$0xff]
    %v1680 = vld [vmem:[#allocation3 + $0x488] sm:$0xff]
    %v1681 = vld [vmem:[#allocation3 + $0x490] sm:$0xff]
    %v1682 = vld [vmem:[#allocation3 + $0x498] sm:$0xff]
    %v1683 = vld [vmem:[#allocation3 + $0x4a0] sm:$0xff]
    %v1684 = vld [vmem:[#allocation3 + $0x4a8] sm:$0xff]
    %v1685 = vld [vmem:[#allocation3 + $0x4b0] sm:$0xff]
    %v1686 = vld [vmem:[#allocation3 + $0x4b8] sm:$0xff]
    %v1687 = vld [vmem:[#allocation3 + $0x4c0] sm:$0xff]
    %v1688 = vld [vmem:[#allocation3 + $0x4c8] sm:$0xff]
    %v1689 = vld [vmem:[#allocation3 + $0x4d0] sm:$0xff]
    %v1690 = vld [vmem:[#allocation3 + $0x4d8] sm:$0xff]
    %v1691 = vld [vmem:[#allocation3 + $0x4e0] sm:$0xff]
    %v1692 = vld [vmem:[#allocation3 + $0x4e8] sm:$0xff]
    %v1693 = vld [vmem:[#allocation3 + $0x4f0] sm:$0xff]
    %v1694 = vld [vmem:[#allocation3 + $0x4f8] sm:$0xff]
    %v1695 = vld [vmem:[#allocation3 + $0x500] sm:$0xff]
    %v1696 = vld [vmem:[#allocation3 + $0x508] sm:$0xff]
    %v1697 = vld [vmem:[#allocation3 + $0x510] sm:$0xff]
    %v1698 = vld [vmem:[#allocation3 + $0x518] sm:$0xff]
    %v1699 = vld [vmem:[#allocation3 + $0x520] sm:$0xff]
    %v1700 = vld [vmem:[#allocation3 + $0x528] sm:$0xff]
    %v1701 = vld [vmem:[#allocation3 + $0x530] sm:$0xff]
    %v1702 = vld [vmem:[#allocation3 + $0x538] sm:$0xff]
    %v1703 = vld [vmem:[#allocation3 + $0x540] sm:$0xff]
    %v1704 = vld [vmem:[#allocation3 + $0x548] sm:$0xff]
    %v1705 = vld [vmem:[#allocation3 + $0x550] sm:$0xff]
    %v1706 = vld [vmem:[#allocation3 + $0x558] sm:$0xff]
    %v1707 = vld [vmem:[#allocation3 + $0x560] sm:$0xff]
    %v1708 = vld [vmem:[#allocation3 + $0x568] sm:$0xff]
    %v1709 = vld [vmem:[#allocation3 + $0x570] sm:$0xff]
    %v1710 = vld [vmem:[#allocation3 + $0x578] sm:$0xff]
    %v1711 = vld [vmem:[#allocation3 + $0x580] sm:$0xff]
    %v1712 = vld [vmem:[#allocation3 + $0x588] sm:$0xff]
    %v1713 = vld [vmem:[#allocation3 + $0x590] sm:$0xff]
    %v1714 = vld [vmem:[#allocation3 + $0x598] sm:$0xff]
    %v1715 = vld [vmem:[#allocation3 + $0x5a0] sm:$0xff]
    %v1716 = vld [vmem:[#allocation3 + $0x5a8] sm:$0xff]
    %v1717 = vld [vmem:[#allocation3 + $0x5b0] sm:$0xff]
    %v1718 = vld [vmem:[#allocation3 + $0x5b8] sm:$0xff]
    %v1719 = vld [vmem:[#allocation3 + $0x5c0] sm:$0xff]
    %v1720 = vld [vmem:[#allocation3 + $0x5c8] sm:$0xff]
    %v1721 = vld [vmem:[#allocation3 + $0x5d0] sm:$0xff]
    %v1722 = vld [vmem:[#allocation3 + $0x5d8] sm:$0xff]
    %v1723 = vld [vmem:[#allocation3 + $0x5e0] sm:$0xff]
    %v1724 = vld [vmem:[#allocation3 + $0x5e8] sm:$0xff]
    %v1725 = vld [vmem:[#allocation3 + $0x5f0] sm:$0xff]
    %v1726 = vld [vmem:[#allocation3 + $0x5f8] sm:$0xff]
    %v1727 = vld [vmem:[#allocation3 + $0x600] sm:$0xff]
    %v1728 = vld [vmem:[#allocation3 + $0x608] sm:$0xff]
    %v1729 = vld [vmem:[#allocation3 + $0x610] sm:$0xff]
    %v1730 = vld [vmem:[#allocation3 + $0x618] sm:$0xff]
    %v1731 = vld [vmem:[#allocation3 + $0x620] sm:$0xff]
    %v1732 = vld [vmem:[#allocation3 + $0x628] sm:$0xff]
    %v1733 = vld [vmem:[#allocation3 + $0x630] sm:$0xff]
    %v1734 = vld [vmem:[#allocation3 + $0x638] sm:$0xff]
    %v1735 = vld [vmem:[#allocation3 + $0x640] sm:$0xff]
    %v1736 = vld [vmem:[#allocation3 + $0x648] sm:$0xff]
    %v1737 = vld [vmem:[#allocation3 + $0x650] sm:$0xff]
    %v1738 = vld [vmem:[#allocation3 + $0x658] sm:$0xff]
    %v1739 = vld [vmem:[#allocation3 + $0x660] sm:$0xff]
    %v1740 = vld [vmem:[#allocation3 + $0x668] sm:$0xff]
    %v1741 = vld [vmem:[#allocation3 + $0x670] sm:$0xff]
    %v1742 = vld [vmem:[#allocation3 + $0x678] sm:$0xff]
    %v1743 = vld [vmem:[#allocation3 + $0x680] sm:$0xff]
    %v1744 = vld [vmem:[#allocation3 + $0x688] sm:$0xff]
    %v1745 = vld [vmem:[#allocation3 + $0x690] sm:$0xff]
    %v1746 = vld [vmem:[#allocation3 + $0x698] sm:$0xff]
    %v1747 = vld [vmem:[#allocation3 + $0x6a0] sm:$0xff]
    %v1748 = vld [vmem:[#allocation3 + $0x6a8] sm:$0xff]
    %v1749 = vld [vmem:[#allocation3 + $0x6b0] sm:$0xff]
    %v1750 = vld [vmem:[#allocation3 + $0x6b8] sm:$0xff]
    %v1751 = vld [vmem:[#allocation3 + $0x6c0] sm:$0xff]
    %v1752 = vld [vmem:[#allocation3 + $0x6c8] sm:$0xff]
    %v1753 = vld [vmem:[#allocation3 + $0x6d0] sm:$0xff]
    %v1754 = vld [vmem:[#allocation3 + $0x6d8] sm:$0xff]
    %v1755 = vld [vmem:[#allocation3 + $0x6e0] sm:$0xff]
    %v1756 = vld [vmem:[#allocation3 + $0x6e8] sm:$0xff]
    %v1757 = vld [vmem:[#allocation3 + $0x6f0] sm:$0xff]
    %v1758 = vld [vmem:[#allocation3 + $0x6f8] sm:$0xff]
    %v1759 = vld [vmem:[#allocation3 + $0x700] sm:$0xff]
    %v1760 = vld [vmem:[#allocation3 + $0x708] sm:$0xff]
    %v1761 = vld [vmem:[#allocation3 + $0x710] sm:$0xff]
    %v1762 = vld [vmem:[#allocation3 + $0x718] sm:$0xff]
    %v1763 = vld [vmem:[#allocation3 + $0x720] sm:$0xff]
    %v1764 = vld [vmem:[#allocation3 + $0x728] sm:$0xff]
    %v1765 = vld [vmem:[#allocation3 + $0x730] sm:$0xff]
    %v1766 = vld [vmem:[#allocation3 + $0x738] sm:$0xff]
    %v1767 = vld [vmem:[#allocation3 + $0x740] sm:$0xff]
    %v1768 = vld [vmem:[#allocation3 + $0x748] sm:$0xff]
    %v1769 = vld [vmem:[#allocation3 + $0x750] sm:$0xff]
    %v1770 = vld [vmem:[#allocation3 + $0x758] sm:$0xff]
    %v1771 = vld [vmem:[#allocation3 + $0x760] sm:$0xff]
    %v1772 = vld [vmem:[#allocation3 + $0x768] sm:$0xff]
    %v1773 = vld [vmem:[#allocation3 + $0x770] sm:$0xff]
    %v1774 = vld [vmem:[#allocation3 + $0x778] sm:$0xff]
    %v1775 = vld [vmem:[#allocation3 + $0x780] sm:$0xff]
    %v1776 = vld [vmem:[#allocation3 + $0x788] sm:$0xff]
    %v1777 = vld [vmem:[#allocation3 + $0x790] sm:$0xff]
    %v1778 = vld [vmem:[#allocation3 + $0x798] sm:$0xff]
    %v1779 = vld [vmem:[#allocation3 + $0x7a0] sm:$0xff]
    %v1780 = vld [vmem:[#allocation3 + $0x7a8] sm:$0xff]
    %v1781 = vld [vmem:[#allocation3 + $0x7b0] sm:$0xff]
    %v1782 = vld [vmem:[#allocation3 + $0x7b8] sm:$0xff]
    %v1783 = vld [vmem:[#allocation3 + $0x7c0] sm:$0xff]
    %v1784 = vld [vmem:[#allocation3 + $0x7c8] sm:$0xff]
    %v1785 = vld [vmem:[#allocation3 + $0x7d0] sm:$0xff]
    %v1786 = vld [vmem:[#allocation3 + $0x7d8] sm:$0xff]
    %v1787 = vld [vmem:[#allocation3 + $0x7e0] sm:$0xff]
    %v1788 = vld [vmem:[#allocation3 + $0x7e8] sm:$0xff]
    %v1789 = vld [vmem:[#allocation3 + $0x7f0] sm:$0xff]
    %v1790 = vld [vmem:[#allocation3 + $0x7f8] sm:$0xff]
    %v1791 = vld [vmem:[#allocation16] sm:$0xf]
    %v1793 = vlaneseq
    %v1794 = vshrl.u32 %v1793, 7
    %v1795 = vsub.s32 0, %v1794
    %v1796 = vrot.slane %v1791, %v1795
    %v1797 = vlaneseq
    %v1798 = vshrl.u32 %v1797, 7
    %v1799 = vsub.s32 1, %v1798
    %v1800 = vrot.slane %v1791, %v1799
    %v1801 = vlaneseq
    %v1802 = vshrl.u32 %v1801, 7
    %v1803 = vsub.s32 2, %v1802
    %v1804 = vrot.slane %v1791, %v1803
    %v1805 = vlaneseq
    %v1806 = vshrl.u32 %v1805, 7
    %v1807 = vsub.s32 3, %v1806
    %v1808 = vrot.slane %v1791, %v1807
    %1813 = vmatprep.subr.bf16.mxu0 %v1536
    %1814 = vmatpush1.bf16.msra.mxu0 %v1535
    %1815 = vmatprep.subr.bf16.mxu0 %v1540
    %1816 = vmatpush1.bf16.msra.mxu0 %v1539
    %1817 = vmatprep.subr.bf16.mxu0 %v1544
    %1818 = vmatpush1.bf16.msra.mxu0 %v1543
    %1819 = vmatprep.subr.bf16.mxu0 %v1548
    %1820 = vmatpush1.bf16.msra.mxu0 %v1547
    %1821 = vmatprep.subr.bf16.mxu0 %v1552
    %1822 = vmatpush1.bf16.msra.mxu0 %v1551
    %1823 = vmatprep.subr.bf16.mxu0 %v1556
    %1824 = vmatpush1.bf16.msra.mxu0 %v1555
    %1825 = vmatprep.subr.bf16.mxu0 %v1560
    %1826 = vmatpush1.bf16.msra.mxu0 %v1559
    %1827 = vmatprep.subr.bf16.mxu0 %v1564
    %1828 = vmatpush1.bf16.msra.mxu0 %v1563
    %1829 = vmatprep.subr.bf16.mxu0 %v1568
    %1830 = vmatpush1.bf16.msra.mxu0 %v1567
    %1831 = vmatprep.subr.bf16.mxu0 %v1572
    %1832 = vmatpush1.bf16.msra.mxu0 %v1571
    %1833 = vmatprep.subr.bf16.mxu0 %v1576
    %1834 = vmatpush1.bf16.msra.mxu0 %v1575
    %1835 = vmatprep.subr.bf16.mxu0 %v1580
    %1836 = vmatpush1.bf16.msra.mxu0 %v1579
    %1837 = vmatprep.subr.bf16.mxu0 %v1584
    %1838 = vmatpush1.bf16.msra.mxu0 %v1583
    %1839 = vmatprep.subr.bf16.mxu0 %v1588
    %1840 = vmatpush1.bf16.msra.mxu0 %v1587
    %1841 = vmatprep.subr.bf16.mxu0 %v1592
    %1842 = vmatpush1.bf16.msra.mxu0 %v1591
    %1843 = vmatprep.subr.bf16.mxu0 %v1596
    %1844 = vmatpush1.bf16.msra.mxu0 %v1595
    %1845 = vmatprep.mubr.bf16.mxu0 %v1524
    %1846 = vmatmul.mubr.bf16.gmra.mrb[0].mxu0 %v1523
    %v1847 = vpop.f32.mrb[0].mxu0
    %v1848 = vadd.f32 %v1796, %v1847
    %v1849 = vpop.f32.mrb[0].mxu0
    %v1850 = vadd.f32 %v1800, %v1849
    %v1851 = vpop.f32.mrb[0].mxu0
    %v1852 = vpop.f32.mrb[0].mxu0
    %1853 = vdwg.mxu0
    %1854 = vmatprep.subr.bf16.mxu0 %v1600
    %1855 = vmatpush1.bf16.msra.mxu0 %v1599
    %1856 = vmatprep.subr.bf16.mxu0 %v1604
    %1857 = vmatpush1.bf16.msra.mxu0 %v1603
    %1858 = vmatprep.subr.bf16.mxu0 %v1608
    %1859 = vmatpush1.bf16.msra.mxu0 %v1607
    %1860 = vmatprep.subr.bf16.mxu0 %v1612
    %1861 = vmatpush1.bf16.msra.mxu0 %v1611
    %1862 = vmatprep.subr.bf16.mxu0 %v1616
    %1863 = vmatpush1.bf16.msra.mxu0 %v1615
    %1864 = vmatprep.subr.bf16.mxu0 %v1620
    %1865 = vmatpush1.bf16.msra.mxu0 %v1619
    %1866 = vmatprep.subr.bf16.mxu0 %v1624
    %1867 = vmatpush1.bf16.msra.mxu0 %v1623
    %1868 = vmatprep.subr.bf16.mxu0 %v1628
    %1869 = vmatpush1.bf16.msra.mxu0 %v1627
    %1870 = vmatprep.subr.bf16.mxu0 %v1632
    %1871 = vmatpush1.bf16.msra.mxu0 %v1631
    %1872 = vmatprep.subr.bf16.mxu0 %v1636
    %1873 = vmatpush1.bf16.msra.mxu0 %v1635
    %1874 = vmatprep.subr.bf16.mxu0 %v1640
    %1875 = vmatpush1.bf16.msra.mxu0 %v1639
    %1876 = vmatprep.subr.bf16.mxu0 %v1644
    %1877 = vmatpush1.bf16.msra.mxu0 %v1643
    %1878 = vmatprep.subr.bf16.mxu0 %v1648
    %1879 = vmatpush1.bf16.msra.mxu0 %v1647
    %1880 = vmatprep.subr.bf16.mxu0 %v1652
    %1881 = vmatpush1.bf16.msra.mxu0 %v1651
    %1882 = vmatprep.subr.bf16.mxu0 %v1656
    %1883 = vmatpush1.bf16.msra.mxu0 %v1655
    %1884 = vmatprep.subr.bf16.mxu0 %v1660
    %1885 = vmatpush1.bf16.msra.mxu0 %v1659
    %1886 = vmatprep.mubr.bf16.mxu0 %v1526
    %1887 = vmatmul.mubr.bf16.gmra.mrb[0].mxu0 %v1525
    %v1888 = vpop.f32.mrb[0].mxu0
    %v1889 = vadd.f32 %v1848, %v1888
    %v1890 = vpop.f32.mrb[0].mxu0
    %v1891 = vadd.f32 %v1850, %v1890
    %v1892 = vpop.f32.mrb[0].mxu0
    %v1893 = vpop.f32.mrb[0].mxu0
    %1894 = vdwg.mxu0
    %1895 = vmatprep.subr.bf16.mxu0 %v1664
    %1896 = vmatpush1.bf16.msra.mxu0 %v1663
    %1897 = vmatprep.subr.bf16.mxu0 %v1668
    %1898 = vmatpush1.bf16.msra.mxu0 %v1667
    %1899 = vmatprep.subr.bf16.mxu0 %v1672
    %1900 = vmatpush1.bf16.msra.mxu0 %v1671
    %1901 = vmatprep.subr.bf16.mxu0 %v1676
    %1902 = vmatpush1.bf16.msra.mxu0 %v1675
    %1903 = vmatprep.subr.bf16.mxu0 %v1680
    %1904 = vmatpush1.bf16.msra.mxu0 %v1679
    %1905 = vmatprep.subr.bf16.mxu0 %v1684
    %1906 = vmatpush1.bf16.msra.mxu0 %v1683
    %1907 = vmatprep.subr.bf16.mxu0 %v1688
    %1908 = vmatpush1.bf16.msra.mxu0 %v1687
    %1909 = vmatprep.subr.bf16.mxu0 %v1692
    %1910 = vmatpush1.bf16.msra.mxu0 %v1691
    %1911 = vmatprep.subr.bf16.mxu0 %v1696
    %1912 = vmatpush1.bf16.msra.mxu0 %v1695
    %1913 = vmatprep.subr.bf16.mxu0 %v1700
    %1914 = vmatpush1.bf16.msra.mxu0 %v1699
    %1915 = vmatprep.subr.bf16.mxu0 %v1704
    %1916 = vmatpush1.bf16.msra.mxu0 %v1703
    %1917 = vmatprep.subr.bf16.mxu0 %v1708
    %1918 = vmatpush1.bf16.msra.mxu0 %v1707
    %1919 = vmatprep.subr.bf16.mxu0 %v1712
    %1920 = vmatpush1.bf16.msra.mxu0 %v1711
    %1921 = vmatprep.subr.bf16.mxu0 %v1716
    %1922 = vmatpush1.bf16.msra.mxu0 %v1715
    %1923 = vmatprep.subr.bf16.mxu0 %v1720
    %1924 = vmatpush1.bf16.msra.mxu0 %v1719
    %1925 = vmatprep.subr.bf16.mxu0 %v1724
    %1926 = vmatpush1.bf16.msra.mxu0 %v1723
    %1927 = vmatprep.mubr.bf16.mxu0 %v1528
    %1928 = vmatmul.mubr.bf16.gmra.mrb[0].mxu0 %v1527
    %v1929 = vpop.f32.mrb[0].mxu0
    %v1930 = vadd.f32 %v1889, %v1929
    %v1931 = vpop.f32.mrb[0].mxu0
    %v1932 = vadd.f32 %v1891, %v1931
    %v1933 = vpop.f32.mrb[0].mxu0
    %v1934 = vpop.f32.mrb[0].mxu0
    %1935 = vdwg.mxu0
    %1936 = vmatprep.subr.bf16.mxu0 %v1728
    %1937 = vmatpush1.bf16.msra.mxu0 %v1727
    %1938 = vmatprep.subr.bf16.mxu0 %v1732
    %1939 = vmatpush1.bf16.msra.mxu0 %v1731
    %1940 = vmatprep.subr.bf16.mxu0 %v1736
    %1941 = vmatpush1.bf16.msra.mxu0 %v1735
    %1942 = vmatprep.subr.bf16.mxu0 %v1740
    %1943 = vmatpush1.bf16.msra.mxu0 %v1739
    %1944 = vmatprep.subr.bf16.mxu0 %v1744
    %1945 = vmatpush1.bf16.msra.mxu0 %v1743
    %1946 = vmatprep.subr.bf16.mxu0 %v1748
    %1947 = vmatpush1.bf16.msra.mxu0 %v1747
    %1948 = vmatprep.subr.bf16.mxu0 %v1752
    %1949 = vmatpush1.bf16.msra.mxu0 %v1751
    %1950 = vmatprep.subr.bf16.mxu0 %v1756
    %1951 = vmatpush1.bf16.msra.mxu0 %v1755
    %1952 = vmatprep.subr.bf16.mxu0 %v1760
    %1953 = vmatpush1.bf16.msra.mxu0 %v1759
    %1954 = vmatprep.subr.bf16.mxu0 %v1764
    %1955 = vmatpush1.bf16.msra.mxu0 %v1763
    %1956 = vmatprep.subr.bf16.mxu0 %v1768
    %1957 = vmatpush1.bf16.msra.mxu0 %v1767
    %1958 = vmatprep.subr.bf16.mxu0 %v1772
    %1959 = vmatpush1.bf16.msra.mxu0 %v1771
    %1960 = vmatprep.subr.bf16.mxu0 %v1776
    %1961 = vmatpush1.bf16.msra.mxu0 %v1775
    %1962 = vmatprep.subr.bf16.mxu0 %v1780
    %1963 = vmatpush1.bf16.msra.mxu0 %v1779
    %1964 = vmatprep.subr.bf16.mxu0 %v1784
    %1965 = vmatpush1.bf16.msra.mxu0 %v1783
    %1966 = vmatprep.subr.bf16.mxu0 %v1788
    %1967 = vmatpush1.bf16.msra.mxu0 %v1787
    %1968 = vmatprep.mubr.bf16.mxu0 %v1530
    %1969 = vmatmul.mubr.bf16.gmra.mrb[0].mxu0 %v1529
    %v1970 = vpop.f32.mrb[0].mxu0
    %v1971 = vadd.f32 %v1930, %v1970
    %v1972 = vpop.f32.mrb[0].mxu0
    %v1973 = vadd.f32 %v1932, %v1972
    %v1974 = vpop.f32.mrb[0].mxu0
    %v1975 = vpop.f32.mrb[0].mxu0
    %1976 = vdwg.mxu0
    %1977 = vmatprep.subr.bf16.mxu0 %v1538
    %1978 = vmatpush1.bf16.msra.mxu0 %v1537
    %1979 = vmatprep.subr.bf16.mxu0 %v1542
    %1980 = vmatpush1.bf16.msra.mxu0 %v1541
    %1981 = vmatprep.subr.bf16.mxu0 %v1546
    %1982 = vmatpush1.bf16.msra.mxu0 %v1545
    %1983 = vmatprep.subr.bf16.mxu0 %v1550
    %1984 = vmatpush1.bf16.msra.mxu0 %v1549
    %1985 = vmatprep.subr.bf16.mxu0 %v1554
    %1986 = vmatpush1.bf16.msra.mxu0 %v1553
    %1987 = vmatprep.subr.bf16.mxu0 %v1558
    %1988 = vmatpush1.bf16.msra.mxu0 %v1557
    %1989 = vmatprep.subr.bf16.mxu0 %v1562
    %1990 = vmatpush1.bf16.msra.mxu0 %v1561
    %1991 = vmatprep.subr.bf16.mxu0 %v1566
    %1992 = vmatpush1.bf16.msra.mxu0 %v1565
    %1993 = vmatprep.subr.bf16.mxu0 %v1570
    %1994 = vmatpush1.bf16.msra.mxu0 %v1569
    %1995 = vmatprep.subr.bf16.mxu0 %v1574
    %1996 = vmatpush1.bf16.msra.mxu0 %v1573
    %1997 = vmatprep.subr.bf16.mxu0 %v1578
    %1998 = vmatpush1.bf16.msra.mxu0 %v1577
    %1999 = vmatprep.subr.bf16.mxu0 %v1582
    %2000 = vmatpush1.bf16.msra.mxu0 %v1581
    %2001 = vmatprep.subr.bf16.mxu0 %v1586
    %2002 = vmatpush1.bf16.msra.mxu0 %v1585
    %2003 = vmatprep.subr.bf16.mxu0 %v1590
    %2004 = vmatpush1.bf16.msra.mxu0 %v1589
    %2005 = vmatprep.subr.bf16.mxu0 %v1594
    %2006 = vmatpush1.bf16.msra.mxu0 %v1593
    %2007 = vmatprep.subr.bf16.mxu0 %v1598
    %2008 = vmatpush1.bf16.msra.mxu0 %v1597
    %2009 = vmatprep.mubr.bf16.mxu0 %v1524
    %2010 = vmatmul.mubr.bf16.gmra.mrb[0].mxu0 %v1523
    %v2011 = vpop.f32.mrb[0].mxu0
    %v2012 = vadd.f32 %v1804, %v2011
    %v2013 = vpop.f32.mrb[0].mxu0
    %v2014 = vadd.f32 %v1808, %v2013
    %v2015 = vpop.f32.mrb[0].mxu0
    %v2016 = vpop.f32.mrb[0].mxu0
    %2017 = vdwg.mxu0
    %2018 = vmatprep.subr.bf16.mxu0 %v1602
    %2019 = vmatpush1.bf16.msra.mxu0 %v1601
    %2020 = vmatprep.subr.bf16.mxu0 %v1606
    %2021 = vmatpush1.bf16.msra.mxu0 %v1605
    %2022 = vmatprep.subr.bf16.mxu0 %v1610
    %2023 = vmatpush1.bf16.msra.mxu0 %v1609
    %2024 = vmatprep.subr.bf16.mxu0 %v1614
    %2025 = vmatpush1.bf16.msra.mxu0 %v1613
    %2026 = vmatprep.subr.bf16.mxu0 %v1618
    %2027 = vmatpush1.bf16.msra.mxu0 %v1617
    %2028 = vmatprep.subr.bf16.mxu0 %v1622
    %2029 = vmatpush1.bf16.msra.mxu0 %v1621
    %2030 = vmatprep.subr.bf16.mxu0 %v1626
    %2031 = vmatpush1.bf16.msra.mxu0 %v1625
    %2032 = vmatprep.subr.bf16.mxu0 %v1630
    %2033 = vmatpush1.bf16.msra.mxu0 %v1629
    %2034 = vmatprep.subr.bf16.mxu0 %v1634
    %2035 = vmatpush1.bf16.msra.mxu0 %v1633
    %2036 = vmatprep.subr.bf16.mxu0 %v1638
    %2037 = vmatpush1.bf16.msra.mxu0 %v1637
    %2038 = vmatprep.subr.bf16.mxu0 %v1642
    %2039 = vmatpush1.bf16.msra.mxu0 %v1641
    %2040 = vmatprep.subr.bf16.mxu0 %v1646
    %2041 = vmatpush1.bf16.msra.mxu0 %v1645
    %2042 = vmatprep.subr.bf16.mxu0 %v1650
    %2043 = vmatpush1.bf16.msra.mxu0 %v1649
    %2044 = vmatprep.subr.bf16.mxu0 %v1654
    %2045 = vmatpush1.bf16.msra.mxu0 %v1653
    %2046 = vmatprep.subr.bf16.mxu0 %v1658
    %2047 = vmatpush1.bf16.msra.mxu0 %v1657
    %2048 = vmatprep.subr.bf16.mxu0 %v1662
    %2049 = vmatpush1.bf16.msra.mxu0 %v1661
    %2050 = vmatprep.mubr.bf16.mxu0 %v1526
    %2051 = vmatmul.mubr.bf16.gmra.mrb[0].mxu0 %v1525
    %v2052 = vpop.f32.mrb[0].mxu0
    %v2053 = vadd.f32 %v2012, %v2052
    %v2054 = vpop.f32.mrb[0].mxu0
    %v2055 = vadd.f32 %v2014, %v2054
    %v2056 = vpop.f32.mrb[0].mxu0
    %v2057 = vpop.f32.mrb[0].mxu0
    %2058 = vdwg.mxu0
    %2059 = vmatprep.subr.bf16.mxu0 %v1666
    %2060 = vmatpush1.bf16.msra.mxu0 %v1665
    %2061 = vmatprep.subr.bf16.mxu0 %v1670
    %2062 = vmatpush1.bf16.msra.mxu0 %v1669
    %2063 = vmatprep.subr.bf16.mxu0 %v1674
    %2064 = vmatpush1.bf16.msra.mxu0 %v1673
    %2065 = vmatprep.subr.bf16.mxu0 %v1678
    %2066 = vmatpush1.bf16.msra.mxu0 %v1677
    %2067 = vmatprep.subr.bf16.mxu0 %v1682
    %2068 = vmatpush1.bf16.msra.mxu0 %v1681
    %2069 = vmatprep.subr.bf16.mxu0 %v1686
    %2070 = vmatpush1.bf16.msra.mxu0 %v1685
    %2071 = vmatprep.subr.bf16.mxu0 %v1690
    %2072 = vmatpush1.bf16.msra.mxu0 %v1689
    %2073 = vmatprep.subr.bf16.mxu0 %v1694
    %2074 = vmatpush1.bf16.msra.mxu0 %v1693
    %2075 = vmatprep.subr.bf16.mxu0 %v1698
    %2076 = vmatpush1.bf16.msra.mxu0 %v1697
    %2077 = vmatprep.subr.bf16.mxu0 %v1702
    %2078 = vmatpush1.bf16.msra.mxu0 %v1701
    %2079 = vmatprep.subr.bf16.mxu0 %v1706
    %2080 = vmatpush1.bf16.msra.mxu0 %v1705
    %2081 = vmatprep.subr.bf16.mxu0 %v1710
    %2082 = vmatpush1.bf16.msra.mxu0 %v1709
    %2083 = vmatprep.subr.bf16.mxu0 %v1714
    %2084 = vmatpush1.bf16.msra.mxu0 %v1713
    %2085 = vmatprep.subr.bf16.mxu0 %v1718
    %2086 = vmatpush1.bf16.msra.mxu0 %v1717
    %2087 = vmatprep.subr.bf16.mxu0 %v1722
    %2088 = vmatpush1.bf16.msra.mxu0 %v1721
    %2089 = vmatprep.subr.bf16.mxu0 %v1726
    %2090 = vmatpush1.bf16.msra.mxu0 %v1725
    %2091 = vmatprep.mubr.bf16.mxu0 %v1528
    %2092 = vmatmul.mubr.bf16.gmra.mrb[0].mxu0 %v1527
    %v2093 = vpop.f32.mrb[0].mxu0
    %v2094 = vadd.f32 %v2053, %v2093
    %v2095 = vpop.f32.mrb[0].mxu0
    %v2096 = vadd.f32 %v2055, %v2095
    %v2097 = vpop.f32.mrb[0].mxu0
    %v2098 = vpop.f32.mrb[0].mxu0
    %2099 = vdwg.mxu0
    %2100 = vmatprep.subr.bf16.mxu0 %v1730
    %2101 = vmatpush1.bf16.msra.mxu0 %v1729
    %2102 = vmatprep.subr.bf16.mxu0 %v1734
    %2103 = vmatpush1.bf16.msra.mxu0 %v1733
    %2104 = vmatprep.subr.bf16.mxu0 %v1738
    %2105 = vmatpush1.bf16.msra.mxu0 %v1737
    %2106 = vmatprep.subr.bf16.mxu0 %v1742
    %2107 = vmatpush1.bf16.msra.mxu0 %v1741
    %2108 = vmatprep.subr.bf16.mxu0 %v1746
    %2109 = vmatpush1.bf16.msra.mxu0 %v1745
    %2110 = vmatprep.subr.bf16.mxu0 %v1750
    %2111 = vmatpush1.bf16.msra.mxu0 %v1749
    %2112 = vmatprep.subr.bf16.mxu0 %v1754
    %2113 = vmatpush1.bf16.msra.mxu0 %v1753
    %2114 = vmatprep.subr.bf16.mxu0 %v1758
    %2115 = vmatpush1.bf16.msra.mxu0 %v1757
    %2116 = vmatprep.subr.bf16.mxu0 %v1762
    %2117 = vmatpush1.bf16.msra.mxu0 %v1761
    %2118 = vmatprep.subr.bf16.mxu0 %v1766
    %2119 = vmatpush1.bf16.msra.mxu0 %v1765
    %2120 = vmatprep.subr.bf16.mxu0 %v1770
    %2121 = vmatpush1.bf16.msra.mxu0 %v1769
    %2122 = vmatprep.subr.bf16.mxu0 %v1774
    %2123 = vmatpush1.bf16.msra.mxu0 %v1773
    %2124 = vmatprep.subr.bf16.mxu0 %v1778
    %2125 = vmatpush1.bf16.msra.mxu0 %v1777
    %2126 = vmatprep.subr.bf16.mxu0 %v1782
    %2127 = vmatpush1.bf16.msra.mxu0 %v1781
    %2128 = vmatprep.subr.bf16.mxu0 %v1786
    %2129 = vmatpush1.bf16.msra.mxu0 %v1785
    %2130 = vmatprep.subr.bf16.mxu0 %v1790
    %2131 = vmatpush1.bf16.msra.mxu0 %v1789
    %2132 = vmatprep.mubr.bf16.mxu0 %v1530
    %2133 = vmatmul.mubr.bf16.gmra.mrb[0].mxu0 %v1529
    %v2134 = vpop.f32.mrb[0].mxu0
    %v2135 = vadd.f32 %v2094, %v2134
    %v2136 = vpop.f32.mrb[0].mxu0
    %v2137 = vadd.f32 %v2096, %v2136
    %v2138 = vpop.f32.mrb[0].mxu0
    %v2139 = vpop.f32.mrb[0].mxu0
    %2140 = vdwg.mxu0
    %v2141 = vmax.f32 %v1971, 0.0
    %v2142 = vmax.f32 %v1973, 0.0
    %v2143 = vmax.f32 %v2135, 0.0
    %v2144 = vmax.f32 %v2137, 0.0
    %v2145 = vpack.c.bf16 %v2141, %v2141
    %v2146 = vpack.c.bf16 %v2142, %v2142
    %v2147 = vpack.c.bf16 %v2143, %v2143
    %v2148 = vpack.c.bf16 %v2144, %v2144
    %s2149 = smul.u32 4, 64
    %s2150 = smul.u32 %s2149, 2
    %s2151 = sshll.u32 %s2150, 4
    %2152 = dma.done %s216, %s2151
    %v2153 = vld [vmem:[#allocation4] sm:$0xff]
    %v2154 = vld [vmem:[#allocation4 + $0x8] sm:$0xff]
    %v2155 = vld [vmem:[#allocation4 + $0x10] sm:$0xff]
    %v2156 = vld [vmem:[#allocation4 + $0x18] sm:$0xff]
    %v2157 = vld [vmem:[#allocation4 + $0x20] sm:$0xff]
    %v2158 = vld [vmem:[#allocation4 + $0x28] sm:$0xff]
    %v2159 = vld [vmem:[#allocation4 + $0x30] sm:$0xff]
    %v2160 = vld [vmem:[#allocation4 + $0x38] sm:$0xff]
    %v2161 = vld [vmem:[#allocation4 + $0x40] sm:$0xff]
    %v2162 = vld [vmem:[#allocation4 + $0x48] sm:$0xff]
    %v2163 = vld [vmem:[#allocation4 + $0x50] sm:$0xff]
    %v2164 = vld [vmem:[#allocation4 + $0x58] sm:$0xff]
    %v2165 = vld [vmem:[#allocation4 + $0x60] sm:$0xff]
    %v2166 = vld [vmem:[#allocation4 + $0x68] sm:$0xff]
    %v2167 = vld [vmem:[#allocation4 + $0x70] sm:$0xff]
    %v2168 = vld [vmem:[#allocation4 + $0x78] sm:$0xff]
    %v2169 = vld [vmem:[#allocation4 + $0x80] sm:$0xff]
    %v2170 = vld [vmem:[#allocation4 + $0x88] sm:$0xff]
    %v2171 = vld [vmem:[#allocation4 + $0x90] sm:$0xff]
    %v2172 = vld [vmem:[#allocation4 + $0x98] sm:$0xff]
    %v2173 = vld [vmem:[#allocation4 + $0xa0] sm:$0xff]
    %v2174 = vld [vmem:[#allocation4 + $0xa8] sm:$0xff]
    %v2175 = vld [vmem:[#allocation4 + $0xb0] sm:$0xff]
    %v2176 = vld [vmem:[#allocation4 + $0xb8] sm:$0xff]
    %v2177 = vld [vmem:[#allocation4 + $0xc0] sm:$0xff]
    %v2178 = vld [vmem:[#allocation4 + $0xc8] sm:$0xff]
    %v2179 = vld [vmem:[#allocation4 + $0xd0] sm:$0xff]
    %v2180 = vld [vmem:[#allocation4 + $0xd8] sm:$0xff]
    %v2181 = vld [vmem:[#allocation4 + $0xe0] sm:$0xff]
    %v2182 = vld [vmem:[#allocation4 + $0xe8] sm:$0xff]
    %v2183 = vld [vmem:[#allocation4 + $0xf0] sm:$0xff]
    %v2184 = vld [vmem:[#allocation4 + $0xf8] sm:$0xff]
    %v2185 = vld [vmem:[#allocation4 + $0x100] sm:$0xff]
    %v2186 = vld [vmem:[#allocation4 + $0x108] sm:$0xff]
    %v2187 = vld [vmem:[#allocation4 + $0x110] sm:$0xff]
    %v2188 = vld [vmem:[#allocation4 + $0x118] sm:$0xff]
    %v2189 = vld [vmem:[#allocation4 + $0x120] sm:$0xff]
    %v2190 = vld [vmem:[#allocation4 + $0x128] sm:$0xff]
    %v2191 = vld [vmem:[#allocation4 + $0x130] sm:$0xff]
    %v2192 = vld [vmem:[#allocation4 + $0x138] sm:$0xff]
    %v2193 = vld [vmem:[#allocation4 + $0x140] sm:$0xff]
    %v2194 = vld [vmem:[#allocation4 + $0x148] sm:$0xff]
    %v2195 = vld [vmem:[#allocation4 + $0x150] sm:$0xff]
    %v2196 = vld [vmem:[#allocation4 + $0x158] sm:$0xff]
    %v2197 = vld [vmem:[#allocation4 + $0x160] sm:$0xff]
    %v2198 = vld [vmem:[#allocation4 + $0x168] sm:$0xff]
    %v2199 = vld [vmem:[#allocation4 + $0x170] sm:$0xff]
    %v2200 = vld [vmem:[#allocation4 + $0x178] sm:$0xff]
    %v2201 = vld [vmem:[#allocation4 + $0x180] sm:$0xff]
    %v2202 = vld [vmem:[#allocation4 + $0x188] sm:$0xff]
    %v2203 = vld [vmem:[#allocation4 + $0x190] sm:$0xff]
    %v2204 = vld [vmem:[#allocation4 + $0x198] sm:$0xff]
    %v2205 = vld [vmem:[#allocation4 + $0x1a0] sm:$0xff]
    %v2206 = vld [vmem:[#allocation4 + $0x1a8] sm:$0xff]
    %v2207 = vld [vmem:[#allocation4 + $0x1b0] sm:$0xff]
    %v2208 = vld [vmem:[#allocation4 + $0x1b8] sm:$0xff]
    %v2209 = vld [vmem:[#allocation4 + $0x1c0] sm:$0xff]
    %v2210 = vld [vmem:[#allocation4 + $0x1c8] sm:$0xff]
    %v2211 = vld [vmem:[#allocation4 + $0x1d0] sm:$0xff]
    %v2212 = vld [vmem:[#allocation4 + $0x1d8] sm:$0xff]
    %v2213 = vld [vmem:[#allocation4 + $0x1e0] sm:$0xff]
    %v2214 = vld [vmem:[#allocation4 + $0x1e8] sm:$0xff]
    %v2215 = vld [vmem:[#allocation4 + $0x1f0] sm:$0xff]
    %v2216 = vld [vmem:[#allocation4 + $0x1f8] sm:$0xff]
    %v2217 = vld [vmem:[#allocation17] sm:$0x3]
    %v2219 = vlaneseq
    %v2220 = vshrl.u32 %v2219, 7
    %v2221 = vsub.s32 0, %v2220
    %v2222 = vrot.slane %v2217, %v2221
    %v2223 = vlaneseq
    %v2224 = vshrl.u32 %v2223, 7
    %v2225 = vsub.s32 1, %v2224
    %v2226 = vrot.slane %v2217, %v2225
    %2229 = vmatprep.subr.bf16.mxu0 %v2154
    %2230 = vmatpush1.bf16.msra.mxu0 %v2153
    %2231 = vmatprep.subr.bf16.mxu0 %v2156
    %2232 = vmatpush1.bf16.msra.mxu0 %v2155
    %2233 = vmatprep.subr.bf16.mxu0 %v2158
    %2234 = vmatpush1.bf16.msra.mxu0 %v2157
    %2235 = vmatprep.subr.bf16.mxu0 %v2160
    %2236 = vmatpush1.bf16.msra.mxu0 %v2159
    %2237 = vmatprep.subr.bf16.mxu0 %v2162
    %2238 = vmatpush1.bf16.msra.mxu0 %v2161
    %2239 = vmatprep.subr.bf16.mxu0 %v2164
    %2240 = vmatpush1.bf16.msra.mxu0 %v2163
    %2241 = vmatprep.subr.bf16.mxu0 %v2166
    %2242 = vmatpush1.bf16.msra.mxu0 %v2165
    %2243 = vmatprep.subr.bf16.mxu0 %v2168
    %2244 = vmatpush1.bf16.msra.mxu0 %v2167
    %2245 = vmatprep.subr.bf16.mxu0 %v2170
    %2246 = vmatpush1.bf16.msra.mxu0 %v2169
    %2247 = vmatprep.subr.bf16.mxu0 %v2172
    %2248 = vmatpush1.bf16.msra.mxu0 %v2171
    %2249 = vmatprep.subr.bf16.mxu0 %v2174
    %2250 = vmatpush1.bf16.msra.mxu0 %v2173
    %2251 = vmatprep.subr.bf16.mxu0 %v2176
    %2252 = vmatpush1.bf16.msra.mxu0 %v2175
    %2253 = vmatprep.subr.bf16.mxu0 %v2178
    %2254 = vmatpush1.bf16.msra.mxu0 %v2177
    %2255 = vmatprep.subr.bf16.mxu0 %v2180
    %2256 = vmatpush1.bf16.msra.mxu0 %v2179
    %2257 = vmatprep.subr.bf16.mxu0 %v2182
    %2258 = vmatpush1.bf16.msra.mxu0 %v2181
    %2259 = vmatprep.subr.bf16.mxu0 %v2184
    %2260 = vmatpush1.bf16.msra.mxu0 %v2183
    %2261 = vmatprep.mubr.bf16.mxu0 %v2146
    %2262 = vmatmul.mubr.bf16.gmra.mrb[0].mxu0 %v2145
    %v2263 = vpop.f32.mrb[0].mxu0
    %v2264 = vadd.f32 %v2222, %v2263
    %v2265 = vpop.f32.mrb[0].mxu0
    %v2266 = vadd.f32 %v2226, %v2265
    %v2267 = vpop.f32.mrb[0].mxu0
    %v2268 = vpop.f32.mrb[0].mxu0
    %2269 = vdwg.mxu0
    %2270 = vmatprep.subr.bf16.mxu0 %v2186
    %2271 = vmatpush1.bf16.msra.mxu0 %v2185
    %2272 = vmatprep.subr.bf16.mxu0 %v2188
    %2273 = vmatpush1.bf16.msra.mxu0 %v2187
    %2274 = vmatprep.subr.bf16.mxu0 %v2190
    %2275 = vmatpush1.bf16.msra.mxu0 %v2189
    %2276 = vmatprep.subr.bf16.mxu0 %v2192
    %2277 = vmatpush1.bf16.msra.mxu0 %v2191
    %2278 = vmatprep.subr.bf16.mxu0 %v2194
    %2279 = vmatpush1.bf16.msra.mxu0 %v2193
    %2280 = vmatprep.subr.bf16.mxu0 %v2196
    %2281 = vmatpush1.bf16.msra.mxu0 %v2195
    %2282 = vmatprep.subr.bf16.mxu0 %v2198
    %2283 = vmatpush1.bf16.msra.mxu0 %v2197
    %2284 = vmatprep.subr.bf16.mxu0 %v2200
    %2285 = vmatpush1.bf16.msra.mxu0 %v2199
    %2286 = vmatprep.subr.bf16.mxu0 %v2202
    %2287 = vmatpush1.bf16.msra.mxu0 %v2201
    %2288 = vmatprep.subr.bf16.mxu0 %v2204
    %2289 = vmatpush1.bf16.msra.mxu0 %v2203
    %2290 = vmatprep.subr.bf16.mxu0 %v2206
    %2291 = vmatpush1.bf16.msra.mxu0 %v2205
    %2292 = vmatprep.subr.bf16.mxu0 %v2208
    %2293 = vmatpush1.bf16.msra.mxu0 %v2207
    %2294 = vmatprep.subr.bf16.mxu0 %v2210
    %2295 = vmatpush1.bf16.msra.mxu0 %v2209
    %2296 = vmatprep.subr.bf16.mxu0 %v2212
    %2297 = vmatpush1.bf16.msra.mxu0 %v2211
    %2298 = vmatprep.subr.bf16.mxu0 %v2214
    %2299 = vmatpush1.bf16.msra.mxu0 %v2213
    %2300 = vmatprep.subr.bf16.mxu0 %v2216
    %2301 = vmatpush1.bf16.msra.mxu0 %v2215
    %2302 = vmatprep.mubr.bf16.mxu0 %v2148
    %2303 = vmatmul.mubr.bf16.gmra.mrb[0].mxu0 %v2147
    %v2304 = vpop.f32.mrb[0].mxu0
    %v2305 = vadd.f32 %v2264, %v2304
    %v2306 = vpop.f32.mrb[0].mxu0
    %v2307 = vadd.f32 %v2266, %v2306
    %v2308 = vpop.f32.mrb[0].mxu0
    %v2309 = vpop.f32.mrb[0].mxu0
    %2310 = vdwg.mxu0
    %v2311 = vmax.f32 %v2305, 0.0
    %v2312 = vmax.f32 %v2307, 0.0
    %v2313 = vpack.c.bf16 %v2311, %v2311
    %v2314 = vpack.c.bf16 %v2312, %v2312
    %s2315 = smul.u32 4, 32
    %s2316 = smul.u32 %s2315, 1
    %s2317 = sshll.u32 %s2316, 4
    %2318 = dma.done %s251, %s2317
    %v2319 = vld [vmem:[#allocation5] sm:$0xff]
    %v2320 = vld [vmem:[#allocation5 + $0x8] sm:$0xff]
    %v2321 = vld [vmem:[#allocation5 + $0x10] sm:$0xff]
    %v2322 = vld [vmem:[#allocation5 + $0x18] sm:$0xff]
    %v2323 = vld [vmem:[#allocation5 + $0x20] sm:$0xff]
    %v2324 = vld [vmem:[#allocation5 + $0x28] sm:$0xff]
    %v2325 = vld [vmem:[#allocation5 + $0x30] sm:$0xff]
    %v2326 = vld [vmem:[#allocation5 + $0x38] sm:$0xff]
    %v2327 = vld [vmem:[#allocation5 + $0x40] sm:$0xff]
    %v2328 = vld [vmem:[#allocation5 + $0x48] sm:$0xff]
    %v2329 = vld [vmem:[#allocation5 + $0x50] sm:$0xff]
    %v2330 = vld [vmem:[#allocation5 + $0x58] sm:$0xff]
    %v2331 = vld [vmem:[#allocation5 + $0x60] sm:$0xff]
    %v2332 = vld [vmem:[#allocation5 + $0x68] sm:$0xff]
    %v2333 = vld [vmem:[#allocation5 + $0x70] sm:$0xff]
    %v2334 = vld [vmem:[#allocation5 + $0x78] sm:$0xff]
    %v2335 = vld [vmem:[#allocation19] sm:$0x1]
    %v2337 = vlaneseq
    %v2338 = vshrl.u32 %v2337, 7
    %v2339 = vsub.s32 0, %v2338
    %v2340 = vrot.slane %v2335, %v2339
    %2342 = vmatprep.subr.bf16.mxu0 0
    %2343 = vmatpush1.bf16.msra.mxu0 %v2319
    %2344 = vmatprep.subr.bf16.mxu0 0
    %2345 = vmatpush1.bf16.msra.mxu0 %v2320
    %2346 = vmatprep.subr.bf16.mxu0 0
    %2347 = vmatpush1.bf16.msra.mxu0 %v2321
    %2348 = vmatprep.subr.bf16.mxu0 0
    %2349 = vmatpush1.bf16.msra.mxu0 %v2322
    %2350 = vmatprep.subr.bf16.mxu0 0
    %2351 = vmatpush1.bf16.msra.mxu0 %v2323
    %2352 = vmatprep.subr.bf16.mxu0 0
    %2353 = vmatpush1.bf16.msra.mxu0 %v2324
    %2354 = vmatprep.subr.bf16.mxu0 0
    %2355 = vmatpush1.bf16.msra.mxu0 %v2325
    %2356 = vmatprep.subr.bf16.mxu0 0
    %2357 = vmatpush1.bf16.msra.mxu0 %v2326
    %2358 = vmatprep.subr.bf16.mxu0 0
    %2359 = vmatpush1.bf16.msra.mxu0 %v2327
    %2360 = vmatprep.subr.bf16.mxu0 0
    %2361 = vmatpush1.bf16.msra.mxu0 %v2328
    %2362 = vmatprep.subr.bf16.mxu0 0
    %2363 = vmatpush1.bf16.msra.mxu0 %v2329
    %2364 = vmatprep.subr.bf16.mxu0 0
    %2365 = vmatpush1.bf16.msra.mxu0 %v2330
    %2366 = vmatprep.subr.bf16.mxu0 0
    %2367 = vmatpush1.bf16.msra.mxu0 %v2331
    %2368 = vmatprep.subr.bf16.mxu0 0
    %2369 = vmatpush1.bf16.msra.mxu0 %v2332
    %2370 = vmatprep.subr.bf16.mxu0 0
    %2371 = vmatpush1.bf16.msra.mxu0 %v2333
    %2372 = vmatprep.subr.bf16.mxu0 0
    %2373 = vmatpush1.bf16.msra.mxu0 %v2334
    %2374 = vmatprep.mubr.bf16.mxu0 %v2314
    %2375 = vmatmul.mubr.bf16.gmra.mrb[0].mxu0 %v2313
    %v2376 = vpop.f32.mrb[0].mxu0
    %v2377 = vadd.f32 %v2340, %v2376
    %v2378 = vpop.f32.mrb[0].mxu0
    %v2379 = vpop.f32.mrb[0].mxu0
    %v2380 = vpop.f32.mrb[0].mxu0
    %2381 = vdwg.mxu0
    %v2382 = vmax.f32 %v2377, 0.0
    %v2383 = vpack.c.bf16 %v2382, %v2382
    %s2384 = smul.u32 4, 16
    %s2385 = smul.u32 %s2384, 2
    %s2386 = sshll.u32 %s2385, 4
    %2387 = dma.done %s263, %s2386
    %v2388 = vld [vmem:[#allocation6] sm:$0xff]
    %v2389 = vld [vmem:[#allocation6 + $0x8] sm:$0xff]
    %v2390 = vld [vmem:[#allocation6 + $0x10] sm:$0xff]
    %v2391 = vld [vmem:[#allocation6 + $0x18] sm:$0xff]
    %v2392 = vld [vmem:[#allocation6 + $0x20] sm:$0xff]
    %v2393 = vld [vmem:[#allocation6 + $0x28] sm:$0xff]
    %v2394 = vld [vmem:[#allocation6 + $0x30] sm:$0xff]
    %v2395 = vld [vmem:[#allocation6 + $0x38] sm:$0xff]
    %v2396 = vld [vmem:[#allocation6 + $0x40] sm:$0xff]
    %v2397 = vld [vmem:[#allocation6 + $0x48] sm:$0xff]
    %v2398 = vld [vmem:[#allocation6 + $0x50] sm:$0xff]
    %v2399 = vld [vmem:[#allocation6 + $0x58] sm:$0xff]
    %v2400 = vld [vmem:[#allocation6 + $0x60] sm:$0xff]
    %v2401 = vld [vmem:[#allocation6 + $0x68] sm:$0xff]
    %v2402 = vld [vmem:[#allocation6 + $0x70] sm:$0xff]
    %v2403 = vld [vmem:[#allocation6 + $0x78] sm:$0xff]
    %v2404 = vld [vmem:[#allocation20] sm:$0x3]
    %v2406 = vlaneseq
    %v2407 = vshrl.u32 %v2406, 7
    %v2408 = vsub.s32 0, %v2407
    %v2409 = vrot.slane %v2404, %v2408
    %v2410 = vlaneseq
    %v2411 = vshrl.u32 %v2410, 7
    %v2412 = vsub.s32 1, %v2411
    %v2413 = vrot.slane %v2404, %v2412
    %2416 = vmatprep.subr.bf16.mxu0 %v2389
    %2417 = vmatpush1.bf16.msra.mxu0 %v2388
    %2418 = vmatprep.subr.bf16.mxu0 %v2391
    %2419 = vmatpush1.bf16.msra.mxu0 %v2390
    %2420 = vmatprep.subr.bf16.mxu0 %v2393
    %2421 = vmatpush1.bf16.msra.mxu0 %v2392
    %2422 = vmatprep.subr.bf16.mxu0 %v2395
    %2423 = vmatpush1.bf16.msra.mxu0 %v2394
    %2424 = vmatprep.subr.bf16.mxu0 %v2397
    %2425 = vmatpush1.bf16.msra.mxu0 %v2396
    %2426 = vmatprep.subr.bf16.mxu0 %v2399
    %2427 = vmatpush1.bf16.msra.mxu0 %v2398
    %2428 = vmatprep.subr.bf16.mxu0 %v2401
    %2429 = vmatpush1.bf16.msra.mxu0 %v2400
    %2430 = vmatprep.subr.bf16.mxu0 %v2403
    %2431 = vmatpush1.bf16.msra.mxu0 %v2402
    %2432 = vmatprep.subr.bf16.mxu0 0
    %2433 = vmatpush1.bf16.msra.mxu0 0
    %2434 = vmatprep.subr.bf16.mxu0 0
    %2435 = vmatpush1.bf16.msra.mxu0 0
    %2436 = vmatprep.subr.bf16.mxu0 0
    %2437 = vmatpush1.bf16.msra.mxu0 0
    %2438 = vmatprep.subr.bf16.mxu0 0
    %2439 = vmatpush1.bf16.msra.mxu0 0
    %2440 = vmatprep.subr.bf16.mxu0 0
    %2441 = vmatpush1.bf16.msra.mxu0 0
    %2442 = vmatprep.subr.bf16.mxu0 0
    %2443 = vmatpush1.bf16.msra.mxu0 0
    %2444 = vmatprep.subr.bf16.mxu0 0
    %2445 = vmatpush1.bf16.msra.mxu0 0
    %2446 = vmatprep.subr.bf16.mxu0 0
    %2447 = vmatpush1.bf16.msra.mxu0 0
    %2448 = vmatprep.mubr.bf16.mxu0 0
    %2449 = vmatmul.mubr.bf16.gmra.mrb[0].mxu0 %v2383
    %v2450 = vpop.f32.mrb[0].mxu0
    %v2451 = vadd.f32 %v2409, %v2450
    %v2452 = vpop.f32.mrb[0].mxu0
    %v2453 = vadd.f32 %v2413, %v2452
    %v2454 = vpop.f32.mrb[0].mxu0
    %v2455 = vpop.f32.mrb[0].mxu0
    %2456 = vdwg.mxu0
    %v2457 = vmax.f32 %v2451, 0.0
    %v2458 = vmax.f32 %v2453, 0.0
    %v2459 = vpack.c.bf16 %v2457, %v2457
    %v2460 = vpack.c.bf16 %v2458, %v2458
    %s2461 = smul.u32 %s2315, 4
    %s2462 = sshll.u32 %s2461, 4
    %2463 = dma.done %s298, %s2462
    %v2464 = vld [vmem:[#allocation7] sm:$0xff]
    %v2465 = vld [vmem:[#allocation7 + $0x8] sm:$0xff]
    %v2466 = vld [vmem:[#allocation7 + $0x10] sm:$0xff]
    %v2467 = vld [vmem:[#allocation7 + $0x18] sm:$0xff]
    %v2468 = vld [vmem:[#allocation7 + $0x20] sm:$0xff]
    %v2469 = vld [vmem:[#allocation7 + $0x28] sm:$0xff]
    %v2470 = vld [vmem:[#allocation7 + $0x30] sm:$0xff]
    %v2471 = vld [vmem:[#allocation7 + $0x38] sm:$0xff]
    %v2472 = vld [vmem:[#allocation7 + $0x40] sm:$0xff]
    %v2473 = vld [vmem:[#allocation7 + $0x48] sm:$0xff]
    %v2474 = vld [vmem:[#allocation7 + $0x50] sm:$0xff]
    %v2475 = vld [vmem:[#allocation7 + $0x58] sm:$0xff]
    %v2476 = vld [vmem:[#allocation7 + $0x60] sm:$0xff]
    %v2477 = vld [vmem:[#allocation7 + $0x68] sm:$0xff]
    %v2478 = vld [vmem:[#allocation7 + $0x70] sm:$0xff]
    %v2479 = vld [vmem:[#allocation7 + $0x78] sm:$0xff]
    %v2480 = vld [vmem:[#allocation7 + $0x80] sm:$0xff]
    %v2481 = vld [vmem:[#allocation7 + $0x88] sm:$0xff]
    %v2482 = vld [vmem:[#allocation7 + $0x90] sm:$0xff]
    %v2483 = vld [vmem:[#allocation7 + $0x98] sm:$0xff]
    %v2484 = vld [vmem:[#allocation7 + $0xa0] sm:$0xff]
    %v2485 = vld [vmem:[#allocation7 + $0xa8] sm:$0xff]
    %v2486 = vld [vmem:[#allocation7 + $0xb0] sm:$0xff]
    %v2487 = vld [vmem:[#allocation7 + $0xb8] sm:$0xff]
    %v2488 = vld [vmem:[#allocation7 + $0xc0] sm:$0xff]
    %v2489 = vld [vmem:[#allocation7 + $0xc8] sm:$0xff]
    %v2490 = vld [vmem:[#allocation7 + $0xd0] sm:$0xff]
    %v2491 = vld [vmem:[#allocation7 + $0xd8] sm:$0xff]
    %v2492 = vld [vmem:[#allocation7 + $0xe0] sm:$0xff]
    %v2493 = vld [vmem:[#allocation7 + $0xe8] sm:$0xff]
    %v2494 = vld [vmem:[#allocation7 + $0xf0] sm:$0xff]
    %v2495 = vld [vmem:[#allocation7 + $0xf8] sm:$0xff]
    %v2496 = vld [vmem:[#allocation7 + $0x100] sm:$0xff]
    %v2497 = vld [vmem:[#allocation7 + $0x108] sm:$0xff]
    %v2498 = vld [vmem:[#allocation7 + $0x110] sm:$0xff]
    %v2499 = vld [vmem:[#allocation7 + $0x118] sm:$0xff]
    %v2500 = vld [vmem:[#allocation7 + $0x120] sm:$0xff]
    %v2501 = vld [vmem:[#allocation7 + $0x128] sm:$0xff]
    %v2502 = vld [vmem:[#allocation7 + $0x130] sm:$0xff]
    %v2503 = vld [vmem:[#allocation7 + $0x138] sm:$0xff]
    %v2504 = vld [vmem:[#allocation7 + $0x140] sm:$0xff]
    %v2505 = vld [vmem:[#allocation7 + $0x148] sm:$0xff]
    %v2506 = vld [vmem:[#allocation7 + $0x150] sm:$0xff]
    %v2507 = vld [vmem:[#allocation7 + $0x158] sm:$0xff]
    %v2508 = vld [vmem:[#allocation7 + $0x160] sm:$0xff]
    %v2509 = vld [vmem:[#allocation7 + $0x168] sm:$0xff]
    %v2510 = vld [vmem:[#allocation7 + $0x170] sm:$0xff]
    %v2511 = vld [vmem:[#allocation7 + $0x178] sm:$0xff]
    %v2512 = vld [vmem:[#allocation7 + $0x180] sm:$0xff]
    %v2513 = vld [vmem:[#allocation7 + $0x188] sm:$0xff]
    %v2514 = vld [vmem:[#allocation7 + $0x190] sm:$0xff]
    %v2515 = vld [vmem:[#allocation7 + $0x198] sm:$0xff]
    %v2516 = vld [vmem:[#allocation7 + $0x1a0] sm:$0xff]
    %v2517 = vld [vmem:[#allocation7 + $0x1a8] sm:$0xff]
    %v2518 = vld [vmem:[#allocation7 + $0x1b0] sm:$0xff]
    %v2519 = vld [vmem:[#allocation7 + $0x1b8] sm:$0xff]
    %v2520 = vld [vmem:[#allocation7 + $0x1c0] sm:$0xff]
    %v2521 = vld [vmem:[#allocation7 + $0x1c8] sm:$0xff]
    %v2522 = vld [vmem:[#allocation7 + $0x1d0] sm:$0xff]
    %v2523 = vld [vmem:[#allocation7 + $0x1d8] sm:$0xff]
    %v2524 = vld [vmem:[#allocation7 + $0x1e0] sm:$0xff]
    %v2525 = vld [vmem:[#allocation7 + $0x1e8] sm:$0xff]
    %v2526 = vld [vmem:[#allocation7 + $0x1f0] sm:$0xff]
    %v2527 = vld [vmem:[#allocation7 + $0x1f8] sm:$0xff]
    %v2528 = vld [vmem:[#allocation22] sm:$0xf]
    %v2530 = vlaneseq
    %v2531 = vshrl.u32 %v2530, 7
    %v2532 = vsub.s32 0, %v2531
    %v2533 = vrot.slane %v2528, %v2532
    %v2534 = vlaneseq
    %v2535 = vshrl.u32 %v2534, 7
    %v2536 = vsub.s32 1, %v2535
    %v2537 = vrot.slane %v2528, %v2536
    %v2538 = vlaneseq
    %v2539 = vshrl.u32 %v2538, 7
    %v2540 = vsub.s32 2, %v2539
    %v2541 = vrot.slane %v2528, %v2540
    %v2542 = vlaneseq
    %v2543 = vshrl.u32 %v2542, 7
    %v2544 = vsub.s32 3, %v2543
    %v2545 = vrot.slane %v2528, %v2544
    %2550 = vmatprep.subr.bf16.mxu0 %v2465
    %2551 = vmatpush1.bf16.msra.mxu0 %v2464
    %2552 = vmatprep.subr.bf16.mxu0 %v2469
    %2553 = vmatpush1.bf16.msra.mxu0 %v2468
    %2554 = vmatprep.subr.bf16.mxu0 %v2473
    %2555 = vmatpush1.bf16.msra.mxu0 %v2472
    %2556 = vmatprep.subr.bf16.mxu0 %v2477
    %2557 = vmatpush1.bf16.msra.mxu0 %v2476
    %2558 = vmatprep.subr.bf16.mxu0 %v2481
    %2559 = vmatpush1.bf16.msra.mxu0 %v2480
    %2560 = vmatprep.subr.bf16.mxu0 %v2485
    %2561 = vmatpush1.bf16.msra.mxu0 %v2484
    %2562 = vmatprep.subr.bf16.mxu0 %v2489
    %2563 = vmatpush1.bf16.msra.mxu0 %v2488
    %2564 = vmatprep.subr.bf16.mxu0 %v2493
    %2565 = vmatpush1.bf16.msra.mxu0 %v2492
    %2566 = vmatprep.subr.bf16.mxu0 %v2497
    %2567 = vmatpush1.bf16.msra.mxu0 %v2496
    %2568 = vmatprep.subr.bf16.mxu0 %v2501
    %2569 = vmatpush1.bf16.msra.mxu0 %v2500
    %2570 = vmatprep.subr.bf16.mxu0 %v2505
    %2571 = vmatpush1.bf16.msra.mxu0 %v2504
    %2572 = vmatprep.subr.bf16.mxu0 %v2509
    %2573 = vmatpush1.bf16.msra.mxu0 %v2508
    %2574 = vmatprep.subr.bf16.mxu0 %v2513
    %2575 = vmatpush1.bf16.msra.mxu0 %v2512
    %2576 = vmatprep.subr.bf16.mxu0 %v2517
    %2577 = vmatpush1.bf16.msra.mxu0 %v2516
    %2578 = vmatprep.subr.bf16.mxu0 %v2521
    %2579 = vmatpush1.bf16.msra.mxu0 %v2520
    %2580 = vmatprep.subr.bf16.mxu0 %v2525
    %2581 = vmatpush1.bf16.msra.mxu0 %v2524
    %2582 = vmatprep.mubr.bf16.mxu0 %v2460
    %2583 = vmatmul.mubr.bf16.gmra.mrb[0].mxu0 %v2459
    %v2584 = vpop.f32.mrb[0].mxu0
    %v2585 = vadd.f32 %v2533, %v2584
    %v2586 = vpop.f32.mrb[0].mxu0
    %v2587 = vadd.f32 %v2537, %v2586
    %v2588 = vpop.f32.mrb[0].mxu0
    %v2589 = vpop.f32.mrb[0].mxu0
    %2590 = vdwg.mxu0
    %2591 = vmatprep.subr.bf16.mxu0 %v2467
    %2592 = vmatpush1.bf16.msra.mxu0 %v2466
    %2593 = vmatprep.subr.bf16.mxu0 %v2471
    %2594 = vmatpush1.bf16.msra.mxu0 %v2470
    %2595 = vmatprep.subr.bf16.mxu0 %v2475
    %2596 = vmatpush1.bf16.msra.mxu0 %v2474
    %2597 = vmatprep.subr.bf16.mxu0 %v2479
    %2598 = vmatpush1.bf16.msra.mxu0 %v2478
    %2599 = vmatprep.subr.bf16.mxu0 %v2483
    %2600 = vmatpush1.bf16.msra.mxu0 %v2482
    %2601 = vmatprep.subr.bf16.mxu0 %v2487
    %2602 = vmatpush1.bf16.msra.mxu0 %v2486
    %2603 = vmatprep.subr.bf16.mxu0 %v2491
    %2604 = vmatpush1.bf16.msra.mxu0 %v2490
    %2605 = vmatprep.subr.bf16.mxu0 %v2495
    %2606 = vmatpush1.bf16.msra.mxu0 %v2494
    %2607 = vmatprep.subr.bf16.mxu0 %v2499
    %2608 = vmatpush1.bf16.msra.mxu0 %v2498
    %2609 = vmatprep.subr.bf16.mxu0 %v2503
    %2610 = vmatpush1.bf16.msra.mxu0 %v2502
    %2611 = vmatprep.subr.bf16.mxu0 %v2507
    %2612 = vmatpush1.bf16.msra.mxu0 %v2506
    %2613 = vmatprep.subr.bf16.mxu0 %v2511
    %2614 = vmatpush1.bf16.msra.mxu0 %v2510
    %2615 = vmatprep.subr.bf16.mxu0 %v2515
    %2616 = vmatpush1.bf16.msra.mxu0 %v2514
    %2617 = vmatprep.subr.bf16.mxu0 %v2519
    %2618 = vmatpush1.bf16.msra.mxu0 %v2518
    %2619 = vmatprep.subr.bf16.mxu0 %v2523
    %2620 = vmatpush1.bf16.msra.mxu0 %v2522
    %2621 = vmatprep.subr.bf16.mxu0 %v2527
    %2622 = vmatpush1.bf16.msra.mxu0 %v2526
    %2623 = vmatprep.mubr.bf16.mxu0 %v2460
    %2624 = vmatmul.mubr.bf16.gmra.mrb[0].mxu0 %v2459
    %v2625 = vpop.f32.mrb[0].mxu0
    %v2626 = vadd.f32 %v2541, %v2625
    %v2627 = vpop.f32.mrb[0].mxu0
    %v2628 = vadd.f32 %v2545, %v2627
    %v2629 = vpop.f32.mrb[0].mxu0
    %v2630 = vpop.f32.mrb[0].mxu0
    %2631 = vdwg.mxu0
    %v2632 = vmax.f32 %v2585, 0.0
    %v2633 = vmax.f32 %v2587, 0.0
    %v2634 = vmax.f32 %v2626, 0.0
    %v2635 = vmax.f32 %v2628, 0.0
    %v2636 = vpack.c.bf16 %v2632, %v2632
    %v2637 = vpack.c.bf16 %v2633, %v2633
    %v2638 = vpack.c.bf16 %v2634, %v2634
    %v2639 = vpack.c.bf16 %v2635, %v2635
    %s2640 = smul.u32 %s2149, 8
    %s2641 = sshll.u32 %s2640, 4
    %2642 = dma.done %s333, %s2641
    %v2643 = vld [vmem:[#allocation8] sm:$0xff]
    %v2644 = vld [vmem:[#allocation8 + $0x8] sm:$0xff]
    %v2645 = vld [vmem:[#allocation8 + $0x10] sm:$0xff]
    %v2646 = vld [vmem:[#allocation8 + $0x18] sm:$0xff]
    %v2647 = vld [vmem:[#allocation8 + $0x20] sm:$0xff]
    %v2648 = vld [vmem:[#allocation8 + $0x28] sm:$0xff]
    %v2649 = vld [vmem:[#allocation8 + $0x30] sm:$0xff]
    %v2650 = vld [vmem:[#allocation8 + $0x38] sm:$0xff]
    %v2651 = vld [vmem:[#allocation8 + $0x40] sm:$0xff]
    %v2652 = vld [vmem:[#allocation8 + $0x48] sm:$0xff]
    %v2653 = vld [vmem:[#allocation8 + $0x50] sm:$0xff]
    %v2654 = vld [vmem:[#allocation8 + $0x58] sm:$0xff]
    %v2655 = vld [vmem:[#allocation8 + $0x60] sm:$0xff]
    %v2656 = vld [vmem:[#allocation8 + $0x68] sm:$0xff]
    %v2657 = vld [vmem:[#allocation8 + $0x70] sm:$0xff]
    %v2658 = vld [vmem:[#allocation8 + $0x78] sm:$0xff]
    %v2659 = vld [vmem:[#allocation8 + $0x80] sm:$0xff]
    %v2660 = vld [vmem:[#allocation8 + $0x88] sm:$0xff]
    %v2661 = vld [vmem:[#allocation8 + $0x90] sm:$0xff]
    %v2662 = vld [vmem:[#allocation8 + $0x98] sm:$0xff]
    %v2663 = vld [vmem:[#allocation8 + $0xa0] sm:$0xff]
    %v2664 = vld [vmem:[#allocation8 + $0xa8] sm:$0xff]
    %v2665 = vld [vmem:[#allocation8 + $0xb0] sm:$0xff]
    %v2666 = vld [vmem:[#allocation8 + $0xb8] sm:$0xff]
    %v2667 = vld [vmem:[#allocation8 + $0xc0] sm:$0xff]
    %v2668 = vld [vmem:[#allocation8 + $0xc8] sm:$0xff]
    %v2669 = vld [vmem:[#allocation8 + $0xd0] sm:$0xff]
    %v2670 = vld [vmem:[#allocation8 + $0xd8] sm:$0xff]
    %v2671 = vld [vmem:[#allocation8 + $0xe0] sm:$0xff]
    %v2672 = vld [vmem:[#allocation8 + $0xe8] sm:$0xff]
    %v2673 = vld [vmem:[#allocation8 + $0xf0] sm:$0xff]
    %v2674 = vld [vmem:[#allocation8 + $0xf8] sm:$0xff]
    %v2675 = vld [vmem:[#allocation8 + $0x100] sm:$0xff]
    %v2676 = vld [vmem:[#allocation8 + $0x108] sm:$0xff]
    %v2677 = vld [vmem:[#allocation8 + $0x110] sm:$0xff]
    %v2678 = vld [vmem:[#allocation8 + $0x118] sm:$0xff]
    %v2679 = vld [vmem:[#allocation8 + $0x120] sm:$0xff]
    %v2680 = vld [vmem:[#allocation8 + $0x128] sm:$0xff]
    %v2681 = vld [vmem:[#allocation8 + $0x130] sm:$0xff]
    %v2682 = vld [vmem:[#allocation8 + $0x138] sm:$0xff]
    %v2683 = vld [vmem:[#allocation8 + $0x140] sm:$0xff]
    %v2684 = vld [vmem:[#allocation8 + $0x148] sm:$0xff]
    %v2685 = vld [vmem:[#allocation8 + $0x150] sm:$0xff]
    %v2686 = vld [vmem:[#allocation8 + $0x158] sm:$0xff]
    %v2687 = vld [vmem:[#allocation8 + $0x160] sm:$0xff]
    %v2688 = vld [vmem:[#allocation8 + $0x168] sm:$0xff]
    %v2689 = vld [vmem:[#allocation8 + $0x170] sm:$0xff]
    %v2690 = vld [vmem:[#allocation8 + $0x178] sm:$0xff]
    %v2691 = vld [vmem:[#allocation8 + $0x180] sm:$0xff]
    %v2692 = vld [vmem:[#allocation8 + $0x188] sm:$0xff]
    %v2693 = vld [vmem:[#allocation8 + $0x190] sm:$0xff]
    %v2694 = vld [vmem:[#allocation8 + $0x198] sm:$0xff]
    %v2695 = vld [vmem:[#allocation8 + $0x1a0] sm:$0xff]
    %v2696 = vld [vmem:[#allocation8 + $0x1a8] sm:$0xff]
    %v2697 = vld [vmem:[#allocation8 + $0x1b0] sm:$0xff]
    %v2698 = vld [vmem:[#allocation8 + $0x1b8] sm:$0xff]
    %v2699 = vld [vmem:[#allocation8 + $0x1c0] sm:$0xff]
    %v2700 = vld [vmem:[#allocation8 + $0x1c8] sm:$0xff]
    %v2701 = vld [vmem:[#allocation8 + $0x1d0] sm:$0xff]
    %v2702 = vld [vmem:[#allocation8 + $0x1d8] sm:$0xff]
    %v2703 = vld [vmem:[#allocation8 + $0x1e0] sm:$0xff]
    %v2704 = vld [vmem:[#allocation8 + $0x1e8] sm:$0xff]
    %v2705 = vld [vmem:[#allocation8 + $0x1f0] sm:$0xff]
    %v2706 = vld [vmem:[#allocation8 + $0x1f8] sm:$0xff]
    %v2707 = vld [vmem:[#allocation8 + $0x200] sm:$0xff]
    %v2708 = vld [vmem:[#allocation8 + $0x208] sm:$0xff]
    %v2709 = vld [vmem:[#allocation8 + $0x210] sm:$0xff]
    %v2710 = vld [vmem:[#allocation8 + $0x218] sm:$0xff]
    %v2711 = vld [vmem:[#allocation8 + $0x220] sm:$0xff]
    %v2712 = vld [vmem:[#allocation8 + $0x228] sm:$0xff]
    %v2713 = vld [vmem:[#allocation8 + $0x230] sm:$0xff]
    %v2714 = vld [vmem:[#allocation8 + $0x238] sm:$0xff]
    %v2715 = vld [vmem:[#allocation8 + $0x240] sm:$0xff]
    %v2716 = vld [vmem:[#allocation8 + $0x248] sm:$0xff]
    %v2717 = vld [vmem:[#allocation8 + $0x250] sm:$0xff]
    %v2718 = vld [vmem:[#allocation8 + $0x258] sm:$0xff]
    %v2719 = vld [vmem:[#allocation8 + $0x260] sm:$0xff]
    %v2720 = vld [vmem:[#allocation8 + $0x268] sm:$0xff]
    %v2721 = vld [vmem:[#allocation8 + $0x270] sm:$0xff]
    %v2722 = vld [vmem:[#allocation8 + $0x278] sm:$0xff]
    %v2723 = vld [vmem:[#allocation8 + $0x280] sm:$0xff]
    %v2724 = vld [vmem:[#allocation8 + $0x288] sm:$0xff]
    %v2725 = vld [vmem:[#allocation8 + $0x290] sm:$0xff]
    %v2726 = vld [vmem:[#allocation8 + $0x298] sm:$0xff]
    %v2727 = vld [vmem:[#allocation8 + $0x2a0] sm:$0xff]
    %v2728 = vld [vmem:[#allocation8 + $0x2a8] sm:$0xff]
    %v2729 = vld [vmem:[#allocation8 + $0x2b0] sm:$0xff]
    %v2730 = vld [vmem:[#allocation8 + $0x2b8] sm:$0xff]
    %v2731 = vld [vmem:[#allocation8 + $0x2c0] sm:$0xff]
    %v2732 = vld [vmem:[#allocation8 + $0x2c8] sm:$0xff]
    %v2733 = vld [vmem:[#allocation8 + $0x2d0] sm:$0xff]
    %v2734 = vld [vmem:[#allocation8 + $0x2d8] sm:$0xff]
    %v2735 = vld [vmem:[#allocation8 + $0x2e0] sm:$0xff]
    %v2736 = vld [vmem:[#allocation8 + $0x2e8] sm:$0xff]
    %v2737 = vld [vmem:[#allocation8 + $0x2f0] sm:$0xff]
    %v2738 = vld [vmem:[#allocation8 + $0x2f8] sm:$0xff]
    %v2739 = vld [vmem:[#allocation8 + $0x300] sm:$0xff]
    %v2740 = vld [vmem:[#allocation8 + $0x308] sm:$0xff]
    %v2741 = vld [vmem:[#allocation8 + $0x310] sm:$0xff]
    %v2742 = vld [vmem:[#allocation8 + $0x318] sm:$0xff]
    %v2743 = vld [vmem:[#allocation8 + $0x320] sm:$0xff]
    %v2744 = vld [vmem:[#allocation8 + $0x328] sm:$0xff]
    %v2745 = vld [vmem:[#allocation8 + $0x330] sm:$0xff]
    %v2746 = vld [vmem:[#allocation8 + $0x338] sm:$0xff]
    %v2747 = vld [vmem:[#allocation8 + $0x340] sm:$0xff]
    %v2748 = vld [vmem:[#allocation8 + $0x348] sm:$0xff]
    %v2749 = vld [vmem:[#allocation8 + $0x350] sm:$0xff]
    %v2750 = vld [vmem:[#allocation8 + $0x358] sm:$0xff]
    %v2751 = vld [vmem:[#allocation8 + $0x360] sm:$0xff]
    %v2752 = vld [vmem:[#allocation8 + $0x368] sm:$0xff]
    %v2753 = vld [vmem:[#allocation8 + $0x370] sm:$0xff]
    %v2754 = vld [vmem:[#allocation8 + $0x378] sm:$0xff]
    %v2755 = vld [vmem:[#allocation8 + $0x380] sm:$0xff]
    %v2756 = vld [vmem:[#allocation8 + $0x388] sm:$0xff]
    %v2757 = vld [vmem:[#allocation8 + $0x390] sm:$0xff]
    %v2758 = vld [vmem:[#allocation8 + $0x398] sm:$0xff]
    %v2759 = vld [vmem:[#allocation8 + $0x3a0] sm:$0xff]
    %v2760 = vld [vmem:[#allocation8 + $0x3a8] sm:$0xff]
    %v2761 = vld [vmem:[#allocation8 + $0x3b0] sm:$0xff]
    %v2762 = vld [vmem:[#allocation8 + $0x3b8] sm:$0xff]
    %v2763 = vld [vmem:[#allocation8 + $0x3c0] sm:$0xff]
    %v2764 = vld [vmem:[#allocation8 + $0x3c8] sm:$0xff]
    %v2765 = vld [vmem:[#allocation8 + $0x3d0] sm:$0xff]
    %v2766 = vld [vmem:[#allocation8 + $0x3d8] sm:$0xff]
    %v2767 = vld [vmem:[#allocation8 + $0x3e0] sm:$0xff]
    %v2768 = vld [vmem:[#allocation8 + $0x3e8] sm:$0xff]
    %v2769 = vld [vmem:[#allocation8 + $0x3f0] sm:$0xff]
    %v2770 = vld [vmem:[#allocation8 + $0x3f8] sm:$0xff]
    %v2771 = vld [vmem:[#allocation8 + $0x400] sm:$0xff]
    %v2772 = vld [vmem:[#allocation8 + $0x408] sm:$0xff]
    %v2773 = vld [vmem:[#allocation8 + $0x410] sm:$0xff]
    %v2774 = vld [vmem:[#allocation8 + $0x418] sm:$0xff]
    %v2775 = vld [vmem:[#allocation8 + $0x420] sm:$0xff]
    %v2776 = vld [vmem:[#allocation8 + $0x428] sm:$0xff]
    %v2777 = vld [vmem:[#allocation8 + $0x430] sm:$0xff]
    %v2778 = vld [vmem:[#allocation8 + $0x438] sm:$0xff]
    %v2779 = vld [vmem:[#allocation8 + $0x440] sm:$0xff]
    %v2780 = vld [vmem:[#allocation8 + $0x448] sm:$0xff]
    %v2781 = vld [vmem:[#allocation8 + $0x450] sm:$0xff]
    %v2782 = vld [vmem:[#allocation8 + $0x458] sm:$0xff]
    %v2783 = vld [vmem:[#allocation8 + $0x460] sm:$0xff]
    %v2784 = vld [vmem:[#allocation8 + $0x468] sm:$0xff]
    %v2785 = vld [vmem:[#allocation8 + $0x470] sm:$0xff]
    %v2786 = vld [vmem:[#allocation8 + $0x478] sm:$0xff]
    %v2787 = vld [vmem:[#allocation8 + $0x480] sm:$0xff]
    %v2788 = vld [vmem:[#allocation8 + $0x488] sm:$0xff]
    %v2789 = vld [vmem:[#allocation8 + $0x490] sm:$0xff]
    %v2790 = vld [vmem:[#allocation8 + $0x498] sm:$0xff]
    %v2791 = vld [vmem:[#allocation8 + $0x4a0] sm:$0xff]
    %v2792 = vld [vmem:[#allocation8 + $0x4a8] sm:$0xff]
    %v2793 = vld [vmem:[#allocation8 + $0x4b0] sm:$0xff]
    %v2794 = vld [vmem:[#allocation8 + $0x4b8] sm:$0xff]
    %v2795 = vld [vmem:[#allocation8 + $0x4c0] sm:$0xff]
    %v2796 = vld [vmem:[#allocation8 + $0x4c8] sm:$0xff]
    %v2797 = vld [vmem:[#allocation8 + $0x4d0] sm:$0xff]
    %v2798 = vld [vmem:[#allocation8 + $0x4d8] sm:$0xff]
    %v2799 = vld [vmem:[#allocation8 + $0x4e0] sm:$0xff]
    %v2800 = vld [vmem:[#allocation8 + $0x4e8] sm:$0xff]
    %v2801 = vld [vmem:[#allocation8 + $0x4f0] sm:$0xff]
    %v2802 = vld [vmem:[#allocation8 + $0x4f8] sm:$0xff]
    %v2803 = vld [vmem:[#allocation8 + $0x500] sm:$0xff]
    %v2804 = vld [vmem:[#allocation8 + $0x508] sm:$0xff]
    %v2805 = vld [vmem:[#allocation8 + $0x510] sm:$0xff]
    %v2806 = vld [vmem:[#allocation8 + $0x518] sm:$0xff]
    %v2807 = vld [vmem:[#allocation8 + $0x520] sm:$0xff]
    %v2808 = vld [vmem:[#allocation8 + $0x528] sm:$0xff]
    %v2809 = vld [vmem:[#allocation8 + $0x530] sm:$0xff]
    %v2810 = vld [vmem:[#allocation8 + $0x538] sm:$0xff]
    %v2811 = vld [vmem:[#allocation8 + $0x540] sm:$0xff]
    %v2812 = vld [vmem:[#allocation8 + $0x548] sm:$0xff]
    %v2813 = vld [vmem:[#allocation8 + $0x550] sm:$0xff]
    %v2814 = vld [vmem:[#allocation8 + $0x558] sm:$0xff]
    %v2815 = vld [vmem:[#allocation8 + $0x560] sm:$0xff]
    %v2816 = vld [vmem:[#allocation8 + $0x568] sm:$0xff]
    %v2817 = vld [vmem:[#allocation8 + $0x570] sm:$0xff]
    %v2818 = vld [vmem:[#allocation8 + $0x578] sm:$0xff]
    %v2819 = vld [vmem:[#allocation8 + $0x580] sm:$0xff]
    %v2820 = vld [vmem:[#allocation8 + $0x588] sm:$0xff]
    %v2821 = vld [vmem:[#allocation8 + $0x590] sm:$0xff]
    %v2822 = vld [vmem:[#allocation8 + $0x598] sm:$0xff]
    %v2823 = vld [vmem:[#allocation8 + $0x5a0] sm:$0xff]
    %v2824 = vld [vmem:[#allocation8 + $0x5a8] sm:$0xff]
    %v2825 = vld [vmem:[#allocation8 + $0x5b0] sm:$0xff]
    %v2826 = vld [vmem:[#allocation8 + $0x5b8] sm:$0xff]
    %v2827 = vld [vmem:[#allocation8 + $0x5c0] sm:$0xff]
    %v2828 = vld [vmem:[#allocation8 + $0x5c8] sm:$0xff]
    %v2829 = vld [vmem:[#allocation8 + $0x5d0] sm:$0xff]
    %v2830 = vld [vmem:[#allocation8 + $0x5d8] sm:$0xff]
    %v2831 = vld [vmem:[#allocation8 + $0x5e0] sm:$0xff]
    %v2832 = vld [vmem:[#allocation8 + $0x5e8] sm:$0xff]
    %v2833 = vld [vmem:[#allocation8 + $0x5f0] sm:$0xff]
    %v2834 = vld [vmem:[#allocation8 + $0x5f8] sm:$0xff]
    %v2835 = vld [vmem:[#allocation8 + $0x600] sm:$0xff]
    %v2836 = vld [vmem:[#allocation8 + $0x608] sm:$0xff]
    %v2837 = vld [vmem:[#allocation8 + $0x610] sm:$0xff]
    %v2838 = vld [vmem:[#allocation8 + $0x618] sm:$0xff]
    %v2839 = vld [vmem:[#allocation8 + $0x620] sm:$0xff]
    %v2840 = vld [vmem:[#allocation8 + $0x628] sm:$0xff]
    %v2841 = vld [vmem:[#allocation8 + $0x630] sm:$0xff]
    %v2842 = vld [vmem:[#allocation8 + $0x638] sm:$0xff]
    %v2843 = vld [vmem:[#allocation8 + $0x640] sm:$0xff]
    %v2844 = vld [vmem:[#allocation8 + $0x648] sm:$0xff]
    %v2845 = vld [vmem:[#allocation8 + $0x650] sm:$0xff]
    %v2846 = vld [vmem:[#allocation8 + $0x658] sm:$0xff]
    %v2847 = vld [vmem:[#allocation8 + $0x660] sm:$0xff]
    %v2848 = vld [vmem:[#allocation8 + $0x668] sm:$0xff]
    %v2849 = vld [vmem:[#allocation8 + $0x670] sm:$0xff]
    %v2850 = vld [vmem:[#allocation8 + $0x678] sm:$0xff]
    %v2851 = vld [vmem:[#allocation8 + $0x680] sm:$0xff]
    %v2852 = vld [vmem:[#allocation8 + $0x688] sm:$0xff]
    %v2853 = vld [vmem:[#allocation8 + $0x690] sm:$0xff]
    %v2854 = vld [vmem:[#allocation8 + $0x698] sm:$0xff]
    %v2855 = vld [vmem:[#allocation8 + $0x6a0] sm:$0xff]
    %v2856 = vld [vmem:[#allocation8 + $0x6a8] sm:$0xff]
    %v2857 = vld [vmem:[#allocation8 + $0x6b0] sm:$0xff]
    %v2858 = vld [vmem:[#allocation8 + $0x6b8] sm:$0xff]
    %v2859 = vld [vmem:[#allocation8 + $0x6c0] sm:$0xff]
    %v2860 = vld [vmem:[#allocation8 + $0x6c8] sm:$0xff]
    %v2861 = vld [vmem:[#allocation8 + $0x6d0] sm:$0xff]
    %v2862 = vld [vmem:[#allocation8 + $0x6d8] sm:$0xff]
    %v2863 = vld [vmem:[#allocation8 + $0x6e0] sm:$0xff]
    %v2864 = vld [vmem:[#allocation8 + $0x6e8] sm:$0xff]
    %v2865 = vld [vmem:[#allocation8 + $0x6f0] sm:$0xff]
    %v2866 = vld [vmem:[#allocation8 + $0x6f8] sm:$0xff]
    %v2867 = vld [vmem:[#allocation8 + $0x700] sm:$0xff]
    %v2868 = vld [vmem:[#allocation8 + $0x708] sm:$0xff]
    %v2869 = vld [vmem:[#allocation8 + $0x710] sm:$0xff]
    %v2870 = vld [vmem:[#allocation8 + $0x718] sm:$0xff]
    %v2871 = vld [vmem:[#allocation8 + $0x720] sm:$0xff]
    %v2872 = vld [vmem:[#allocation8 + $0x728] sm:$0xff]
    %v2873 = vld [vmem:[#allocation8 + $0x730] sm:$0xff]
    %v2874 = vld [vmem:[#allocation8 + $0x738] sm:$0xff]
    %v2875 = vld [vmem:[#allocation8 + $0x740] sm:$0xff]
    %v2876 = vld [vmem:[#allocation8 + $0x748] sm:$0xff]
    %v2877 = vld [vmem:[#allocation8 + $0x750] sm:$0xff]
    %v2878 = vld [vmem:[#allocation8 + $0x758] sm:$0xff]
    %v2879 = vld [vmem:[#allocation8 + $0x760] sm:$0xff]
    %v2880 = vld [vmem:[#allocation8 + $0x768] sm:$0xff]
    %v2881 = vld [vmem:[#allocation8 + $0x770] sm:$0xff]
    %v2882 = vld [vmem:[#allocation8 + $0x778] sm:$0xff]
    %v2883 = vld [vmem:[#allocation8 + $0x780] sm:$0xff]
    %v2884 = vld [vmem:[#allocation8 + $0x788] sm:$0xff]
    %v2885 = vld [vmem:[#allocation8 + $0x790] sm:$0xff]
    %v2886 = vld [vmem:[#allocation8 + $0x798] sm:$0xff]
    %v2887 = vld [vmem:[#allocation8 + $0x7a0] sm:$0xff]
    %v2888 = vld [vmem:[#allocation8 + $0x7a8] sm:$0xff]
    %v2889 = vld [vmem:[#allocation8 + $0x7b0] sm:$0xff]
    %v2890 = vld [vmem:[#allocation8 + $0x7b8] sm:$0xff]
    %v2891 = vld [vmem:[#allocation8 + $0x7c0] sm:$0xff]
    %v2892 = vld [vmem:[#allocation8 + $0x7c8] sm:$0xff]
    %v2893 = vld [vmem:[#allocation8 + $0x7d0] sm:$0xff]
    %v2894 = vld [vmem:[#allocation8 + $0x7d8] sm:$0xff]
    %v2895 = vld [vmem:[#allocation8 + $0x7e0] sm:$0xff]
    %v2896 = vld [vmem:[#allocation8 + $0x7e8] sm:$0xff]
    %v2897 = vld [vmem:[#allocation8 + $0x7f0] sm:$0xff]
    %v2898 = vld [vmem:[#allocation8 + $0x7f8] sm:$0xff]
    %v2899 = vld [vmem:[#allocation23] sm:$0xff]
    %v2901 = vlaneseq
    %v2902 = vshrl.u32 %v2901, 7
    %v2903 = vsub.s32 0, %v2902
    %v2904 = vrot.slane %v2899, %v2903
    %v2905 = vlaneseq
    %v2906 = vshrl.u32 %v2905, 7
    %v2907 = vsub.s32 1, %v2906
    %v2908 = vrot.slane %v2899, %v2907
    %v2909 = vlaneseq
    %v2910 = vshrl.u32 %v2909, 7
    %v2911 = vsub.s32 2, %v2910
    %v2912 = vrot.slane %v2899, %v2911
    %v2913 = vlaneseq
    %v2914 = vshrl.u32 %v2913, 7
    %v2915 = vsub.s32 3, %v2914
    %v2916 = vrot.slane %v2899, %v2915
    %v2917 = vlaneseq
    %v2918 = vshrl.u32 %v2917, 7
    %v2919 = vsub.s32 4, %v2918
    %v2920 = vrot.slane %v2899, %v2919
    %v2921 = vlaneseq
    %v2922 = vshrl.u32 %v2921, 7
    %v2923 = vsub.s32 5, %v2922
    %v2924 = vrot.slane %v2899, %v2923
    %v2925 = vlaneseq
    %v2926 = vshrl.u32 %v2925, 7
    %v2927 = vsub.s32 6, %v2926
    %v2928 = vrot.slane %v2899, %v2927
    %v2929 = vlaneseq
    %v2930 = vshrl.u32 %v2929, 7
    %v2931 = vsub.s32 7, %v2930
    %v2932 = vrot.slane %v2899, %v2931
    %2941 = vmatprep.subr.bf16.mxu0 %v2644
    %2942 = vmatpush1.bf16.msra.mxu0 %v2643
    %2943 = vmatprep.subr.bf16.mxu0 %v2652
    %2944 = vmatpush1.bf16.msra.mxu0 %v2651
    %2945 = vmatprep.subr.bf16.mxu0 %v2660
    %2946 = vmatpush1.bf16.msra.mxu0 %v2659
    %2947 = vmatprep.subr.bf16.mxu0 %v2668
    %2948 = vmatpush1.bf16.msra.mxu0 %v2667
    %2949 = vmatprep.subr.bf16.mxu0 %v2676
    %2950 = vmatpush1.bf16.msra.mxu0 %v2675
    %2951 = vmatprep.subr.bf16.mxu0 %v2684
    %2952 = vmatpush1.bf16.msra.mxu0 %v2683
    %2953 = vmatprep.subr.bf16.mxu0 %v2692
    %2954 = vmatpush1.bf16.msra.mxu0 %v2691
    %2955 = vmatprep.subr.bf16.mxu0 %v2700
    %2956 = vmatpush1.bf16.msra.mxu0 %v2699
    %2957 = vmatprep.subr.bf16.mxu0 %v2708
    %2958 = vmatpush1.bf16.msra.mxu0 %v2707
    %2959 = vmatprep.subr.bf16.mxu0 %v2716
    %2960 = vmatpush1.bf16.msra.mxu0 %v2715
    %2961 = vmatprep.subr.bf16.mxu0 %v2724
    %2962 = vmatpush1.bf16.msra.mxu0 %v2723
    %2963 = vmatprep.subr.bf16.mxu0 %v2732
    %2964 = vmatpush1.bf16.msra.mxu0 %v2731
    %2965 = vmatprep.subr.bf16.mxu0 %v2740
    %2966 = vmatpush1.bf16.msra.mxu0 %v2739
    %2967 = vmatprep.subr.bf16.mxu0 %v2748
    %2968 = vmatpush1.bf16.msra.mxu0 %v2747
    %2969 = vmatprep.subr.bf16.mxu0 %v2756
    %2970 = vmatpush1.bf16.msra.mxu0 %v2755
    %2971 = vmatprep.subr.bf16.mxu0 %v2764
    %2972 = vmatpush1.bf16.msra.mxu0 %v2763
    %2973 = vmatprep.mubr.bf16.mxu0 %v2637
    %2974 = vmatmul.mubr.bf16.gmra.mrb[0].mxu0 %v2636
    %v2975 = vpop.f32.mrb[0].mxu0
    %v2976 = vadd.f32 %v2904, %v2975
    %v2977 = vpop.f32.mrb[0].mxu0
    %v2978 = vadd.f32 %v2908, %v2977
    %v2979 = vpop.f32.mrb[0].mxu0
    %v2980 = vpop.f32.mrb[0].mxu0
    %2981 = vdwg.mxu0
    %2982 = vmatprep.subr.bf16.mxu0 %v2772
    %2983 = vmatpush1.bf16.msra.mxu0 %v2771
    %2984 = vmatprep.subr.bf16.mxu0 %v2780
    %2985 = vmatpush1.bf16.msra.mxu0 %v2779
    %2986 = vmatprep.subr.bf16.mxu0 %v2788
    %2987 = vmatpush1.bf16.msra.mxu0 %v2787
    %2988 = vmatprep.subr.bf16.mxu0 %v2796
    %2989 = vmatpush1.bf16.msra.mxu0 %v2795
    %2990 = vmatprep.subr.bf16.mxu0 %v2804
    %2991 = vmatpush1.bf16.msra.mxu0 %v2803
    %2992 = vmatprep.subr.bf16.mxu0 %v2812
    %2993 = vmatpush1.bf16.msra.mxu0 %v2811
    %2994 = vmatprep.subr.bf16.mxu0 %v2820
    %2995 = vmatpush1.bf16.msra.mxu0 %v2819
    %2996 = vmatprep.subr.bf16.mxu0 %v2828
    %2997 = vmatpush1.bf16.msra.mxu0 %v2827
    %2998 = vmatprep.subr.bf16.mxu0 %v2836
    %2999 = vmatpush1.bf16.msra.mxu0 %v2835
    %3000 = vmatprep.subr.bf16.mxu0 %v2844
    %3001 = vmatpush1.bf16.msra.mxu0 %v2843
    %3002 = vmatprep.subr.bf16.mxu0 %v2852
    %3003 = vmatpush1.bf16.msra.mxu0 %v2851
    %3004 = vmatprep.subr.bf16.mxu0 %v2860
    %3005 = vmatpush1.bf16.msra.mxu0 %v2859
    %3006 = vmatprep.subr.bf16.mxu0 %v2868
    %3007 = vmatpush1.bf16.msra.mxu0 %v2867
    %3008 = vmatprep.subr.bf16.mxu0 %v2876
    %3009 = vmatpush1.bf16.msra.mxu0 %v2875
    %3010 = vmatprep.subr.bf16.mxu0 %v2884
    %3011 = vmatpush1.bf16.msra.mxu0 %v2883
    %3012 = vmatprep.subr.bf16.mxu0 %v2892
    %3013 = vmatpush1.bf16.msra.mxu0 %v2891
    %3014 = vmatprep.mubr.bf16.mxu0 %v2639
    %3015 = vmatmul.mubr.bf16.gmra.mrb[0].mxu0 %v2638
    %v3016 = vpop.f32.mrb[0].mxu0
    %v3017 = vadd.f32 %v2976, %v3016
    %v3018 = vpop.f32.mrb[0].mxu0
    %v3019 = vadd.f32 %v2978, %v3018
    %v3020 = vpop.f32.mrb[0].mxu0
    %v3021 = vpop.f32.mrb[0].mxu0
    %3022 = vdwg.mxu0
    %3023 = vmatprep.subr.bf16.mxu0 %v2646
    %3024 = vmatpush1.bf16.msra.mxu0 %v2645
    %3025 = vmatprep.subr.bf16.mxu0 %v2654
    %3026 = vmatpush1.bf16.msra.mxu0 %v2653
    %3027 = vmatprep.subr.bf16.mxu0 %v2662
    %3028 = vmatpush1.bf16.msra.mxu0 %v2661
    %3029 = vmatprep.subr.bf16.mxu0 %v2670
    %3030 = vmatpush1.bf16.msra.mxu0 %v2669
    %3031 = vmatprep.subr.bf16.mxu0 %v2678
    %3032 = vmatpush1.bf16.msra.mxu0 %v2677
    %3033 = vmatprep.subr.bf16.mxu0 %v2686
    %3034 = vmatpush1.bf16.msra.mxu0 %v2685
    %3035 = vmatprep.subr.bf16.mxu0 %v2694
    %3036 = vmatpush1.bf16.msra.mxu0 %v2693
    %3037 = vmatprep.subr.bf16.mxu0 %v2702
    %3038 = vmatpush1.bf16.msra.mxu0 %v2701
    %3039 = vmatprep.subr.bf16.mxu0 %v2710
    %3040 = vmatpush1.bf16.msra.mxu0 %v2709
    %3041 = vmatprep.subr.bf16.mxu0 %v2718
    %3042 = vmatpush1.bf16.msra.mxu0 %v2717
    %3043 = vmatprep.subr.bf16.mxu0 %v2726
    %3044 = vmatpush1.bf16.msra.mxu0 %v2725
    %3045 = vmatprep.subr.bf16.mxu0 %v2734
    %3046 = vmatpush1.bf16.msra.mxu0 %v2733
    %3047 = vmatprep.subr.bf16.mxu0 %v2742
    %3048 = vmatpush1.bf16.msra.mxu0 %v2741
    %3049 = vmatprep.subr.bf16.mxu0 %v2750
    %3050 = vmatpush1.bf16.msra.mxu0 %v2749
    %3051 = vmatprep.subr.bf16.mxu0 %v2758
    %3052 = vmatpush1.bf16.msra.mxu0 %v2757
    %3053 = vmatprep.subr.bf16.mxu0 %v2766
    %3054 = vmatpush1.bf16.msra.mxu0 %v2765
    %3055 = vmatprep.mubr.bf16.mxu0 %v2637
    %3056 = vmatmul.mubr.bf16.gmra.mrb[0].mxu0 %v2636
    %v3057 = vpop.f32.mrb[0].mxu0
    %v3058 = vadd.f32 %v2912, %v3057
    %v3059 = vpop.f32.mrb[0].mxu0
    %v3060 = vadd.f32 %v2916, %v3059
    %v3061 = vpop.f32.mrb[0].mxu0
    %v3062 = vpop.f32.mrb[0].mxu0
    %3063 = vdwg.mxu0
    %3064 = vmatprep.subr.bf16.mxu0 %v2774
    %3065 = vmatpush1.bf16.msra.mxu0 %v2773
    %3066 = vmatprep.subr.bf16.mxu0 %v2782
    %3067 = vmatpush1.bf16.msra.mxu0 %v2781
    %3068 = vmatprep.subr.bf16.mxu0 %v2790
    %3069 = vmatpush1.bf16.msra.mxu0 %v2789
    %3070 = vmatprep.subr.bf16.mxu0 %v2798
    %3071 = vmatpush1.bf16.msra.mxu0 %v2797
    %3072 = vmatprep.subr.bf16.mxu0 %v2806
    %3073 = vmatpush1.bf16.msra.mxu0 %v2805
    %3074 = vmatprep.subr.bf16.mxu0 %v2814
    %3075 = vmatpush1.bf16.msra.mxu0 %v2813
    %3076 = vmatprep.subr.bf16.mxu0 %v2822
    %3077 = vmatpush1.bf16.msra.mxu0 %v2821
    %3078 = vmatprep.subr.bf16.mxu0 %v2830
    %3079 = vmatpush1.bf16.msra.mxu0 %v2829
    %3080 = vmatprep.subr.bf16.mxu0 %v2838
    %3081 = vmatpush1.bf16.msra.mxu0 %v2837
    %3082 = vmatprep.subr.bf16.mxu0 %v2846
    %3083 = vmatpush1.bf16.msra.mxu0 %v2845
    %3084 = vmatprep.subr.bf16.mxu0 %v2854
    %3085 = vmatpush1.bf16.msra.mxu0 %v2853
    %3086 = vmatprep.subr.bf16.mxu0 %v2862
    %3087 = vmatpush1.bf16.msra.mxu0 %v2861
    %3088 = vmatprep.subr.bf16.mxu0 %v2870
    %3089 = vmatpush1.bf16.msra.mxu0 %v2869
    %3090 = vmatprep.subr.bf16.mxu0 %v2878
    %3091 = vmatpush1.bf16.msra.mxu0 %v2877
    %3092 = vmatprep.subr.bf16.mxu0 %v2886
    %3093 = vmatpush1.bf16.msra.mxu0 %v2885
    %3094 = vmatprep.subr.bf16.mxu0 %v2894
    %3095 = vmatpush1.bf16.msra.mxu0 %v2893
    %3096 = vmatprep.mubr.bf16.mxu0 %v2639
    %3097 = vmatmul.mubr.bf16.gmra.mrb[0].mxu0 %v2638
    %v3098 = vpop.f32.mrb[0].mxu0
    %v3099 = vadd.f32 %v3058, %v3098
    %v3100 = vpop.f32.mrb[0].mxu0
    %v3101 = vadd.f32 %v3060, %v3100
    %v3102 = vpop.f32.mrb[0].mxu0
    %v3103 = vpop.f32.mrb[0].mxu0
    %3104 = vdwg.mxu0
    %3105 = vmatprep.subr.bf16.mxu0 %v2648
    %3106 = vmatpush1.bf16.msra.mxu0 %v2647
    %3107 = vmatprep.subr.bf16.mxu0 %v2656
    %3108 = vmatpush1.bf16.msra.mxu0 %v2655
    %3109 = vmatprep.subr.bf16.mxu0 %v2664
    %3110 = vmatpush1.bf16.msra.mxu0 %v2663
    %3111 = vmatprep.subr.bf16.mxu0 %v2672
    %3112 = vmatpush1.bf16.msra.mxu0 %v2671
    %3113 = vmatprep.subr.bf16.mxu0 %v2680
    %3114 = vmatpush1.bf16.msra.mxu0 %v2679
    %3115 = vmatprep.subr.bf16.mxu0 %v2688
    %3116 = vmatpush1.bf16.msra.mxu0 %v2687
    %3117 = vmatprep.subr.bf16.mxu0 %v2696
    %3118 = vmatpush1.bf16.msra.mxu0 %v2695
    %3119 = vmatprep.subr.bf16.mxu0 %v2704
    %3120 = vmatpush1.bf16.msra.mxu0 %v2703
    %3121 = vmatprep.subr.bf16.mxu0 %v2712
    %3122 = vmatpush1.bf16.msra.mxu0 %v2711
    %3123 = vmatprep.subr.bf16.mxu0 %v2720
    %3124 = vmatpush1.bf16.msra.mxu0 %v2719
    %3125 = vmatprep.subr.bf16.mxu0 %v2728
    %3126 = vmatpush1.bf16.msra.mxu0 %v2727
    %3127 = vmatprep.subr.bf16.mxu0 %v2736
    %3128 = vmatpush1.bf16.msra.mxu0 %v2735
    %3129 = vmatprep.subr.bf16.mxu0 %v2744
    %3130 = vmatpush1.bf16.msra.mxu0 %v2743
    %3131 = vmatprep.subr.bf16.mxu0 %v2752
    %3132 = vmatpush1.bf16.msra.mxu0 %v2751
    %3133 = vmatprep.subr.bf16.mxu0 %v2760
    %3134 = vmatpush1.bf16.msra.mxu0 %v2759
    %3135 = vmatprep.subr.bf16.mxu0 %v2768
    %3136 = vmatpush1.bf16.msra.mxu0 %v2767
    %3137 = vmatprep.mubr.bf16.mxu0 %v2637
    %3138 = vmatmul.mubr.bf16.gmra.mrb[0].mxu0 %v2636
    %v3139 = vpop.f32.mrb[0].mxu0
    %v3140 = vadd.f32 %v2920, %v3139
    %v3141 = vpop.f32.mrb[0].mxu0
    %v3142 = vadd.f32 %v2924, %v3141
    %v3143 = vpop.f32.mrb[0].mxu0
    %v3144 = vpop.f32.mrb[0].mxu0
    %3145 = vdwg.mxu0
    %3146 = vmatprep.subr.bf16.mxu0 %v2776
    %3147 = vmatpush1.bf16.msra.mxu0 %v2775
    %3148 = vmatprep.subr.bf16.mxu0 %v2784
    %3149 = vmatpush1.bf16.msra.mxu0 %v2783
    %3150 = vmatprep.subr.bf16.mxu0 %v2792
    %3151 = vmatpush1.bf16.msra.mxu0 %v2791
    %3152 = vmatprep.subr.bf16.mxu0 %v2800
    %3153 = vmatpush1.bf16.msra.mxu0 %v2799
    %3154 = vmatprep.subr.bf16.mxu0 %v2808
    %3155 = vmatpush1.bf16.msra.mxu0 %v2807
    %3156 = vmatprep.subr.bf16.mxu0 %v2816
    %3157 = vmatpush1.bf16.msra.mxu0 %v2815
    %3158 = vmatprep.subr.bf16.mxu0 %v2824
    %3159 = vmatpush1.bf16.msra.mxu0 %v2823
    %3160 = vmatprep.subr.bf16.mxu0 %v2832
    %3161 = vmatpush1.bf16.msra.mxu0 %v2831
    %3162 = vmatprep.subr.bf16.mxu0 %v2840
    %3163 = vmatpush1.bf16.msra.mxu0 %v2839
    %3164 = vmatprep.subr.bf16.mxu0 %v2848
    %3165 = vmatpush1.bf16.msra.mxu0 %v2847
    %3166 = vmatprep.subr.bf16.mxu0 %v2856
    %3167 = vmatpush1.bf16.msra.mxu0 %v2855
    %3168 = vmatprep.subr.bf16.mxu0 %v2864
    %3169 = vmatpush1.bf16.msra.mxu0 %v2863
    %3170 = vmatprep.subr.bf16.mxu0 %v2872
    %3171 = vmatpush1.bf16.msra.mxu0 %v2871
    %3172 = vmatprep.subr.bf16.mxu0 %v2880
    %3173 = vmatpush1.bf16.msra.mxu0 %v2879
    %3174 = vmatprep.subr.bf16.mxu0 %v2888
    %3175 = vmatpush1.bf16.msra.mxu0 %v2887
    %3176 = vmatprep.subr.bf16.mxu0 %v2896
    %3177 = vmatpush1.bf16.msra.mxu0 %v2895
    %3178 = vmatprep.mubr.bf16.mxu0 %v2639
    %3179 = vmatmul.mubr.bf16.gmra.mrb[0].mxu0 %v2638
    %v3180 = vpop.f32.mrb[0].mxu0
    %v3181 = vadd.f32 %v3140, %v3180
    %v3182 = vpop.f32.mrb[0].mxu0
    %v3183 = vadd.f32 %v3142, %v3182
    %v3184 = vpop.f32.mrb[0].mxu0
    %v3185 = vpop.f32.mrb[0].mxu0
    %3186 = vdwg.mxu0
    %3187 = vmatprep.subr.bf16.mxu0 %v2650
    %3188 = vmatpush1.bf16.msra.mxu0 %v2649
    %3189 = vmatprep.subr.bf16.mxu0 %v2658
    %3190 = vmatpush1.bf16.msra.mxu0 %v2657
    %3191 = vmatprep.subr.bf16.mxu0 %v2666
    %3192 = vmatpush1.bf16.msra.mxu0 %v2665
    %3193 = vmatprep.subr.bf16.mxu0 %v2674
    %3194 = vmatpush1.bf16.msra.mxu0 %v2673
    %3195 = vmatprep.subr.bf16.mxu0 %v2682
    %3196 = vmatpush1.bf16.msra.mxu0 %v2681
    %3197 = vmatprep.subr.bf16.mxu0 %v2690
    %3198 = vmatpush1.bf16.msra.mxu0 %v2689
    %3199 = vmatprep.subr.bf16.mxu0 %v2698
    %3200 = vmatpush1.bf16.msra.mxu0 %v2697
    %3201 = vmatprep.subr.bf16.mxu0 %v2706
    %3202 = vmatpush1.bf16.msra.mxu0 %v2705
    %3203 = vmatprep.subr.bf16.mxu0 %v2714
    %3204 = vmatpush1.bf16.msra.mxu0 %v2713
    %3205 = vmatprep.subr.bf16.mxu0 %v2722
    %3206 = vmatpush1.bf16.msra.mxu0 %v2721
    %3207 = vmatprep.subr.bf16.mxu0 %v2730
    %3208 = vmatpush1.bf16.msra.mxu0 %v2729
    %3209 = vmatprep.subr.bf16.mxu0 %v2738
    %3210 = vmatpush1.bf16.msra.mxu0 %v2737
    %3211 = vmatprep.subr.bf16.mxu0 %v2746
    %3212 = vmatpush1.bf16.msra.mxu0 %v2745
    %3213 = vmatprep.subr.bf16.mxu0 %v2754
    %3214 = vmatpush1.bf16.msra.mxu0 %v2753
    %3215 = vmatprep.subr.bf16.mxu0 %v2762
    %3216 = vmatpush1.bf16.msra.mxu0 %v2761
    %3217 = vmatprep.subr.bf16.mxu0 %v2770
    %3218 = vmatpush1.bf16.msra.mxu0 %v2769
    %3219 = vmatprep.mubr.bf16.mxu0 %v2637
    %3220 = vmatmul.mubr.bf16.gmra.mrb[0].mxu0 %v2636
    %v3221 = vpop.f32.mrb[0].mxu0
    %v3222 = vadd.f32 %v2928, %v3221
    %v3223 = vpop.f32.mrb[0].mxu0
    %v3224 = vadd.f32 %v2932, %v3223
    %v3225 = vpop.f32.mrb[0].mxu0
    %v3226 = vpop.f32.mrb[0].mxu0
    %3227 = vdwg.mxu0
    %3228 = vmatprep.subr.bf16.mxu0 %v2778
    %3229 = vmatpush1.bf16.msra.mxu0 %v2777
    %3230 = vmatprep.subr.bf16.mxu0 %v2786
    %3231 = vmatpush1.bf16.msra.mxu0 %v2785
    %3232 = vmatprep.subr.bf16.mxu0 %v2794
    %3233 = vmatpush1.bf16.msra.mxu0 %v2793
    %3234 = vmatprep.subr.bf16.mxu0 %v2802
    %3235 = vmatpush1.bf16.msra.mxu0 %v2801
    %3236 = vmatprep.subr.bf16.mxu0 %v2810
    %3237 = vmatpush1.bf16.msra.mxu0 %v2809
    %3238 = vmatprep.subr.bf16.mxu0 %v2818
    %3239 = vmatpush1.bf16.msra.mxu0 %v2817
    %3240 = vmatprep.subr.bf16.mxu0 %v2826
    %3241 = vmatpush1.bf16.msra.mxu0 %v2825
    %3242 = vmatprep.subr.bf16.mxu0 %v2834
    %3243 = vmatpush1.bf16.msra.mxu0 %v2833
    %3244 = vmatprep.subr.bf16.mxu0 %v2842
    %3245 = vmatpush1.bf16.msra.mxu0 %v2841
    %3246 = vmatprep.subr.bf16.mxu0 %v2850
    %3247 = vmatpush1.bf16.msra.mxu0 %v2849
    %3248 = vmatprep.subr.bf16.mxu0 %v2858
    %3249 = vmatpush1.bf16.msra.mxu0 %v2857
    %3250 = vmatprep.subr.bf16.mxu0 %v2866
    %3251 = vmatpush1.bf16.msra.mxu0 %v2865
    %3252 = vmatprep.subr.bf16.mxu0 %v2874
    %3253 = vmatpush1.bf16.msra.mxu0 %v2873
    %3254 = vmatprep.subr.bf16.mxu0 %v2882
    %3255 = vmatpush1.bf16.msra.mxu0 %v2881
    %3256 = vmatprep.subr.bf16.mxu0 %v2890
    %3257 = vmatpush1.bf16.msra.mxu0 %v2889
    %3258 = vmatprep.subr.bf16.mxu0 %v2898
    %3259 = vmatpush1.bf16.msra.mxu0 %v2897
    %3260 = vmatprep.mubr.bf16.mxu0 %v2639
    %3261 = vmatmul.mubr.bf16.gmra.mrb[0].mxu0 %v2638
    %v3262 = vpop.f32.mrb[0].mxu0
    %v3263 = vadd.f32 %v3222, %v3262
    %v3264 = vpop.f32.mrb[0].mxu0
    %v3265 = vadd.f32 %v3224, %v3264
    %v3266 = vpop.f32.mrb[0].mxu0
    %v3267 = vpop.f32.mrb[0].mxu0
    %3268 = vdwg.mxu0
    %v3269 = vmax.f32 %v3017, 0.0
    %v3270 = vmax.f32 %v3019, 0.0
    %v3271 = vmax.f32 %v3099, 0.0
    %v3272 = vmax.f32 %v3101, 0.0
    %v3273 = vmax.f32 %v3181, 0.0
    %v3274 = vmax.f32 %v3183, 0.0
    %v3275 = vmax.f32 %v3263, 0.0
    %v3276 = vmax.f32 %v3265, 0.0
    %v3277 = vpack.c.bf16 %v3269, %v3269
    %v3278 = vpack.c.bf16 %v3270, %v3270
    %v3279 = vpack.c.bf16 %v3271, %v3271
    %v3280 = vpack.c.bf16 %v3272, %v3272
    %v3281 = vpack.c.bf16 %v3273, %v3273
    %v3282 = vpack.c.bf16 %v3274, %v3274
    %v3283 = vpack.c.bf16 %v3275, %v3275
    %v3284 = vpack.c.bf16 %v3276, %v3276
    %s3285 = smul.u32 %s1531, 7
    %s3286 = sshll.u32 %s3285, 4
    %3287 = dma.done %s368, %s3286
    %v3288 = vld [vmem:[#allocation9] sm:$0xff]
    %v3289 = vld [vmem:[#allocation9 + $0x8] sm:$0xff]
    %v3290 = vld [vmem:[#allocation9 + $0x10] sm:$0xff]
    %v3291 = vld [vmem:[#allocation9 + $0x18] sm:$0xff]
    %v3292 = vld [vmem:[#allocation9 + $0x20] sm:$0xff]
    %v3293 = vld [vmem:[#allocation9 + $0x28] sm:$0xff]
    %v3294 = vld [vmem:[#allocation9 + $0x30] sm:$0xff]
    %v3295 = vld [vmem:[#allocation9 + $0x38] sm:$0xff]
    %v3296 = vld [vmem:[#allocation9 + $0x40] sm:$0xff]
    %v3297 = vld [vmem:[#allocation9 + $0x48] sm:$0xff]
    %v3298 = vld [vmem:[#allocation9 + $0x50] sm:$0xff]
    %v3299 = vld [vmem:[#allocation9 + $0x58] sm:$0xff]
    %v3300 = vld [vmem:[#allocation9 + $0x60] sm:$0xff]
    %v3301 = vld [vmem:[#allocation9 + $0x68] sm:$0xff]
    %v3302 = vld [vmem:[#allocation9 + $0x70] sm:$0xff]
    %v3303 = vld [vmem:[#allocation9 + $0x78] sm:$0xff]
    %v3304 = vld [vmem:[#allocation9 + $0x80] sm:$0xff]
    %v3305 = vld [vmem:[#allocation9 + $0x88] sm:$0xff]
    %v3306 = vld [vmem:[#allocation9 + $0x90] sm:$0xff]
    %v3307 = vld [vmem:[#allocation9 + $0x98] sm:$0xff]
    %v3308 = vld [vmem:[#allocation9 + $0xa0] sm:$0xff]
    %v3309 = vld [vmem:[#allocation9 + $0xa8] sm:$0xff]
    %v3310 = vld [vmem:[#allocation9 + $0xb0] sm:$0xff]
    %v3311 = vld [vmem:[#allocation9 + $0xb8] sm:$0xff]
    %v3312 = vld [vmem:[#allocation9 + $0xc0] sm:$0xff]
    %v3313 = vld [vmem:[#allocation9 + $0xc8] sm:$0xff]
    %v3314 = vld [vmem:[#allocation9 + $0xd0] sm:$0xff]
    %v3315 = vld [vmem:[#allocation9 + $0xd8] sm:$0xff]
    %v3316 = vld [vmem:[#allocation9 + $0xe0] sm:$0xff]
    %v3317 = vld [vmem:[#allocation9 + $0xe8] sm:$0xff]
    %v3318 = vld [vmem:[#allocation9 + $0xf0] sm:$0xff]
    %v3319 = vld [vmem:[#allocation9 + $0xf8] sm:$0xff]
    %v3320 = vld [vmem:[#allocation9 + $0x100] sm:$0xff]
    %v3321 = vld [vmem:[#allocation9 + $0x108] sm:$0xff]
    %v3322 = vld [vmem:[#allocation9 + $0x110] sm:$0xff]
    %v3323 = vld [vmem:[#allocation9 + $0x118] sm:$0xff]
    %v3324 = vld [vmem:[#allocation9 + $0x120] sm:$0xff]
    %v3325 = vld [vmem:[#allocation9 + $0x128] sm:$0xff]
    %v3326 = vld [vmem:[#allocation9 + $0x130] sm:$0xff]
    %v3327 = vld [vmem:[#allocation9 + $0x138] sm:$0xff]
    %v3328 = vld [vmem:[#allocation9 + $0x140] sm:$0xff]
    %v3329 = vld [vmem:[#allocation9 + $0x148] sm:$0xff]
    %v3330 = vld [vmem:[#allocation9 + $0x150] sm:$0xff]
    %v3331 = vld [vmem:[#allocation9 + $0x158] sm:$0xff]
    %v3332 = vld [vmem:[#allocation9 + $0x160] sm:$0xff]
    %v3333 = vld [vmem:[#allocation9 + $0x168] sm:$0xff]
    %v3334 = vld [vmem:[#allocation9 + $0x170] sm:$0xff]
    %v3335 = vld [vmem:[#allocation9 + $0x178] sm:$0xff]
    %v3336 = vld [vmem:[#allocation9 + $0x180] sm:$0xff]
    %v3337 = vld [vmem:[#allocation9 + $0x188] sm:$0xff]
    %v3338 = vld [vmem:[#allocation9 + $0x190] sm:$0xff]
    %v3339 = vld [vmem:[#allocation9 + $0x198] sm:$0xff]
    %v3340 = vld [vmem:[#allocation9 + $0x1a0] sm:$0xff]
    %v3341 = vld [vmem:[#allocation9 + $0x1a8] sm:$0xff]
    %v3342 = vld [vmem:[#allocation9 + $0x1b0] sm:$0xff]
    %v3343 = vld [vmem:[#allocation9 + $0x1b8] sm:$0xff]
    %v3344 = vld [vmem:[#allocation9 + $0x1c0] sm:$0xff]
    %v3345 = vld [vmem:[#allocation9 + $0x1c8] sm:$0xff]
    %v3346 = vld [vmem:[#allocation9 + $0x1d0] sm:$0xff]
    %v3347 = vld [vmem:[#allocation9 + $0x1d8] sm:$0xff]
    %v3348 = vld [vmem:[#allocation9 + $0x1e0] sm:$0xff]
    %v3349 = vld [vmem:[#allocation9 + $0x1e8] sm:$0xff]
    %v3350 = vld [vmem:[#allocation9 + $0x1f0] sm:$0xff]
    %v3351 = vld [vmem:[#allocation9 + $0x1f8] sm:$0xff]
    %v3352 = vld [vmem:[#allocation9 + $0x200] sm:$0xff]
    %v3353 = vld [vmem:[#allocation9 + $0x208] sm:$0xff]
    %v3354 = vld [vmem:[#allocation9 + $0x210] sm:$0xff]
    %v3355 = vld [vmem:[#allocation9 + $0x218] sm:$0xff]
    %v3356 = vld [vmem:[#allocation9 + $0x220] sm:$0xff]
    %v3357 = vld [vmem:[#allocation9 + $0x228] sm:$0xff]
    %v3358 = vld [vmem:[#allocation9 + $0x230] sm:$0xff]
    %v3359 = vld [vmem:[#allocation9 + $0x238] sm:$0xff]
    %v3360 = vld [vmem:[#allocation9 + $0x240] sm:$0xff]
    %v3361 = vld [vmem:[#allocation9 + $0x248] sm:$0xff]
    %v3362 = vld [vmem:[#allocation9 + $0x250] sm:$0xff]
    %v3363 = vld [vmem:[#allocation9 + $0x258] sm:$0xff]
    %v3364 = vld [vmem:[#allocation9 + $0x260] sm:$0xff]
    %v3365 = vld [vmem:[#allocation9 + $0x268] sm:$0xff]
    %v3366 = vld [vmem:[#allocation9 + $0x270] sm:$0xff]
    %v3367 = vld [vmem:[#allocation9 + $0x278] sm:$0xff]
    %v3368 = vld [vmem:[#allocation9 + $0x280] sm:$0xff]
    %v3369 = vld [vmem:[#allocation9 + $0x288] sm:$0xff]
    %v3370 = vld [vmem:[#allocation9 + $0x290] sm:$0xff]
    %v3371 = vld [vmem:[#allocation9 + $0x298] sm:$0xff]
    %v3372 = vld [vmem:[#allocation9 + $0x2a0] sm:$0xff]
    %v3373 = vld [vmem:[#allocation9 + $0x2a8] sm:$0xff]
    %v3374 = vld [vmem:[#allocation9 + $0x2b0] sm:$0xff]
    %v3375 = vld [vmem:[#allocation9 + $0x2b8] sm:$0xff]
    %v3376 = vld [vmem:[#allocation9 + $0x2c0] sm:$0xff]
    %v3377 = vld [vmem:[#allocation9 + $0x2c8] sm:$0xff]
    %v3378 = vld [vmem:[#allocation9 + $0x2d0] sm:$0xff]
    %v3379 = vld [vmem:[#allocation9 + $0x2d8] sm:$0xff]
    %v3380 = vld [vmem:[#allocation9 + $0x2e0] sm:$0xff]
    %v3381 = vld [vmem:[#allocation9 + $0x2e8] sm:$0xff]
    %v3382 = vld [vmem:[#allocation9 + $0x2f0] sm:$0xff]
    %v3383 = vld [vmem:[#allocation9 + $0x2f8] sm:$0xff]
    %v3384 = vld [vmem:[#allocation9 + $0x300] sm:$0xff]
    %v3385 = vld [vmem:[#allocation9 + $0x308] sm:$0xff]
    %v3386 = vld [vmem:[#allocation9 + $0x310] sm:$0xff]
    %v3387 = vld [vmem:[#allocation9 + $0x318] sm:$0xff]
    %v3388 = vld [vmem:[#allocation9 + $0x320] sm:$0xff]
    %v3389 = vld [vmem:[#allocation9 + $0x328] sm:$0xff]
    %v3390 = vld [vmem:[#allocation9 + $0x330] sm:$0xff]
    %v3391 = vld [vmem:[#allocation9 + $0x338] sm:$0xff]
    %v3392 = vld [vmem:[#allocation9 + $0x340] sm:$0xff]
    %v3393 = vld [vmem:[#allocation9 + $0x348] sm:$0xff]
    %v3394 = vld [vmem:[#allocation9 + $0x350] sm:$0xff]
    %v3395 = vld [vmem:[#allocation9 + $0x358] sm:$0xff]
    %v3396 = vld [vmem:[#allocation9 + $0x360] sm:$0xff]
    %v3397 = vld [vmem:[#allocation9 + $0x368] sm:$0xff]
    %v3398 = vld [vmem:[#allocation9 + $0x370] sm:$0xff]
    %v3399 = vld [vmem:[#allocation9 + $0x378] sm:$0xff]
    %v3400 = vld [vmem:[#allocation9 + $0x380] sm:$0xff]
    %v3401 = vld [vmem:[#allocation9 + $0x388] sm:$0xff]
    %v3402 = vld [vmem:[#allocation9 + $0x390] sm:$0xff]
    %v3403 = vld [vmem:[#allocation9 + $0x398] sm:$0xff]
    %v3404 = vld [vmem:[#allocation9 + $0x3a0] sm:$0xff]
    %v3405 = vld [vmem:[#allocation9 + $0x3a8] sm:$0xff]
    %v3406 = vld [vmem:[#allocation9 + $0x3b0] sm:$0xff]
    %v3407 = vld [vmem:[#allocation9 + $0x3b8] sm:$0xff]
    %v3408 = vld [vmem:[#allocation9 + $0x3c0] sm:$0xff]
    %v3409 = vld [vmem:[#allocation9 + $0x3c8] sm:$0xff]
    %v3410 = vld [vmem:[#allocation9 + $0x3d0] sm:$0xff]
    %v3411 = vld [vmem:[#allocation9 + $0x3d8] sm:$0xff]
    %v3412 = vld [vmem:[#allocation9 + $0x3e0] sm:$0xff]
    %v3413 = vld [vmem:[#allocation9 + $0x3e8] sm:$0xff]
    %v3414 = vld [vmem:[#allocation9 + $0x3f0] sm:$0xff]
    %v3415 = vld [vmem:[#allocation9 + $0x3f8] sm:$0xff]
    %v3416 = vld [vmem:[#allocation9 + $0x400] sm:$0xff]
    %v3417 = vld [vmem:[#allocation9 + $0x408] sm:$0xff]
    %v3418 = vld [vmem:[#allocation9 + $0x410] sm:$0xff]
    %v3419 = vld [vmem:[#allocation9 + $0x418] sm:$0xff]
    %v3420 = vld [vmem:[#allocation9 + $0x420] sm:$0xff]
    %v3421 = vld [vmem:[#allocation9 + $0x428] sm:$0xff]
    %v3422 = vld [vmem:[#allocation9 + $0x430] sm:$0xff]
    %v3423 = vld [vmem:[#allocation9 + $0x438] sm:$0xff]
    %v3424 = vld [vmem:[#allocation9 + $0x440] sm:$0xff]
    %v3425 = vld [vmem:[#allocation9 + $0x448] sm:$0xff]
    %v3426 = vld [vmem:[#allocation9 + $0x450] sm:$0xff]
    %v3427 = vld [vmem:[#allocation9 + $0x458] sm:$0xff]
    %v3428 = vld [vmem:[#allocation9 + $0x460] sm:$0xff]
    %v3429 = vld [vmem:[#allocation9 + $0x468] sm:$0xff]
    %v3430 = vld [vmem:[#allocation9 + $0x470] sm:$0xff]
    %v3431 = vld [vmem:[#allocation9 + $0x478] sm:$0xff]
    %v3432 = vld [vmem:[#allocation9 + $0x480] sm:$0xff]
    %v3433 = vld [vmem:[#allocation9 + $0x488] sm:$0xff]
    %v3434 = vld [vmem:[#allocation9 + $0x490] sm:$0xff]
    %v3435 = vld [vmem:[#allocation9 + $0x498] sm:$0xff]
    %v3436 = vld [vmem:[#allocation9 + $0x4a0] sm:$0xff]
    %v3437 = vld [vmem:[#allocation9 + $0x4a8] sm:$0xff]
    %v3438 = vld [vmem:[#allocation9 + $0x4b0] sm:$0xff]
    %v3439 = vld [vmem:[#allocation9 + $0x4b8] sm:$0xff]
    %v3440 = vld [vmem:[#allocation9 + $0x4c0] sm:$0xff]
    %v3441 = vld [vmem:[#allocation9 + $0x4c8] sm:$0xff]
    %v3442 = vld [vmem:[#allocation9 + $0x4d0] sm:$0xff]
    %v3443 = vld [vmem:[#allocation9 + $0x4d8] sm:$0xff]
    %v3444 = vld [vmem:[#allocation9 + $0x4e0] sm:$0xff]
    %v3445 = vld [vmem:[#allocation9 + $0x4e8] sm:$0xff]
    %v3446 = vld [vmem:[#allocation9 + $0x4f0] sm:$0xff]
    %v3447 = vld [vmem:[#allocation9 + $0x4f8] sm:$0xff]
    %v3448 = vld [vmem:[#allocation9 + $0x500] sm:$0xff]
    %v3449 = vld [vmem:[#allocation9 + $0x508] sm:$0xff]
    %v3450 = vld [vmem:[#allocation9 + $0x510] sm:$0xff]
    %v3451 = vld [vmem:[#allocation9 + $0x518] sm:$0xff]
    %v3452 = vld [vmem:[#allocation9 + $0x520] sm:$0xff]
    %v3453 = vld [vmem:[#allocation9 + $0x528] sm:$0xff]
    %v3454 = vld [vmem:[#allocation9 + $0x530] sm:$0xff]
    %v3455 = vld [vmem:[#allocation9 + $0x538] sm:$0xff]
    %v3456 = vld [vmem:[#allocation9 + $0x540] sm:$0xff]
    %v3457 = vld [vmem:[#allocation9 + $0x548] sm:$0xff]
    %v3458 = vld [vmem:[#allocation9 + $0x550] sm:$0xff]
    %v3459 = vld [vmem:[#allocation9 + $0x558] sm:$0xff]
    %v3460 = vld [vmem:[#allocation9 + $0x560] sm:$0xff]
    %v3461 = vld [vmem:[#allocation9 + $0x568] sm:$0xff]
    %v3462 = vld [vmem:[#allocation9 + $0x570] sm:$0xff]
    %v3463 = vld [vmem:[#allocation9 + $0x578] sm:$0xff]
    %v3464 = vld [vmem:[#allocation9 + $0x580] sm:$0xff]
    %v3465 = vld [vmem:[#allocation9 + $0x588] sm:$0xff]
    %v3466 = vld [vmem:[#allocation9 + $0x590] sm:$0xff]
    %v3467 = vld [vmem:[#allocation9 + $0x598] sm:$0xff]
    %v3468 = vld [vmem:[#allocation9 + $0x5a0] sm:$0xff]
    %v3469 = vld [vmem:[#allocation9 + $0x5a8] sm:$0xff]
    %v3470 = vld [vmem:[#allocation9 + $0x5b0] sm:$0xff]
    %v3471 = vld [vmem:[#allocation9 + $0x5b8] sm:$0xff]
    %v3472 = vld [vmem:[#allocation9 + $0x5c0] sm:$0xff]
    %v3473 = vld [vmem:[#allocation9 + $0x5c8] sm:$0xff]
    %v3474 = vld [vmem:[#allocation9 + $0x5d0] sm:$0xff]
    %v3475 = vld [vmem:[#allocation9 + $0x5d8] sm:$0xff]
    %v3476 = vld [vmem:[#allocation9 + $0x5e0] sm:$0xff]
    %v3477 = vld [vmem:[#allocation9 + $0x5e8] sm:$0xff]
    %v3478 = vld [vmem:[#allocation9 + $0x5f0] sm:$0xff]
    %v3479 = vld [vmem:[#allocation9 + $0x5f8] sm:$0xff]
    %v3480 = vld [vmem:[#allocation9 + $0x600] sm:$0xff]
    %v3481 = vld [vmem:[#allocation9 + $0x608] sm:$0xff]
    %v3482 = vld [vmem:[#allocation9 + $0x610] sm:$0xff]
    %v3483 = vld [vmem:[#allocation9 + $0x618] sm:$0xff]
    %v3484 = vld [vmem:[#allocation9 + $0x620] sm:$0xff]
    %v3485 = vld [vmem:[#allocation9 + $0x628] sm:$0xff]
    %v3486 = vld [vmem:[#allocation9 + $0x630] sm:$0xff]
    %v3487 = vld [vmem:[#allocation9 + $0x638] sm:$0xff]
    %v3488 = vld [vmem:[#allocation9 + $0x640] sm:$0xff]
    %v3489 = vld [vmem:[#allocation9 + $0x648] sm:$0xff]
    %v3490 = vld [vmem:[#allocation9 + $0x650] sm:$0xff]
    %v3491 = vld [vmem:[#allocation9 + $0x658] sm:$0xff]
    %v3492 = vld [vmem:[#allocation9 + $0x660] sm:$0xff]
    %v3493 = vld [vmem:[#allocation9 + $0x668] sm:$0xff]
    %v3494 = vld [vmem:[#allocation9 + $0x670] sm:$0xff]
    %v3495 = vld [vmem:[#allocation9 + $0x678] sm:$0xff]
    %v3496 = vld [vmem:[#allocation9 + $0x680] sm:$0xff]
    %v3497 = vld [vmem:[#allocation9 + $0x688] sm:$0xff]
    %v3498 = vld [vmem:[#allocation9 + $0x690] sm:$0xff]
    %v3499 = vld [vmem:[#allocation9 + $0x698] sm:$0xff]
    %v3500 = vld [vmem:[#allocation9 + $0x6a0] sm:$0xff]
    %v3501 = vld [vmem:[#allocation9 + $0x6a8] sm:$0xff]
    %v3502 = vld [vmem:[#allocation9 + $0x6b0] sm:$0xff]
    %v3503 = vld [vmem:[#allocation9 + $0x6b8] sm:$0xff]
    %v3504 = vld [vmem:[#allocation9 + $0x6c0] sm:$0xff]
    %v3505 = vld [vmem:[#allocation9 + $0x6c8] sm:$0xff]
    %v3506 = vld [vmem:[#allocation9 + $0x6d0] sm:$0xff]
    %v3507 = vld [vmem:[#allocation9 + $0x6d8] sm:$0xff]
    %v3508 = vld [vmem:[#allocation9 + $0x6e0] sm:$0xff]
    %v3509 = vld [vmem:[#allocation9 + $0x6e8] sm:$0xff]
    %v3510 = vld [vmem:[#allocation9 + $0x6f0] sm:$0xff]
    %v3511 = vld [vmem:[#allocation9 + $0x6f8] sm:$0xff]
    %v3512 = vld [vmem:[#allocation9 + $0x700] sm:$0xff]
    %v3513 = vld [vmem:[#allocation9 + $0x708] sm:$0xff]
    %v3514 = vld [vmem:[#allocation9 + $0x710] sm:$0xff]
    %v3515 = vld [vmem:[#allocation9 + $0x718] sm:$0xff]
    %v3516 = vld [vmem:[#allocation9 + $0x720] sm:$0xff]
    %v3517 = vld [vmem:[#allocation9 + $0x728] sm:$0xff]
    %v3518 = vld [vmem:[#allocation9 + $0x730] sm:$0xff]
    %v3519 = vld [vmem:[#allocation9 + $0x738] sm:$0xff]
    %v3520 = vld [vmem:[#allocation9 + $0x740] sm:$0xff]
    %v3521 = vld [vmem:[#allocation9 + $0x748] sm:$0xff]
    %v3522 = vld [vmem:[#allocation9 + $0x750] sm:$0xff]
    %v3523 = vld [vmem:[#allocation9 + $0x758] sm:$0xff]
    %v3524 = vld [vmem:[#allocation9 + $0x760] sm:$0xff]
    %v3525 = vld [vmem:[#allocation9 + $0x768] sm:$0xff]
    %v3526 = vld [vmem:[#allocation9 + $0x770] sm:$0xff]
    %v3527 = vld [vmem:[#allocation9 + $0x778] sm:$0xff]
    %v3528 = vld [vmem:[#allocation9 + $0x780] sm:$0xff]
    %v3529 = vld [vmem:[#allocation9 + $0x788] sm:$0xff]
    %v3530 = vld [vmem:[#allocation9 + $0x790] sm:$0xff]
    %v3531 = vld [vmem:[#allocation9 + $0x798] sm:$0xff]
    %v3532 = vld [vmem:[#allocation9 + $0x7a0] sm:$0xff]
    %v3533 = vld [vmem:[#allocation9 + $0x7a8] sm:$0xff]
    %v3534 = vld [vmem:[#allocation9 + $0x7b0] sm:$0xff]
    %v3535 = vld [vmem:[#allocation9 + $0x7b8] sm:$0xff]
    %v3536 = vld [vmem:[#allocation9 + $0x7c0] sm:$0xff]
    %v3537 = vld [vmem:[#allocation9 + $0x7c8] sm:$0xff]
    %v3538 = vld [vmem:[#allocation9 + $0x7d0] sm:$0xff]
    %v3539 = vld [vmem:[#allocation9 + $0x7d8] sm:$0xff]
    %v3540 = vld [vmem:[#allocation9 + $0x7e0] sm:$0xff]
    %v3541 = vld [vmem:[#allocation9 + $0x7e8] sm:$0xff]
    %v3542 = vld [vmem:[#allocation9 + $0x7f0] sm:$0xff]
    %v3543 = vld [vmem:[#allocation9 + $0x7f8] sm:$0xff]
    %v3544 = vld [vmem:[#allocation9 + $0x800] sm:$0xff]
    %v3545 = vld [vmem:[#allocation9 + $0x808] sm:$0xff]
    %v3546 = vld [vmem:[#allocation9 + $0x810] sm:$0xff]
    %v3547 = vld [vmem:[#allocation9 + $0x818] sm:$0xff]
    %v3548 = vld [vmem:[#allocation9 + $0x820] sm:$0xff]
    %v3549 = vld [vmem:[#allocation9 + $0x828] sm:$0xff]
    %v3550 = vld [vmem:[#allocation9 + $0x830] sm:$0xff]
    %v3551 = vld [vmem:[#allocation9 + $0x838] sm:$0xff]
    %v3552 = vld [vmem:[#allocation9 + $0x840] sm:$0xff]
    %v3553 = vld [vmem:[#allocation9 + $0x848] sm:$0xff]
    %v3554 = vld [vmem:[#allocation9 + $0x850] sm:$0xff]
    %v3555 = vld [vmem:[#allocation9 + $0x858] sm:$0xff]
    %v3556 = vld [vmem:[#allocation9 + $0x860] sm:$0xff]
    %v3557 = vld [vmem:[#allocation9 + $0x868] sm:$0xff]
    %v3558 = vld [vmem:[#allocation9 + $0x870] sm:$0xff]
    %v3559 = vld [vmem:[#allocation9 + $0x878] sm:$0xff]
    %v3560 = vld [vmem:[#allocation9 + $0x880] sm:$0xff]
    %v3561 = vld [vmem:[#allocation9 + $0x888] sm:$0xff]
    %v3562 = vld [vmem:[#allocation9 + $0x890] sm:$0xff]
    %v3563 = vld [vmem:[#allocation9 + $0x898] sm:$0xff]
    %v3564 = vld [vmem:[#allocation9 + $0x8a0] sm:$0xff]
    %v3565 = vld [vmem:[#allocation9 + $0x8a8] sm:$0xff]
    %v3566 = vld [vmem:[#allocation9 + $0x8b0] sm:$0xff]
    %v3567 = vld [vmem:[#allocation9 + $0x8b8] sm:$0xff]
    %v3568 = vld [vmem:[#allocation9 + $0x8c0] sm:$0xff]
    %v3569 = vld [vmem:[#allocation9 + $0x8c8] sm:$0xff]
    %v3570 = vld [vmem:[#allocation9 + $0x8d0] sm:$0xff]
    %v3571 = vld [vmem:[#allocation9 + $0x8d8] sm:$0xff]
    %v3572 = vld [vmem:[#allocation9 + $0x8e0] sm:$0xff]
    %v3573 = vld [vmem:[#allocation9 + $0x8e8] sm:$0xff]
    %v3574 = vld [vmem:[#allocation9 + $0x8f0] sm:$0xff]
    %v3575 = vld [vmem:[#allocation9 + $0x8f8] sm:$0xff]
    %v3576 = vld [vmem:[#allocation9 + $0x900] sm:$0xff]
    %v3577 = vld [vmem:[#allocation9 + $0x908] sm:$0xff]
    %v3578 = vld [vmem:[#allocation9 + $0x910] sm:$0xff]
    %v3579 = vld [vmem:[#allocation9 + $0x918] sm:$0xff]
    %v3580 = vld [vmem:[#allocation9 + $0x920] sm:$0xff]
    %v3581 = vld [vmem:[#allocation9 + $0x928] sm:$0xff]
    %v3582 = vld [vmem:[#allocation9 + $0x930] sm:$0xff]
    %v3583 = vld [vmem:[#allocation9 + $0x938] sm:$0xff]
    %v3584 = vld [vmem:[#allocation9 + $0x940] sm:$0xff]
    %v3585 = vld [vmem:[#allocation9 + $0x948] sm:$0xff]
    %v3586 = vld [vmem:[#allocation9 + $0x950] sm:$0xff]
    %v3587 = vld [vmem:[#allocation9 + $0x958] sm:$0xff]
    %v3588 = vld [vmem:[#allocation9 + $0x960] sm:$0xff]
    %v3589 = vld [vmem:[#allocation9 + $0x968] sm:$0xff]
    %v3590 = vld [vmem:[#allocation9 + $0x970] sm:$0xff]
    %v3591 = vld [vmem:[#allocation9 + $0x978] sm:$0xff]
    %v3592 = vld [vmem:[#allocation9 + $0x980] sm:$0xff]
    %v3593 = vld [vmem:[#allocation9 + $0x988] sm:$0xff]
    %v3594 = vld [vmem:[#allocation9 + $0x990] sm:$0xff]
    %v3595 = vld [vmem:[#allocation9 + $0x998] sm:$0xff]
    %v3596 = vld [vmem:[#allocation9 + $0x9a0] sm:$0xff]
    %v3597 = vld [vmem:[#allocation9 + $0x9a8] sm:$0xff]
    %v3598 = vld [vmem:[#allocation9 + $0x9b0] sm:$0xff]
    %v3599 = vld [vmem:[#allocation9 + $0x9b8] sm:$0xff]
    %v3600 = vld [vmem:[#allocation9 + $0x9c0] sm:$0xff]
    %v3601 = vld [vmem:[#allocation9 + $0x9c8] sm:$0xff]
    %v3602 = vld [vmem:[#allocation9 + $0x9d0] sm:$0xff]
    %v3603 = vld [vmem:[#allocation9 + $0x9d8] sm:$0xff]
    %v3604 = vld [vmem:[#allocation9 + $0x9e0] sm:$0xff]
    %v3605 = vld [vmem:[#allocation9 + $0x9e8] sm:$0xff]
    %v3606 = vld [vmem:[#allocation9 + $0x9f0] sm:$0xff]
    %v3607 = vld [vmem:[#allocation9 + $0x9f8] sm:$0xff]
    %v3608 = vld [vmem:[#allocation9 + $0xa00] sm:$0xff]
    %v3609 = vld [vmem:[#allocation9 + $0xa08] sm:$0xff]
    %v3610 = vld [vmem:[#allocation9 + $0xa10] sm:$0xff]
    %v3611 = vld [vmem:[#allocation9 + $0xa18] sm:$0xff]
    %v3612 = vld [vmem:[#allocation9 + $0xa20] sm:$0xff]
    %v3613 = vld [vmem:[#allocation9 + $0xa28] sm:$0xff]
    %v3614 = vld [vmem:[#allocation9 + $0xa30] sm:$0xff]
    %v3615 = vld [vmem:[#allocation9 + $0xa38] sm:$0xff]
    %v3616 = vld [vmem:[#allocation9 + $0xa40] sm:$0xff]
    %v3617 = vld [vmem:[#allocation9 + $0xa48] sm:$0xff]
    %v3618 = vld [vmem:[#allocation9 + $0xa50] sm:$0xff]
    %v3619 = vld [vmem:[#allocation9 + $0xa58] sm:$0xff]
    %v3620 = vld [vmem:[#allocation9 + $0xa60] sm:$0xff]
    %v3621 = vld [vmem:[#allocation9 + $0xa68] sm:$0xff]
    %v3622 = vld [vmem:[#allocation9 + $0xa70] sm:$0xff]
    %v3623 = vld [vmem:[#allocation9 + $0xa78] sm:$0xff]
    %v3624 = vld [vmem:[#allocation9 + $0xa80] sm:$0xff]
    %v3625 = vld [vmem:[#allocation9 + $0xa88] sm:$0xff]
    %v3626 = vld [vmem:[#allocation9 + $0xa90] sm:$0xff]
    %v3627 = vld [vmem:[#allocation9 + $0xa98] sm:$0xff]
    %v3628 = vld [vmem:[#allocation9 + $0xaa0] sm:$0xff]
    %v3629 = vld [vmem:[#allocation9 + $0xaa8] sm:$0xff]
    %v3630 = vld [vmem:[#allocation9 + $0xab0] sm:$0xff]
    %v3631 = vld [vmem:[#allocation9 + $0xab8] sm:$0xff]
    %v3632 = vld [vmem:[#allocation9 + $0xac0] sm:$0xff]
    %v3633 = vld [vmem:[#allocation9 + $0xac8] sm:$0xff]
    %v3634 = vld [vmem:[#allocation9 + $0xad0] sm:$0xff]
    %v3635 = vld [vmem:[#allocation9 + $0xad8] sm:$0xff]
    %v3636 = vld [vmem:[#allocation9 + $0xae0] sm:$0xff]
    %v3637 = vld [vmem:[#allocation9 + $0xae8] sm:$0xff]
    %v3638 = vld [vmem:[#allocation9 + $0xaf0] sm:$0xff]
    %v3639 = vld [vmem:[#allocation9 + $0xaf8] sm:$0xff]
    %v3640 = vld [vmem:[#allocation9 + $0xb00] sm:$0xff]
    %v3641 = vld [vmem:[#allocation9 + $0xb08] sm:$0xff]
    %v3642 = vld [vmem:[#allocation9 + $0xb10] sm:$0xff]
    %v3643 = vld [vmem:[#allocation9 + $0xb18] sm:$0xff]
    %v3644 = vld [vmem:[#allocation9 + $0xb20] sm:$0xff]
    %v3645 = vld [vmem:[#allocation9 + $0xb28] sm:$0xff]
    %v3646 = vld [vmem:[#allocation9 + $0xb30] sm:$0xff]
    %v3647 = vld [vmem:[#allocation9 + $0xb38] sm:$0xff]
    %v3648 = vld [vmem:[#allocation9 + $0xb40] sm:$0xff]
    %v3649 = vld [vmem:[#allocation9 + $0xb48] sm:$0xff]
    %v3650 = vld [vmem:[#allocation9 + $0xb50] sm:$0xff]
    %v3651 = vld [vmem:[#allocation9 + $0xb58] sm:$0xff]
    %v3652 = vld [vmem:[#allocation9 + $0xb60] sm:$0xff]
    %v3653 = vld [vmem:[#allocation9 + $0xb68] sm:$0xff]
    %v3654 = vld [vmem:[#allocation9 + $0xb70] sm:$0xff]
    %v3655 = vld [vmem:[#allocation9 + $0xb78] sm:$0xff]
    %v3656 = vld [vmem:[#allocation9 + $0xb80] sm:$0xff]
    %v3657 = vld [vmem:[#allocation9 + $0xb88] sm:$0xff]
    %v3658 = vld [vmem:[#allocation9 + $0xb90] sm:$0xff]
    %v3659 = vld [vmem:[#allocation9 + $0xb98] sm:$0xff]
    %v3660 = vld [vmem:[#allocation9 + $0xba0] sm:$0xff]
    %v3661 = vld [vmem:[#allocation9 + $0xba8] sm:$0xff]
    %v3662 = vld [vmem:[#allocation9 + $0xbb0] sm:$0xff]
    %v3663 = vld [vmem:[#allocation9 + $0xbb8] sm:$0xff]
    %v3664 = vld [vmem:[#allocation9 + $0xbc0] sm:$0xff]
    %v3665 = vld [vmem:[#allocation9 + $0xbc8] sm:$0xff]
    %v3666 = vld [vmem:[#allocation9 + $0xbd0] sm:$0xff]
    %v3667 = vld [vmem:[#allocation9 + $0xbd8] sm:$0xff]
    %v3668 = vld [vmem:[#allocation9 + $0xbe0] sm:$0xff]
    %v3669 = vld [vmem:[#allocation9 + $0xbe8] sm:$0xff]
    %v3670 = vld [vmem:[#allocation9 + $0xbf0] sm:$0xff]
    %v3671 = vld [vmem:[#allocation9 + $0xbf8] sm:$0xff]
    %v3672 = vld [vmem:[#allocation9 + $0xc00] sm:$0xff]
    %v3673 = vld [vmem:[#allocation9 + $0xc08] sm:$0xff]
    %v3674 = vld [vmem:[#allocation9 + $0xc10] sm:$0xff]
    %v3675 = vld [vmem:[#allocation9 + $0xc18] sm:$0xff]
    %v3676 = vld [vmem:[#allocation9 + $0xc20] sm:$0xff]
    %v3677 = vld [vmem:[#allocation9 + $0xc28] sm:$0xff]
    %v3678 = vld [vmem:[#allocation9 + $0xc30] sm:$0xff]
    %v3679 = vld [vmem:[#allocation9 + $0xc38] sm:$0xff]
    %v3680 = vld [vmem:[#allocation9 + $0xc40] sm:$0xff]
    %v3681 = vld [vmem:[#allocation9 + $0xc48] sm:$0xff]
    %v3682 = vld [vmem:[#allocation9 + $0xc50] sm:$0xff]
    %v3683 = vld [vmem:[#allocation9 + $0xc58] sm:$0xff]
    %v3684 = vld [vmem:[#allocation9 + $0xc60] sm:$0xff]
    %v3685 = vld [vmem:[#allocation9 + $0xc68] sm:$0xff]
    %v3686 = vld [vmem:[#allocation9 + $0xc70] sm:$0xff]
    %v3687 = vld [vmem:[#allocation9 + $0xc78] sm:$0xff]
    %v3688 = vld [vmem:[#allocation9 + $0xc80] sm:$0xff]
    %v3689 = vld [vmem:[#allocation9 + $0xc88] sm:$0xff]
    %v3690 = vld [vmem:[#allocation9 + $0xc90] sm:$0xff]
    %v3691 = vld [vmem:[#allocation9 + $0xc98] sm:$0xff]
    %v3692 = vld [vmem:[#allocation9 + $0xca0] sm:$0xff]
    %v3693 = vld [vmem:[#allocation9 + $0xca8] sm:$0xff]
    %v3694 = vld [vmem:[#allocation9 + $0xcb0] sm:$0xff]
    %v3695 = vld [vmem:[#allocation9 + $0xcb8] sm:$0xff]
    %v3696 = vld [vmem:[#allocation9 + $0xcc0] sm:$0xff]
    %v3697 = vld [vmem:[#allocation9 + $0xcc8] sm:$0xff]
    %v3698 = vld [vmem:[#allocation9 + $0xcd0] sm:$0xff]
    %v3699 = vld [vmem:[#allocation9 + $0xcd8] sm:$0xff]
    %v3700 = vld [vmem:[#allocation9 + $0xce0] sm:$0xff]
    %v3701 = vld [vmem:[#allocation9 + $0xce8] sm:$0xff]
    %v3702 = vld [vmem:[#allocation9 + $0xcf0] sm:$0xff]
    %v3703 = vld [vmem:[#allocation9 + $0xcf8] sm:$0xff]
    %v3704 = vld [vmem:[#allocation9 + $0xd00] sm:$0xff]
    %v3705 = vld [vmem:[#allocation9 + $0xd08] sm:$0xff]
    %v3706 = vld [vmem:[#allocation9 + $0xd10] sm:$0xff]
    %v3707 = vld [vmem:[#allocation9 + $0xd18] sm:$0xff]
    %v3708 = vld [vmem:[#allocation9 + $0xd20] sm:$0xff]
    %v3709 = vld [vmem:[#allocation9 + $0xd28] sm:$0xff]
    %v3710 = vld [vmem:[#allocation9 + $0xd30] sm:$0xff]
    %v3711 = vld [vmem:[#allocation9 + $0xd38] sm:$0xff]
    %v3712 = vld [vmem:[#allocation9 + $0xd40] sm:$0xff]
    %v3713 = vld [vmem:[#allocation9 + $0xd48] sm:$0xff]
    %v3714 = vld [vmem:[#allocation9 + $0xd50] sm:$0xff]
    %v3715 = vld [vmem:[#allocation9 + $0xd58] sm:$0xff]
    %v3716 = vld [vmem:[#allocation9 + $0xd60] sm:$0xff]
    %v3717 = vld [vmem:[#allocation9 + $0xd68] sm:$0xff]
    %v3718 = vld [vmem:[#allocation9 + $0xd70] sm:$0xff]
    %v3719 = vld [vmem:[#allocation9 + $0xd78] sm:$0xff]
    %v3720 = vld [vmem:[#allocation9 + $0xd80] sm:$0xff]
    %v3721 = vld [vmem:[#allocation9 + $0xd88] sm:$0xff]
    %v3722 = vld [vmem:[#allocation9 + $0xd90] sm:$0xff]
    %v3723 = vld [vmem:[#allocation9 + $0xd98] sm:$0xff]
    %v3724 = vld [vmem:[#allocation9 + $0xda0] sm:$0xff]
    %v3725 = vld [vmem:[#allocation9 + $0xda8] sm:$0xff]
    %v3726 = vld [vmem:[#allocation9 + $0xdb0] sm:$0xff]
    %v3727 = vld [vmem:[#allocation9 + $0xdb8] sm:$0xff]
    %v3728 = vld [vmem:[#allocation9 + $0xdc0] sm:$0xff]
    %v3729 = vld [vmem:[#allocation9 + $0xdc8] sm:$0xff]
    %v3730 = vld [vmem:[#allocation9 + $0xdd0] sm:$0xff]
    %v3731 = vld [vmem:[#allocation9 + $0xdd8] sm:$0xff]
    %v3732 = vld [vmem:[#allocation9 + $0xde0] sm:$0xff]
    %v3733 = vld [vmem:[#allocation9 + $0xde8] sm:$0xff]
    %v3734 = vld [vmem:[#allocation9 + $0xdf0] sm:$0xff]
    %v3735 = vld [vmem:[#allocation9 + $0xdf8] sm:$0xff]
    %v3736 = vld [vmem:[#allocation25] sm:$0xff]
    %v3738 = vlaneseq
    %v3739 = vshrl.u32 %v3738, 7
    %v3740 = vsub.s32 0, %v3739
    %v3741 = vrot.slane %v3736, %v3740
    %v3742 = vlaneseq
    %v3743 = vshrl.u32 %v3742, 7
    %v3744 = vsub.s32 1, %v3743
    %v3745 = vrot.slane %v3736, %v3744
    %v3746 = vlaneseq
    %v3747 = vshrl.u32 %v3746, 7
    %v3748 = vsub.s32 2, %v3747
    %v3749 = vrot.slane %v3736, %v3748
    %v3750 = vlaneseq
    %v3751 = vshrl.u32 %v3750, 7
    %v3752 = vsub.s32 3, %v3751
    %v3753 = vrot.slane %v3736, %v3752
    %v3754 = vlaneseq
    %v3755 = vshrl.u32 %v3754, 7
    %v3756 = vsub.s32 4, %v3755
    %v3757 = vrot.slane %v3736, %v3756
    %v3758 = vlaneseq
    %v3759 = vshrl.u32 %v3758, 7
    %v3760 = vsub.s32 5, %v3759
    %v3761 = vrot.slane %v3736, %v3760
    %v3762 = vlaneseq
    %v3763 = vshrl.u32 %v3762, 7
    %v3764 = vsub.s32 6, %v3763
    %v3765 = vrot.slane %v3736, %v3764
    %3773 = vmatprep.subr.bf16.mxu0 %v3289
    %3774 = vmatpush1.bf16.msra.mxu0 %v3288
    %3775 = vmatprep.subr.bf16.mxu0 %v3296
    %3776 = vmatpush1.bf16.msra.mxu0 %v3295
    %3777 = vmatprep.subr.bf16.mxu0 %v3303
    %3778 = vmatpush1.bf16.msra.mxu0 %v3302
    %3779 = vmatprep.subr.bf16.mxu0 %v3310
    %3780 = vmatpush1.bf16.msra.mxu0 %v3309
    %3781 = vmatprep.subr.bf16.mxu0 %v3317
    %3782 = vmatpush1.bf16.msra.mxu0 %v3316
    %3783 = vmatprep.subr.bf16.mxu0 %v3324
    %3784 = vmatpush1.bf16.msra.mxu0 %v3323
    %3785 = vmatprep.subr.bf16.mxu0 %v3331
    %3786 = vmatpush1.bf16.msra.mxu0 %v3330
    %3787 = vmatprep.subr.bf16.mxu0 %v3338
    %3788 = vmatpush1.bf16.msra.mxu0 %v3337
    %3789 = vmatprep.subr.bf16.mxu0 %v3345
    %3790 = vmatpush1.bf16.msra.mxu0 %v3344
    %3791 = vmatprep.subr.bf16.mxu0 %v3352
    %3792 = vmatpush1.bf16.msra.mxu0 %v3351
    %3793 = vmatprep.subr.bf16.mxu0 %v3359
    %3794 = vmatpush1.bf16.msra.mxu0 %v3358
    %3795 = vmatprep.subr.bf16.mxu0 %v3366
    %3796 = vmatpush1.bf16.msra.mxu0 %v3365
    %3797 = vmatprep.subr.bf16.mxu0 %v3373
    %3798 = vmatpush1.bf16.msra.mxu0 %v3372
    %3799 = vmatprep.subr.bf16.mxu0 %v3380
    %3800 = vmatpush1.bf16.msra.mxu0 %v3379
    %3801 = vmatprep.subr.bf16.mxu0 %v3387
    %3802 = vmatpush1.bf16.msra.mxu0 %v3386
    %3803 = vmatprep.subr.bf16.mxu0 %v3394
    %3804 = vmatpush1.bf16.msra.mxu0 %v3393
    %3805 = vmatprep.mubr.bf16.mxu0 %v3278
    %3806 = vmatmul.mubr.bf16.gmra.mrb[0].mxu0 %v3277
    %v3807 = vpop.f32.mrb[0].mxu0
    %v3808 = vadd.f32 %v3741, %v3807
    %v3809 = vpop.f32.mrb[0].mxu0
    %v3810 = vadd.f32 %v3745, %v3809
    %v3811 = vpop.f32.mrb[0].mxu0
    %v3812 = vpop.f32.mrb[0].mxu0
    %3813 = vdwg.mxu0
    %3814 = vmatprep.subr.bf16.mxu0 %v3401
    %3815 = vmatpush1.bf16.msra.mxu0 %v3400
    %3816 = vmatprep.subr.bf16.mxu0 %v3408
    %3817 = vmatpush1.bf16.msra.mxu0 %v3407
    %3818 = vmatprep.subr.bf16.mxu0 %v3415
    %3819 = vmatpush1.bf16.msra.mxu0 %v3414
    %3820 = vmatprep.subr.bf16.mxu0 %v3422
    %3821 = vmatpush1.bf16.msra.mxu0 %v3421
    %3822 = vmatprep.subr.bf16.mxu0 %v3429
    %3823 = vmatpush1.bf16.msra.mxu0 %v3428
    %3824 = vmatprep.subr.bf16.mxu0 %v3436
    %3825 = vmatpush1.bf16.msra.mxu0 %v3435
    %3826 = vmatprep.subr.bf16.mxu0 %v3443
    %3827 = vmatpush1.bf16.msra.mxu0 %v3442
    %3828 = vmatprep.subr.bf16.mxu0 %v3450
    %3829 = vmatpush1.bf16.msra.mxu0 %v3449
    %3830 = vmatprep.subr.bf16.mxu0 %v3457
    %3831 = vmatpush1.bf16.msra.mxu0 %v3456
    %3832 = vmatprep.subr.bf16.mxu0 %v3464
    %3833 = vmatpush1.bf16.msra.mxu0 %v3463
    %3834 = vmatprep.subr.bf16.mxu0 %v3471
    %3835 = vmatpush1.bf16.msra.mxu0 %v3470
    %3836 = vmatprep.subr.bf16.mxu0 %v3478
    %3837 = vmatpush1.bf16.msra.mxu0 %v3477
    %3838 = vmatprep.subr.bf16.mxu0 %v3485
    %3839 = vmatpush1.bf16.msra.mxu0 %v3484
    %3840 = vmatprep.subr.bf16.mxu0 %v3492
    %3841 = vmatpush1.bf16.msra.mxu0 %v3491
    %3842 = vmatprep.subr.bf16.mxu0 %v3499
    %3843 = vmatpush1.bf16.msra.mxu0 %v3498
    %3844 = vmatprep.subr.bf16.mxu0 %v3506
    %3845 = vmatpush1.bf16.msra.mxu0 %v3505
    %3846 = vmatprep.mubr.bf16.mxu0 %v3280
    %3847 = vmatmul.mubr.bf16.gmra.mrb[0].mxu0 %v3279
    %v3848 = vpop.f32.mrb[0].mxu0
    %v3849 = vadd.f32 %v3808, %v3848
    %v3850 = vpop.f32.mrb[0].mxu0
    %v3851 = vadd.f32 %v3810, %v3850
    %v3852 = vpop.f32.mrb[0].mxu0
    %v3853 = vpop.f32.mrb[0].mxu0
    %3854 = vdwg.mxu0
    %3855 = vmatprep.subr.bf16.mxu0 %v3513
    %3856 = vmatpush1.bf16.msra.mxu0 %v3512
    %3857 = vmatprep.subr.bf16.mxu0 %v3520
    %3858 = vmatpush1.bf16.msra.mxu0 %v3519
    %3859 = vmatprep.subr.bf16.mxu0 %v3527
    %3860 = vmatpush1.bf16.msra.mxu0 %v3526
    %3861 = vmatprep.subr.bf16.mxu0 %v3534
    %3862 = vmatpush1.bf16.msra.mxu0 %v3533
    %3863 = vmatprep.subr.bf16.mxu0 %v3541
    %3864 = vmatpush1.bf16.msra.mxu0 %v3540
    %3865 = vmatprep.subr.bf16.mxu0 %v3548
    %3866 = vmatpush1.bf16.msra.mxu0 %v3547
    %3867 = vmatprep.subr.bf16.mxu0 %v3555
    %3868 = vmatpush1.bf16.msra.mxu0 %v3554
    %3869 = vmatprep.subr.bf16.mxu0 %v3562
    %3870 = vmatpush1.bf16.msra.mxu0 %v3561
    %3871 = vmatprep.subr.bf16.mxu0 %v3569
    %3872 = vmatpush1.bf16.msra.mxu0 %v3568
    %3873 = vmatprep.subr.bf16.mxu0 %v3576
    %3874 = vmatpush1.bf16.msra.mxu0 %v3575
    %3875 = vmatprep.subr.bf16.mxu0 %v3583
    %3876 = vmatpush1.bf16.msra.mxu0 %v3582
    %3877 = vmatprep.subr.bf16.mxu0 %v3590
    %3878 = vmatpush1.bf16.msra.mxu0 %v3589
    %3879 = vmatprep.subr.bf16.mxu0 %v3597
    %3880 = vmatpush1.bf16.msra.mxu0 %v3596
    %3881 = vmatprep.subr.bf16.mxu0 %v3604
    %3882 = vmatpush1.bf16.msra.mxu0 %v3603
    %3883 = vmatprep.subr.bf16.mxu0 %v3611
    %3884 = vmatpush1.bf16.msra.mxu0 %v3610
    %3885 = vmatprep.subr.bf16.mxu0 %v3618
    %3886 = vmatpush1.bf16.msra.mxu0 %v3617
    %3887 = vmatprep.mubr.bf16.mxu0 %v3282
    %3888 = vmatmul.mubr.bf16.gmra.mrb[0].mxu0 %v3281
    %v3889 = vpop.f32.mrb[0].mxu0
    %v3890 = vadd.f32 %v3849, %v3889
    %v3891 = vpop.f32.mrb[0].mxu0
    %v3892 = vadd.f32 %v3851, %v3891
    %v3893 = vpop.f32.mrb[0].mxu0
    %v3894 = vpop.f32.mrb[0].mxu0
    %3895 = vdwg.mxu0
    %3896 = vmatprep.subr.bf16.mxu0 %v3625
    %3897 = vmatpush1.bf16.msra.mxu0 %v3624
    %3898 = vmatprep.subr.bf16.mxu0 %v3632
    %3899 = vmatpush1.bf16.msra.mxu0 %v3631
    %3900 = vmatprep.subr.bf16.mxu0 %v3639
    %3901 = vmatpush1.bf16.msra.mxu0 %v3638
    %3902 = vmatprep.subr.bf16.mxu0 %v3646
    %3903 = vmatpush1.bf16.msra.mxu0 %v3645
    %3904 = vmatprep.subr.bf16.mxu0 %v3653
    %3905 = vmatpush1.bf16.msra.mxu0 %v3652
    %3906 = vmatprep.subr.bf16.mxu0 %v3660
    %3907 = vmatpush1.bf16.msra.mxu0 %v3659
    %3908 = vmatprep.subr.bf16.mxu0 %v3667
    %3909 = vmatpush1.bf16.msra.mxu0 %v3666
    %3910 = vmatprep.subr.bf16.mxu0 %v3674
    %3911 = vmatpush1.bf16.msra.mxu0 %v3673
    %3912 = vmatprep.subr.bf16.mxu0 %v3681
    %3913 = vmatpush1.bf16.msra.mxu0 %v3680
    %3914 = vmatprep.subr.bf16.mxu0 %v3688
    %3915 = vmatpush1.bf16.msra.mxu0 %v3687
    %3916 = vmatprep.subr.bf16.mxu0 %v3695
    %3917 = vmatpush1.bf16.msra.mxu0 %v3694
    %3918 = vmatprep.subr.bf16.mxu0 %v3702
    %3919 = vmatpush1.bf16.msra.mxu0 %v3701
    %3920 = vmatprep.subr.bf16.mxu0 %v3709
    %3921 = vmatpush1.bf16.msra.mxu0 %v3708
    %3922 = vmatprep.subr.bf16.mxu0 %v3716
    %3923 = vmatpush1.bf16.msra.mxu0 %v3715
    %3924 = vmatprep.subr.bf16.mxu0 %v3723
    %3925 = vmatpush1.bf16.msra.mxu0 %v3722
    %3926 = vmatprep.subr.bf16.mxu0 %v3730
    %3927 = vmatpush1.bf16.msra.mxu0 %v3729
    %3928 = vmatprep.mubr.bf16.mxu0 %v3284
    %3929 = vmatmul.mubr.bf16.gmra.mrb[0].mxu0 %v3283
    %v3930 = vpop.f32.mrb[0].mxu0
    %v3931 = vadd.f32 %v3890, %v3930
    %v3932 = vpop.f32.mrb[0].mxu0
    %v3933 = vadd.f32 %v3892, %v3932
    %v3934 = vpop.f32.mrb[0].mxu0
    %v3935 = vpop.f32.mrb[0].mxu0
    %3936 = vdwg.mxu0
    %3937 = vmatprep.subr.bf16.mxu0 %v3291
    %3938 = vmatpush1.bf16.msra.mxu0 %v3290
    %3939 = vmatprep.subr.bf16.mxu0 %v3298
    %3940 = vmatpush1.bf16.msra.mxu0 %v3297
    %3941 = vmatprep.subr.bf16.mxu0 %v3305
    %3942 = vmatpush1.bf16.msra.mxu0 %v3304
    %3943 = vmatprep.subr.bf16.mxu0 %v3312
    %3944 = vmatpush1.bf16.msra.mxu0 %v3311
    %3945 = vmatprep.subr.bf16.mxu0 %v3319
    %3946 = vmatpush1.bf16.msra.mxu0 %v3318
    %3947 = vmatprep.subr.bf16.mxu0 %v3326
    %3948 = vmatpush1.bf16.msra.mxu0 %v3325
    %3949 = vmatprep.subr.bf16.mxu0 %v3333
    %3950 = vmatpush1.bf16.msra.mxu0 %v3332
    %3951 = vmatprep.subr.bf16.mxu0 %v3340
    %3952 = vmatpush1.bf16.msra.mxu0 %v3339
    %3953 = vmatprep.subr.bf16.mxu0 %v3347
    %3954 = vmatpush1.bf16.msra.mxu0 %v3346
    %3955 = vmatprep.subr.bf16.mxu0 %v3354
    %3956 = vmatpush1.bf16.msra.mxu0 %v3353
    %3957 = vmatprep.subr.bf16.mxu0 %v3361
    %3958 = vmatpush1.bf16.msra.mxu0 %v3360
    %3959 = vmatprep.subr.bf16.mxu0 %v3368
    %3960 = vmatpush1.bf16.msra.mxu0 %v3367
    %3961 = vmatprep.subr.bf16.mxu0 %v3375
    %3962 = vmatpush1.bf16.msra.mxu0 %v3374
    %3963 = vmatprep.subr.bf16.mxu0 %v3382
    %3964 = vmatpush1.bf16.msra.mxu0 %v3381
    %3965 = vmatprep.subr.bf16.mxu0 %v3389
    %3966 = vmatpush1.bf16.msra.mxu0 %v3388
    %3967 = vmatprep.subr.bf16.mxu0 %v3396
    %3968 = vmatpush1.bf16.msra.mxu0 %v3395
    %3969 = vmatprep.mubr.bf16.mxu0 %v3278
    %3970 = vmatmul.mubr.bf16.gmra.mrb[0].mxu0 %v3277
    %v3971 = vpop.f32.mrb[0].mxu0
    %v3972 = vadd.f32 %v3749, %v3971
    %v3973 = vpop.f32.mrb[0].mxu0
    %v3974 = vadd.f32 %v3753, %v3973
    %v3975 = vpop.f32.mrb[0].mxu0
    %v3976 = vpop.f32.mrb[0].mxu0
    %3977 = vdwg.mxu0
    %3978 = vmatprep.subr.bf16.mxu0 %v3403
    %3979 = vmatpush1.bf16.msra.mxu0 %v3402
    %3980 = vmatprep.subr.bf16.mxu0 %v3410
    %3981 = vmatpush1.bf16.msra.mxu0 %v3409
    %3982 = vmatprep.subr.bf16.mxu0 %v3417
    %3983 = vmatpush1.bf16.msra.mxu0 %v3416
    %3984 = vmatprep.subr.bf16.mxu0 %v3424
    %3985 = vmatpush1.bf16.msra.mxu0 %v3423
    %3986 = vmatprep.subr.bf16.mxu0 %v3431
    %3987 = vmatpush1.bf16.msra.mxu0 %v3430
    %3988 = vmatprep.subr.bf16.mxu0 %v3438
    %3989 = vmatpush1.bf16.msra.mxu0 %v3437
    %3990 = vmatprep.subr.bf16.mxu0 %v3445
    %3991 = vmatpush1.bf16.msra.mxu0 %v3444
    %3992 = vmatprep.subr.bf16.mxu0 %v3452
    %3993 = vmatpush1.bf16.msra.mxu0 %v3451
    %3994 = vmatprep.subr.bf16.mxu0 %v3459
    %3995 = vmatpush1.bf16.msra.mxu0 %v3458
    %3996 = vmatprep.subr.bf16.mxu0 %v3466
    %3997 = vmatpush1.bf16.msra.mxu0 %v3465
    %3998 = vmatprep.subr.bf16.mxu0 %v3473
    %3999 = vmatpush1.bf16.msra.mxu0 %v3472
    %4000 = vmatprep.subr.bf16.mxu0 %v3480
    %4001 = vmatpush1.bf16.msra.mxu0 %v3479
    %4002 = vmatprep.subr.bf16.mxu0 %v3487
    %4003 = vmatpush1.bf16.msra.mxu0 %v3486
    %4004 = vmatprep.subr.bf16.mxu0 %v3494
    %4005 = vmatpush1.bf16.msra.mxu0 %v3493
    %4006 = vmatprep.subr.bf16.mxu0 %v3501
    %4007 = vmatpush1.bf16.msra.mxu0 %v3500
    %4008 = vmatprep.subr.bf16.mxu0 %v3508
    %4009 = vmatpush1.bf16.msra.mxu0 %v3507
    %4010 = vmatprep.mubr.bf16.mxu0 %v3280
    %4011 = vmatmul.mubr.bf16.gmra.mrb[0].mxu0 %v3279
    %v4012 = vpop.f32.mrb[0].mxu0
    %v4013 = vadd.f32 %v3972, %v4012
    %v4014 = vpop.f32.mrb[0].mxu0
    %v4015 = vadd.f32 %v3974, %v4014
    %v4016 = vpop.f32.mrb[0].mxu0
    %v4017 = vpop.f32.mrb[0].mxu0
    %4018 = vdwg.mxu0
    %4019 = vmatprep.subr.bf16.mxu0 %v3515
    %4020 = vmatpush1.bf16.msra.mxu0 %v3514
    %4021 = vmatprep.subr.bf16.mxu0 %v3522
    %4022 = vmatpush1.bf16.msra.mxu0 %v3521
    %4023 = vmatprep.subr.bf16.mxu0 %v3529
    %4024 = vmatpush1.bf16.msra.mxu0 %v3528
    %4025 = vmatprep.subr.bf16.mxu0 %v3536
    %4026 = vmatpush1.bf16.msra.mxu0 %v3535
    %4027 = vmatprep.subr.bf16.mxu0 %v3543
    %4028 = vmatpush1.bf16.msra.mxu0 %v3542
    %4029 = vmatprep.subr.bf16.mxu0 %v3550
    %4030 = vmatpush1.bf16.msra.mxu0 %v3549
    %4031 = vmatprep.subr.bf16.mxu0 %v3557
    %4032 = vmatpush1.bf16.msra.mxu0 %v3556
    %4033 = vmatprep.subr.bf16.mxu0 %v3564
    %4034 = vmatpush1.bf16.msra.mxu0 %v3563
    %4035 = vmatprep.subr.bf16.mxu0 %v3571
    %4036 = vmatpush1.bf16.msra.mxu0 %v3570
    %4037 = vmatprep.subr.bf16.mxu0 %v3578
    %4038 = vmatpush1.bf16.msra.mxu0 %v3577
    %4039 = vmatprep.subr.bf16.mxu0 %v3585
    %4040 = vmatpush1.bf16.msra.mxu0 %v3584
    %4041 = vmatprep.subr.bf16.mxu0 %v3592
    %4042 = vmatpush1.bf16.msra.mxu0 %v3591
    %4043 = vmatprep.subr.bf16.mxu0 %v3599
    %4044 = vmatpush1.bf16.msra.mxu0 %v3598
    %4045 = vmatprep.subr.bf16.mxu0 %v3606
    %4046 = vmatpush1.bf16.msra.mxu0 %v3605
    %4047 = vmatprep.subr.bf16.mxu0 %v3613
    %4048 = vmatpush1.bf16.msra.mxu0 %v3612
    %4049 = vmatprep.subr.bf16.mxu0 %v3620
    %4050 = vmatpush1.bf16.msra.mxu0 %v3619
    %4051 = vmatprep.mubr.bf16.mxu0 %v3282
    %4052 = vmatmul.mubr.bf16.gmra.mrb[0].mxu0 %v3281
    %v4053 = vpop.f32.mrb[0].mxu0
    %v4054 = vadd.f32 %v4013, %v4053
    %v4055 = vpop.f32.mrb[0].mxu0
    %v4056 = vadd.f32 %v4015, %v4055
    %v4057 = vpop.f32.mrb[0].mxu0
    %v4058 = vpop.f32.mrb[0].mxu0
    %4059 = vdwg.mxu0
    %4060 = vmatprep.subr.bf16.mxu0 %v3627
    %4061 = vmatpush1.bf16.msra.mxu0 %v3626
    %4062 = vmatprep.subr.bf16.mxu0 %v3634
    %4063 = vmatpush1.bf16.msra.mxu0 %v3633
    %4064 = vmatprep.subr.bf16.mxu0 %v3641
    %4065 = vmatpush1.bf16.msra.mxu0 %v3640
    %4066 = vmatprep.subr.bf16.mxu0 %v3648
    %4067 = vmatpush1.bf16.msra.mxu0 %v3647
    %4068 = vmatprep.subr.bf16.mxu0 %v3655
    %4069 = vmatpush1.bf16.msra.mxu0 %v3654
    %4070 = vmatprep.subr.bf16.mxu0 %v3662
    %4071 = vmatpush1.bf16.msra.mxu0 %v3661
    %4072 = vmatprep.subr.bf16.mxu0 %v3669
    %4073 = vmatpush1.bf16.msra.mxu0 %v3668
    %4074 = vmatprep.subr.bf16.mxu0 %v3676
    %4075 = vmatpush1.bf16.msra.mxu0 %v3675
    %4076 = vmatprep.subr.bf16.mxu0 %v3683
    %4077 = vmatpush1.bf16.msra.mxu0 %v3682
    %4078 = vmatprep.subr.bf16.mxu0 %v3690
    %4079 = vmatpush1.bf16.msra.mxu0 %v3689
    %4080 = vmatprep.subr.bf16.mxu0 %v3697
    %4081 = vmatpush1.bf16.msra.mxu0 %v3696
    %4082 = vmatprep.subr.bf16.mxu0 %v3704
    %4083 = vmatpush1.bf16.msra.mxu0 %v3703
    %4084 = vmatprep.subr.bf16.mxu0 %v3711
    %4085 = vmatpush1.bf16.msra.mxu0 %v3710
    %4086 = vmatprep.subr.bf16.mxu0 %v3718
    %4087 = vmatpush1.bf16.msra.mxu0 %v3717
    %4088 = vmatprep.subr.bf16.mxu0 %v3725
    %4089 = vmatpush1.bf16.msra.mxu0 %v3724
    %4090 = vmatprep.subr.bf16.mxu0 %v3732
    %4091 = vmatpush1.bf16.msra.mxu0 %v3731
    %4092 = vmatprep.mubr.bf16.mxu0 %v3284
    %4093 = vmatmul.mubr.bf16.gmra.mrb[0].mxu0 %v3283
    %v4094 = vpop.f32.mrb[0].mxu0
    %v4095 = vadd.f32 %v4054, %v4094
    %v4096 = vpop.f32.mrb[0].mxu0
    %v4097 = vadd.f32 %v4056, %v4096
    %v4098 = vpop.f32.mrb[0].mxu0
    %v4099 = vpop.f32.mrb[0].mxu0
    %4100 = vdwg.mxu0
    %4101 = vmatprep.subr.bf16.mxu0 %v3293
    %4102 = vmatpush1.bf16.msra.mxu0 %v3292
    %4103 = vmatprep.subr.bf16.mxu0 %v3300
    %4104 = vmatpush1.bf16.msra.mxu0 %v3299
    %4105 = vmatprep.subr.bf16.mxu0 %v3307
    %4106 = vmatpush1.bf16.msra.mxu0 %v3306
    %4107 = vmatprep.subr.bf16.mxu0 %v3314
    %4108 = vmatpush1.bf16.msra.mxu0 %v3313
    %4109 = vmatprep.subr.bf16.mxu0 %v3321
    %4110 = vmatpush1.bf16.msra.mxu0 %v3320
    %4111 = vmatprep.subr.bf16.mxu0 %v3328
    %4112 = vmatpush1.bf16.msra.mxu0 %v3327
    %4113 = vmatprep.subr.bf16.mxu0 %v3335
    %4114 = vmatpush1.bf16.msra.mxu0 %v3334
    %4115 = vmatprep.subr.bf16.mxu0 %v3342
    %4116 = vmatpush1.bf16.msra.mxu0 %v3341
    %4117 = vmatprep.subr.bf16.mxu0 %v3349
    %4118 = vmatpush1.bf16.msra.mxu0 %v3348
    %4119 = vmatprep.subr.bf16.mxu0 %v3356
    %4120 = vmatpush1.bf16.msra.mxu0 %v3355
    %4121 = vmatprep.subr.bf16.mxu0 %v3363
    %4122 = vmatpush1.bf16.msra.mxu0 %v3362
    %4123 = vmatprep.subr.bf16.mxu0 %v3370
    %4124 = vmatpush1.bf16.msra.mxu0 %v3369
    %4125 = vmatprep.subr.bf16.mxu0 %v3377
    %4126 = vmatpush1.bf16.msra.mxu0 %v3376
    %4127 = vmatprep.subr.bf16.mxu0 %v3384
    %4128 = vmatpush1.bf16.msra.mxu0 %v3383
    %4129 = vmatprep.subr.bf16.mxu0 %v3391
    %4130 = vmatpush1.bf16.msra.mxu0 %v3390
    %4131 = vmatprep.subr.bf16.mxu0 %v3398
    %4132 = vmatpush1.bf16.msra.mxu0 %v3397
    %4133 = vmatprep.mubr.bf16.mxu0 %v3278
    %4134 = vmatmul.mubr.bf16.gmra.mrb[0].mxu0 %v3277
    %v4135 = vpop.f32.mrb[0].mxu0
    %v4136 = vadd.f32 %v3757, %v4135
    %v4137 = vpop.f32.mrb[0].mxu0
    %v4138 = vadd.f32 %v3761, %v4137
    %v4139 = vpop.f32.mrb[0].mxu0
    %v4140 = vpop.f32.mrb[0].mxu0
    %4141 = vdwg.mxu0
    %4142 = vmatprep.subr.bf16.mxu0 %v3405
    %4143 = vmatpush1.bf16.msra.mxu0 %v3404
    %4144 = vmatprep.subr.bf16.mxu0 %v3412
    %4145 = vmatpush1.bf16.msra.mxu0 %v3411
    %4146 = vmatprep.subr.bf16.mxu0 %v3419
    %4147 = vmatpush1.bf16.msra.mxu0 %v3418
    %4148 = vmatprep.subr.bf16.mxu0 %v3426
    %4149 = vmatpush1.bf16.msra.mxu0 %v3425
    %4150 = vmatprep.subr.bf16.mxu0 %v3433
    %4151 = vmatpush1.bf16.msra.mxu0 %v3432
    %4152 = vmatprep.subr.bf16.mxu0 %v3440
    %4153 = vmatpush1.bf16.msra.mxu0 %v3439
    %4154 = vmatprep.subr.bf16.mxu0 %v3447
    %4155 = vmatpush1.bf16.msra.mxu0 %v3446
    %4156 = vmatprep.subr.bf16.mxu0 %v3454
    %4157 = vmatpush1.bf16.msra.mxu0 %v3453
    %4158 = vmatprep.subr.bf16.mxu0 %v3461
    %4159 = vmatpush1.bf16.msra.mxu0 %v3460
    %4160 = vmatprep.subr.bf16.mxu0 %v3468
    %4161 = vmatpush1.bf16.msra.mxu0 %v3467
    %4162 = vmatprep.subr.bf16.mxu0 %v3475
    %4163 = vmatpush1.bf16.msra.mxu0 %v3474
    %4164 = vmatprep.subr.bf16.mxu0 %v3482
    %4165 = vmatpush1.bf16.msra.mxu0 %v3481
    %4166 = vmatprep.subr.bf16.mxu0 %v3489
    %4167 = vmatpush1.bf16.msra.mxu0 %v3488
    %4168 = vmatprep.subr.bf16.mxu0 %v3496
    %4169 = vmatpush1.bf16.msra.mxu0 %v3495
    %4170 = vmatprep.subr.bf16.mxu0 %v3503
    %4171 = vmatpush1.bf16.msra.mxu0 %v3502
    %4172 = vmatprep.subr.bf16.mxu0 %v3510
    %4173 = vmatpush1.bf16.msra.mxu0 %v3509
    %4174 = vmatprep.mubr.bf16.mxu0 %v3280
    %4175 = vmatmul.mubr.bf16.gmra.mrb[0].mxu0 %v3279
    %v4176 = vpop.f32.mrb[0].mxu0
    %v4177 = vadd.f32 %v4136, %v4176
    %v4178 = vpop.f32.mrb[0].mxu0
    %v4179 = vadd.f32 %v4138, %v4178
    %v4180 = vpop.f32.mrb[0].mxu0
    %v4181 = vpop.f32.mrb[0].mxu0
    %4182 = vdwg.mxu0
    %4183 = vmatprep.subr.bf16.mxu0 %v3517
    %4184 = vmatpush1.bf16.msra.mxu0 %v3516
    %4185 = vmatprep.subr.bf16.mxu0 %v3524
    %4186 = vmatpush1.bf16.msra.mxu0 %v3523
    %4187 = vmatprep.subr.bf16.mxu0 %v3531
    %4188 = vmatpush1.bf16.msra.mxu0 %v3530
    %4189 = vmatprep.subr.bf16.mxu0 %v3538
    %4190 = vmatpush1.bf16.msra.mxu0 %v3537
    %4191 = vmatprep.subr.bf16.mxu0 %v3545
    %4192 = vmatpush1.bf16.msra.mxu0 %v3544
    %4193 = vmatprep.subr.bf16.mxu0 %v3552
    %4194 = vmatpush1.bf16.msra.mxu0 %v3551
    %4195 = vmatprep.subr.bf16.mxu0 %v3559
    %4196 = vmatpush1.bf16.msra.mxu0 %v3558
    %4197 = vmatprep.subr.bf16.mxu0 %v3566
    %4198 = vmatpush1.bf16.msra.mxu0 %v3565
    %4199 = vmatprep.subr.bf16.mxu0 %v3573
    %4200 = vmatpush1.bf16.msra.mxu0 %v3572
    %4201 = vmatprep.subr.bf16.mxu0 %v3580
    %4202 = vmatpush1.bf16.msra.mxu0 %v3579
    %4203 = vmatprep.subr.bf16.mxu0 %v3587
    %4204 = vmatpush1.bf16.msra.mxu0 %v3586
    %4205 = vmatprep.subr.bf16.mxu0 %v3594
    %4206 = vmatpush1.bf16.msra.mxu0 %v3593
    %4207 = vmatprep.subr.bf16.mxu0 %v3601
    %4208 = vmatpush1.bf16.msra.mxu0 %v3600
    %4209 = vmatprep.subr.bf16.mxu0 %v3608
    %4210 = vmatpush1.bf16.msra.mxu0 %v3607
    %4211 = vmatprep.subr.bf16.mxu0 %v3615
    %4212 = vmatpush1.bf16.msra.mxu0 %v3614
    %4213 = vmatprep.subr.bf16.mxu0 %v3622
    %4214 = vmatpush1.bf16.msra.mxu0 %v3621
    %4215 = vmatprep.mubr.bf16.mxu0 %v3282
    %4216 = vmatmul.mubr.bf16.gmra.mrb[0].mxu0 %v3281
    %v4217 = vpop.f32.mrb[0].mxu0
    %v4218 = vadd.f32 %v4177, %v4217
    %v4219 = vpop.f32.mrb[0].mxu0
    %v4220 = vadd.f32 %v4179, %v4219
    %v4221 = vpop.f32.mrb[0].mxu0
    %v4222 = vpop.f32.mrb[0].mxu0
    %4223 = vdwg.mxu0
    %4224 = vmatprep.subr.bf16.mxu0 %v3629
    %4225 = vmatpush1.bf16.msra.mxu0 %v3628
    %4226 = vmatprep.subr.bf16.mxu0 %v3636
    %4227 = vmatpush1.bf16.msra.mxu0 %v3635
    %4228 = vmatprep.subr.bf16.mxu0 %v3643
    %4229 = vmatpush1.bf16.msra.mxu0 %v3642
    %4230 = vmatprep.subr.bf16.mxu0 %v3650
    %4231 = vmatpush1.bf16.msra.mxu0 %v3649
    %4232 = vmatprep.subr.bf16.mxu0 %v3657
    %4233 = vmatpush1.bf16.msra.mxu0 %v3656
    %4234 = vmatprep.subr.bf16.mxu0 %v3664
    %4235 = vmatpush1.bf16.msra.mxu0 %v3663
    %4236 = vmatprep.subr.bf16.mxu0 %v3671
    %4237 = vmatpush1.bf16.msra.mxu0 %v3670
    %4238 = vmatprep.subr.bf16.mxu0 %v3678
    %4239 = vmatpush1.bf16.msra.mxu0 %v3677
    %4240 = vmatprep.subr.bf16.mxu0 %v3685
    %4241 = vmatpush1.bf16.msra.mxu0 %v3684
    %4242 = vmatprep.subr.bf16.mxu0 %v3692
    %4243 = vmatpush1.bf16.msra.mxu0 %v3691
    %4244 = vmatprep.subr.bf16.mxu0 %v3699
    %4245 = vmatpush1.bf16.msra.mxu0 %v3698
    %4246 = vmatprep.subr.bf16.mxu0 %v3706
    %4247 = vmatpush1.bf16.msra.mxu0 %v3705
    %4248 = vmatprep.subr.bf16.mxu0 %v3713
    %4249 = vmatpush1.bf16.msra.mxu0 %v3712
    %4250 = vmatprep.subr.bf16.mxu0 %v3720
    %4251 = vmatpush1.bf16.msra.mxu0 %v3719
    %4252 = vmatprep.subr.bf16.mxu0 %v3727
    %4253 = vmatpush1.bf16.msra.mxu0 %v3726
    %4254 = vmatprep.subr.bf16.mxu0 %v3734
    %4255 = vmatpush1.bf16.msra.mxu0 %v3733
    %4256 = vmatprep.mubr.bf16.mxu0 %v3284
    %4257 = vmatmul.mubr.bf16.gmra.mrb[0].mxu0 %v3283
    %v4258 = vpop.f32.mrb[0].mxu0
    %v4259 = vadd.f32 %v4218, %v4258
    %v4260 = vpop.f32.mrb[0].mxu0
    %v4261 = vadd.f32 %v4220, %v4260
    %v4262 = vpop.f32.mrb[0].mxu0
    %v4263 = vpop.f32.mrb[0].mxu0
    %4264 = vdwg.mxu0
    %4265 = vmatprep.subr.bf16.mxu0 0
    %4266 = vmatpush1.bf16.msra.mxu0 %v3294
    %4267 = vmatprep.subr.bf16.mxu0 0
    %4268 = vmatpush1.bf16.msra.mxu0 %v3301
    %4269 = vmatprep.subr.bf16.mxu0 0
    %4270 = vmatpush1.bf16.msra.mxu0 %v3308
    %4271 = vmatprep.subr.bf16.mxu0 0
    %4272 = vmatpush1.bf16.msra.mxu0 %v3315
    %4273 = vmatprep.subr.bf16.mxu0 0
    %4274 = vmatpush1.bf16.msra.mxu0 %v3322
    %4275 = vmatprep.subr.bf16.mxu0 0
    %4276 = vmatpush1.bf16.msra.mxu0 %v3329
    %4277 = vmatprep.subr.bf16.mxu0 0
    %4278 = vmatpush1.bf16.msra.mxu0 %v3336
    %4279 = vmatprep.subr.bf16.mxu0 0
    %4280 = vmatpush1.bf16.msra.mxu0 %v3343
    %4281 = vmatprep.subr.bf16.mxu0 0
    %4282 = vmatpush1.bf16.msra.mxu0 %v3350
    %4283 = vmatprep.subr.bf16.mxu0 0
    %4284 = vmatpush1.bf16.msra.mxu0 %v3357
    %4285 = vmatprep.subr.bf16.mxu0 0
    %4286 = vmatpush1.bf16.msra.mxu0 %v3364
    %4287 = vmatprep.subr.bf16.mxu0 0
    %4288 = vmatpush1.bf16.msra.mxu0 %v3371
    %4289 = vmatprep.subr.bf16.mxu0 0
    %4290 = vmatpush1.bf16.msra.mxu0 %v3378
    %4291 = vmatprep.subr.bf16.mxu0 0
    %4292 = vmatpush1.bf16.msra.mxu0 %v3385
    %4293 = vmatprep.subr.bf16.mxu0 0
    %4294 = vmatpush1.bf16.msra.mxu0 %v3392
    %4295 = vmatprep.subr.bf16.mxu0 0
    %4296 = vmatpush1.bf16.msra.mxu0 %v3399
    %4297 = vmatprep.mubr.bf16.mxu0 %v3278
    %4298 = vmatmul.mubr.bf16.gmra.mrb[0].mxu0 %v3277
    %v4299 = vpop.f32.mrb[0].mxu0
    %v4300 = vadd.f32 %v3765, %v4299
    %v4301 = vpop.f32.mrb[0].mxu0
    %v4302 = vpop.f32.mrb[0].mxu0
    %v4303 = vpop.f32.mrb[0].mxu0
    %4304 = vdwg.mxu0
    %4305 = vmatprep.subr.bf16.mxu0 0
    %4306 = vmatpush1.bf16.msra.mxu0 %v3406
    %4307 = vmatprep.subr.bf16.mxu0 0
    %4308 = vmatpush1.bf16.msra.mxu0 %v3413
    %4309 = vmatprep.subr.bf16.mxu0 0
    %4310 = vmatpush1.bf16.msra.mxu0 %v3420
    %4311 = vmatprep.subr.bf16.mxu0 0
    %4312 = vmatpush1.bf16.msra.mxu0 %v3427
    %4313 = vmatprep.subr.bf16.mxu0 0
    %4314 = vmatpush1.bf16.msra.mxu0 %v3434
    %4315 = vmatprep.subr.bf16.mxu0 0
    %4316 = vmatpush1.bf16.msra.mxu0 %v3441
    %4317 = vmatprep.subr.bf16.mxu0 0
    %4318 = vmatpush1.bf16.msra.mxu0 %v3448
    %4319 = vmatprep.subr.bf16.mxu0 0
    %4320 = vmatpush1.bf16.msra.mxu0 %v3455
    %4321 = vmatprep.subr.bf16.mxu0 0
    %4322 = vmatpush1.bf16.msra.mxu0 %v3462
    %4323 = vmatprep.subr.bf16.mxu0 0
    %4324 = vmatpush1.bf16.msra.mxu0 %v3469
    %4325 = vmatprep.subr.bf16.mxu0 0
    %4326 = vmatpush1.bf16.msra.mxu0 %v3476
    %4327 = vmatprep.subr.bf16.mxu0 0
    %4328 = vmatpush1.bf16.msra.mxu0 %v3483
    %4329 = vmatprep.subr.bf16.mxu0 0
    %4330 = vmatpush1.bf16.msra.mxu0 %v3490
    %4331 = vmatprep.subr.bf16.mxu0 0
    %4332 = vmatpush1.bf16.msra.mxu0 %v3497
    %4333 = vmatprep.subr.bf16.mxu0 0
    %4334 = vmatpush1.bf16.msra.mxu0 %v3504
    %4335 = vmatprep.subr.bf16.mxu0 0
    %4336 = vmatpush1.bf16.msra.mxu0 %v3511
    %4337 = vmatprep.mubr.bf16.mxu0 %v3280
    %4338 = vmatmul.mubr.bf16.gmra.mrb[0].mxu0 %v3279
    %v4339 = vpop.f32.mrb[0].mxu0
    %v4340 = vadd.f32 %v4300, %v4339
    %v4341 = vpop.f32.mrb[0].mxu0
    %v4342 = vpop.f32.mrb[0].mxu0
    %v4343 = vpop.f32.mrb[0].mxu0
    %4344 = vdwg.mxu0
    %4345 = vmatprep.subr.bf16.mxu0 0
    %4346 = vmatpush1.bf16.msra.mxu0 %v3518
    %4347 = vmatprep.subr.bf16.mxu0 0
    %4348 = vmatpush1.bf16.msra.mxu0 %v3525
    %4349 = vmatprep.subr.bf16.mxu0 0
    %4350 = vmatpush1.bf16.msra.mxu0 %v3532
    %4351 = vmatprep.subr.bf16.mxu0 0
    %4352 = vmatpush1.bf16.msra.mxu0 %v3539
    %4353 = vmatprep.subr.bf16.mxu0 0
    %4354 = vmatpush1.bf16.msra.mxu0 %v3546
    %4355 = vmatprep.subr.bf16.mxu0 0
    %4356 = vmatpush1.bf16.msra.mxu0 %v3553
    %4357 = vmatprep.subr.bf16.mxu0 0
    %4358 = vmatpush1.bf16.msra.mxu0 %v3560
    %4359 = vmatprep.subr.bf16.mxu0 0
    %4360 = vmatpush1.bf16.msra.mxu0 %v3567
    %4361 = vmatprep.subr.bf16.mxu0 0
    %4362 = vmatpush1.bf16.msra.mxu0 %v3574
    %4363 = vmatprep.subr.bf16.mxu0 0
    %4364 = vmatpush1.bf16.msra.mxu0 %v3581
    %4365 = vmatprep.subr.bf16.mxu0 0
    %4366 = vmatpush1.bf16.msra.mxu0 %v3588
    %4367 = vmatprep.subr.bf16.mxu0 0
    %4368 = vmatpush1.bf16.msra.mxu0 %v3595
    %4369 = vmatprep.subr.bf16.mxu0 0
    %4370 = vmatpush1.bf16.msra.mxu0 %v3602
    %4371 = vmatprep.subr.bf16.mxu0 0
    %4372 = vmatpush1.bf16.msra.mxu0 %v3609
    %4373 = vmatprep.subr.bf16.mxu0 0
    %4374 = vmatpush1.bf16.msra.mxu0 %v3616
    %4375 = vmatprep.subr.bf16.mxu0 0
    %4376 = vmatpush1.bf16.msra.mxu0 %v3623
    %4377 = vmatprep.mubr.bf16.mxu0 %v3282
    %4378 = vmatmul.mubr.bf16.gmra.mrb[0].mxu0 %v3281
    %v4379 = vpop.f32.mrb[0].mxu0
    %v4380 = vadd.f32 %v4340, %v4379
    %v4381 = vpop.f32.mrb[0].mxu0
    %v4382 = vpop.f32.mrb[0].mxu0
    %v4383 = vpop.f32.mrb[0].mxu0
    %4384 = vdwg.mxu0
    %4385 = vmatprep.subr.bf16.mxu0 0
    %4386 = vmatpush1.bf16.msra.mxu0 %v3630
    %4387 = vmatprep.subr.bf16.mxu0 0
    %4388 = vmatpush1.bf16.msra.mxu0 %v3637
    %4389 = vmatprep.subr.bf16.mxu0 0
    %4390 = vmatpush1.bf16.msra.mxu0 %v3644
    %4391 = vmatprep.subr.bf16.mxu0 0
    %4392 = vmatpush1.bf16.msra.mxu0 %v3651
    %4393 = vmatprep.subr.bf16.mxu0 0
    %4394 = vmatpush1.bf16.msra.mxu0 %v3658
    %4395 = vmatprep.subr.bf16.mxu0 0
    %4396 = vmatpush1.bf16.msra.mxu0 %v3665
    %4397 = vmatprep.subr.bf16.mxu0 0
    %4398 = vmatpush1.bf16.msra.mxu0 %v3672
    %4399 = vmatprep.subr.bf16.mxu0 0
    %4400 = vmatpush1.bf16.msra.mxu0 %v3679
    %4401 = vmatprep.subr.bf16.mxu0 0
    %4402 = vmatpush1.bf16.msra.mxu0 %v3686
    %4403 = vmatprep.subr.bf16.mxu0 0
    %4404 = vmatpush1.bf16.msra.mxu0 %v3693
    %4405 = vmatprep.subr.bf16.mxu0 0
    %4406 = vmatpush1.bf16.msra.mxu0 %v3700
    %4407 = vmatprep.subr.bf16.mxu0 0
    %4408 = vmatpush1.bf16.msra.mxu0 %v3707
    %4409 = vmatprep.subr.bf16.mxu0 0
    %4410 = vmatpush1.bf16.msra.mxu0 %v3714
    %4411 = vmatprep.subr.bf16.mxu0 0
    %4412 = vmatpush1.bf16.msra.mxu0 %v3721
    %4413 = vmatprep.subr.bf16.mxu0 0
    %4414 = vmatpush1.bf16.msra.mxu0 %v3728
    %4415 = vmatprep.subr.bf16.mxu0 0
    %4416 = vmatpush1.bf16.msra.mxu0 %v3735
    %4417 = vmatprep.mubr.bf16.mxu0 %v3284
    %4418 = vmatmul.mubr.bf16.gmra.mrb[0].mxu0 %v3283
    %v4419 = vpop.f32.mrb[0].mxu0
    %v4420 = vadd.f32 %v4380, %v4419
    %v4421 = vpop.f32.mrb[0].mxu0
    %v4422 = vpop.f32.mrb[0].mxu0
    %v4423 = vpop.f32.mrb[0].mxu0
    %4424 = vdwg.mxu0
    %v4425 = vmax.f32 %v3931, 0.0
    %v4426 = vmax.f32 %v3933, 0.0
    %v4427 = vmax.f32 %v4095, 0.0
    %v4428 = vmax.f32 %v4097, 0.0
    %v4429 = vmax.f32 %v4259, 0.0
    %v4430 = vmax.f32 %v4261, 0.0
    %v4431 = vmax.f32 %v4420, 0.0
    %4432 = vst [vmem:[#allocation26] sm:$0xff] %v4425
    %4433 = vst [vmem:[#allocation26 + $0x8] sm:$0xff] %v4426
    %4434 = vst [vmem:[#allocation26 + $0x10] sm:$0xff] %v4427
    %4435 = vst [vmem:[#allocation26 + $0x18] sm:$0xff] %v4428
    %4436 = vst [vmem:[#allocation26 + $0x20] sm:$0xff] %v4429
    %4437 = vst [vmem:[#allocation26 + $0x28] sm:$0xff] %v4430
    %4438 = vst.msk [vmem:[#allocation26 + $0x30] sm:$0xff] %vm855, %v4431
    // Predicated region
    $region78: #{ae_forward.1} parent=1 // pred_check
      _
    $region79: #{ae_forward.1} parent=1 // pred_check_branch
      %4440 = sbr.rel (0) target = $region81
    $region80: #{ae_forward.1} parent=1 // pred_region
      %s4442 = ssub.s32 896, 896
      %4443 = vsyncadd [#allocation13], %s4442
      %s4445 = sshll.u32 [#allocation26], 4
      %s4446 = int_to_ptr.vmem [resolvable:$true] %s4445
      %4448 = dma.vmem_to_hbm [thread:$0]  %s4446, 896, %s17, [#allocation13]
    $region81: #{ae_forward.1} parent=1 // pred_fallthru
      _
    // Predicated region
    $region82: #{ae_forward.1} parent=1 // pred_check
      _
    $region83: #{ae_forward.1} parent=1 // pred_check_branch
      %4450 = sbr.rel (0) target = $region85
    $region84: #{ae_forward.1} parent=1 // pred_region
      %4451 = dma.done [#allocation13], 896
    $region85: #{ae_forward.1} parent=1 // pred_fallthru
      _
    %4452 = vsyncpa [#allocation12], 1
    %4453 = vsyncpa [#allocation15], 1
    %4454 = vsyncpa [#allocation18], 1
    %4455 = vsyncpa [#allocation21], 1
    %4456 = vsyncpa [#allocation24], 1
    %4457 = vsyncpa [#allocation13], 1
  %4458 = vsyncmov [#allocation10]
  %s4459 = vpop.sfrf %4458
  %p4460 = scmp.eq.s32.totalorder %s4459, 0
  %p4461 = pneg %p4460
  %4463 = shalt.err (%p4461)
  %s4464 = scalar_lea.sflag [#allocation10], 1
  %4465 = vsyncmov %s4464
  %s4466 = vpop.sfrf %4465
  %p4467 = scmp.eq.s32.totalorder %s4466, 0
  %p4468 = pneg %p4467
  %4470 = shalt.err (%p4468)
  %s4471 = scalar_lea.sflag [#allocation10], 2
  %4472 = vsyncmov %s4471
  %s4473 = vpop.sfrf %4472
  %p4474 = scmp.eq.s32.totalorder %s4473, 0
  %p4475 = pneg %p4474
  %4477 = shalt.err (%p4475)
  %s4478 = scalar_lea.sflag [#allocation10], 3
  %4479 = vsyncmov %s4478
  %s4480 = vpop.sfrf %4479
  %p4481 = scmp.eq.s32.totalorder %s4480, 0
  %p4482 = pneg %p4481
  %4484 = shalt.err (%p4482)
  %s4485 = scalar_lea.sflag [#allocation10], 4
  %4486 = vsyncmov %s4485
  %s4487 = vpop.sfrf %4486
  %p4488 = scmp.eq.s32.totalorder %s4487, 0
  %p4489 = pneg %p4488
  %4491 = shalt.err (%p4489)
  %s4492 = scalar_lea.sflag [#allocation10], 5
  %4493 = vsyncmov %s4492
  %s4494 = vpop.sfrf %4493
  %p4495 = scmp.eq.s32.totalorder %s4494, 0
  %p4496 = pneg %p4495
  %4498 = shalt.err (%p4496)
  %s4499 = scalar_lea.sflag [#allocation10], 6
  %4500 = vsyncmov %s4499
  %s4501 = vpop.sfrf %4500
  %p4502 = scmp.eq.s32.totalorder %s4501, 0
  %p4503 = pneg %p4502
  %4505 = shalt.err (%p4503)
  %s4506 = scalar_lea.sflag [#allocation10], 7
  %4507 = vsyncmov %s4506
  %s4508 = vpop.sfrf %4507
  %p4509 = scmp.eq.s32.totalorder %s4508, 0
  %p4510 = pneg %p4509
  %4512 = shalt.err (%p4510)

</llo_original>
